<compile_context>
chip_gen: v5e
topology: v5e:2x2
jax: 0.10.0
libtpu: 0.0.40
codegen_flags: <defaults>
</compile_context>

<pallas_src>
import functools

import jax
import jax.numpy as jnp
from jax import lax
from jax.experimental import pallas as pl
from jax.experimental.pallas import tpu as pltpu


COMMITMENT_COST = 0.25
EMBEDDING_DIM = 64
NUM_EMBEDDINGS = 1024


# --------------------------------------------------------------------------
# Kernel: distances -> first-argmin -> in-VMEM one-hot -> codebook gather
# --------------------------------------------------------------------------
def _vq_kernel(x_ref, w_ref, e_ref, q_ref, idx_ref, cnt_ref, dmin_ref, *,
               num_embeddings, tile_m, num_valid):
    # x_ref : [TM, D+1] bf16, last column == 1.0
    # w_ref : [D+1, K]  bf16, rows 0..D-1 = -2*E^T, row D = ||e||^2   (resident)
    # e_ref : [K, D]    f32 codebook                                  (resident)
    # Shifted squared distances: ||e||^2 - 2 x.e^T  (argmin-equivalent to full formula).
    d = jnp.dot(x_ref[...], w_ref[...], preferred_element_type=jnp.float32)   # [TM, K] f32
    d_min = jnp.min(d, axis=-1, keepdims=True)                                # [TM, 1]

    # First index achieving the minimum (same tie-breaking as torch.argmin), all int32.
    k_iota = lax.broadcasted_iota(jnp.int32, d.shape, 1)                      # [TM, K] i32
    idx = jnp.min(jnp.where(d == d_min, k_iota, num_embeddings),
                  axis=-1, keepdims=True)                                     # [TM, 1] i32
    idx_ref[...] = idx

    # One-hot stays in VMEM only; f32 gather keeps quantized rows exact codebook values.
    enc = (k_iota == idx).astype(jnp.float32)                                 # [TM, K]
    q_ref[...] = jnp.dot(enc, e_ref[...], preferred_element_type=jnp.float32)

    # Per-tile reductions (mask rows past the true M so padded rows don't contaminate them).
    row = pl.program_id(0) * tile_m + lax.broadcasted_iota(jnp.int32, (tile_m, 1), 0)
    valid = (row < num_valid).astype(jnp.float32)                             # [TM, 1]
    cnt_ref[...] = jnp.sum(enc * valid, axis=0, keepdims=True)[None]          # (1, 1, K)
    # sum_rows d_min = sum_rows (||e_idx||^2 - 2 x.e_idx); epilogue adds sum(||x||^2).
    dmin_ref[...] = jnp.sum(d_min * valid, keepdims=True)[None]               # (1, 1, 1)


def _pick_tile_m(m):
    # Cap at 512 (v7x has only 64 MiB VMEM/core) and prefer >= 4 grid steps so each
    # TensorCore of a megacore gets >= 2 pipelined steps.
    for cand in (512, 256, 128):
        if m >= 4 * cand:
            return cand
    return 128


def _vmem_limit_bytes(tile_m, d, k):
    # Double-buffered IO tiles + resident codebook operands + compiler-managed
    # [TM, K] f32 temporaries (distances, iota, select, one-hot), with 50% headroom.
    io = 2 * (tile_m * (d + 1) * 2      # x_aug bf16 tile
              + tile_m * d * 4          # quantized f32 tile
              + tile_m * 4              # idx tile
              + k * 4 + 4               # per-tile counts + dmin
              + (d + 1) * k * 2         # resident W_aug bf16
              + k * d * 4)              # resident codebook f32
    tmp = 6 * tile_m * k * 4
    est = int(1.5 * (io + tmp))
    return max(24 * 1024 * 1024, min(est, 48 * 1024 * 1024))


# --------------------------------------------------------------------------
# Wrapper: layout plumbing + pallas_call + cheap scalar epilogue
# --------------------------------------------------------------------------
def vector_quantizer_forward(embedding, x_nchw,
                             commitment_cost=COMMITMENT_COST, tile_m=None):
    k, d = embedding.shape
    n, c, h, w = x_nchw.shape
    assert c == d, (c, d)

    inputs = jnp.transpose(x_nchw, (0, 2, 3, 1)).astype(jnp.float32)          # NHWC
    flat = inputs.reshape(-1, d)                                              # [M, D] f32
    m = flat.shape[0]

    if tile_m is None:
        tile_m = _pick_tile_m(m)
    grid_m = pl.cdiv(m, tile_m)
    m_pad = grid_m * tile_m

    # bf16 distance operands; ||e||^2 folded into the contraction via a ones column.
    x_aug = jnp.concatenate([flat, jnp.ones((m, 1), jnp.float32)],
                            axis=1).astype(jnp.bfloat16)                      # [M, D+1]
    if m_pad != m:
        x_aug = jnp.pad(x_aug, ((0, m_pad - m), (0, 0)))
    e_f32 = embedding.astype(jnp.float32)                                     # [K, D]
    e_sq = jnp.sum(e_f32 * e_f32, axis=1)[None, :]                            # [1, K]
    w_aug = jnp.concatenate([-2.0 * e_f32.T, e_sq],
                            axis=0).astype(jnp.bfloat16)                      # [D+1, K]

    kernel = functools.partial(_vq_kernel, num_embeddings=k,
                               tile_m=tile_m, num_valid=m)

    q_pad, idx_pad, counts, dmin_sums = pl.pallas_call(
        kernel,
        out_shape=(jax.ShapeDtypeStruct((m_pad, d), jnp.float32),     # quantized rows
                   jax.ShapeDtypeStruct((m_pad, 1), jnp.int32),       # codebook indices
                   jax.ShapeDtypeStruct((grid_m, 1, k), jnp.float32),  # per-tile usage counts
                   jax.ShapeDtypeStruct((grid_m, 1, 1), jnp.float32)),  # per-tile dist sums
        grid=(grid_m,),
        in_specs=[
            pl.BlockSpec((tile_m, d + 1), lambda i: (i, 0)),   # x tile (pipelined over M)
            pl.BlockSpec((d + 1, k), lambda i: (0, 0)),        # [-2E^T ; ||e||^2] (resident)
            pl.BlockSpec((k, d), lambda i: (0, 0)),            # codebook f32 (resident)
        ],
        out_specs=(
            pl.BlockSpec((tile_m, d), lambda i: (i, 0)),
            pl.BlockSpec((tile_m, 1), lambda i: (i, 0)),
            pl.BlockSpec((1, 1, k), lambda i: (i, 0, 0)),
            pl.BlockSpec((1, 1, 1), lambda i: (i, 0, 0)),
        ),
        compiler_params=pltpu.CompilerParams(
            dimension_semantics=("parallel",),                 # shard row tiles on megacore
            vmem_limit_bytes=_vmem_limit_bytes(tile_m, d, k)),
    )(x_aug, w_aug, e_f32)

    quantized = q_pad[:m].reshape(n, h, w, d)
    enc_idx = idx_pad[:m, 0]

    # Cheap scalar epilogue — nothing [M,K]/[M,D]-sized is re-read from the kernel outputs.
    # sum((q-x)^2) = sum_rows(||e_idx||^2 - 2 x.e_idx) + sum(||x||^2); first term came from
    # the kernel's per-tile partials, second term is one fused pass over the f32 inputs.
    sse = jnp.sum(dmin_sums) + jnp.sum(flat * flat)
    mse = sse / (m * d)                    # == mean((quantized - inputs)**2)
    e_latent_loss = mse                    # forward value of mean((sg(q) - x)^2)
    q_latent_loss = mse                    # forward value of mean((q - sg(x))^2)
    loss = q_latent_loss + commitment_cost * e_latent_loss

    avg_probs = jnp.sum(counts, axis=(0, 1)) / m
    perplexity = jnp.exp(-jnp.sum(avg_probs * jnp.log(avg_probs + 1e-10)))

    # Straight-through estimator: forward value of inputs + sg(quantized - inputs) is exactly
    # `quantized`, so return it directly (no extra [M,D] re-read).
    # TODO(synk): gradient routing (stop_gradient / straight-through) needs a custom VJP;
    # this implementation is forward-only.
    quantized_nchw = jnp.transpose(quantized, (0, 3, 1, 2))

    # Dense one-hot encodings are materialised once, write-only, purely for API parity.
    encodings = jax.nn.one_hot(enc_idx, k, dtype=jnp.float32)

    return loss, quantized_nchw, perplexity, encodings


# --------------------------------------------------------------------------
# Pure-JAX reference (mirrors the PyTorch forward, HIGHEST precision)
# --------------------------------------------------------------------------
def vector_quantizer_ref(embedding, x_nchw, commitment_cost=COMMITMENT_COST):
    inputs = jnp.transpose(x_nchw, (0, 2, 3, 1)).astype(jnp.float32)
    shape = inputs.shape
    flat = inputs.reshape(-1, embedding.shape[1])
    dists = (jnp.sum(flat ** 2, axis=1, keepdims=True)
             + jnp.sum(embedding ** 2, axis=1)[None, :]
             - 2.0 * jnp.dot(flat, embedding.T, precision=lax.Precision.HIGHEST))
    idx = jnp.argmin(dists, axis=1)
    enc = jax.nn.one_hot(idx, embedding.shape[0], dtype=jnp.float32)
    quantized = jnp.dot(enc, embedding,
                        precision=lax.Precision.HIGHEST).reshape(shape)
    e_l = jnp.mean((lax.stop_gradient(quantized) - inputs) ** 2)
    q_l = jnp.mean((quantized - lax.stop_gradient(inputs)) ** 2)
    loss = q_l + commitment_cost * e_l
    quantized = inputs + lax.stop_gradient(quantized - inputs)
    avg_probs = jnp.mean(enc, axis=0)
    perplexity = jnp.exp(-jnp.sum(avg_probs * jnp.log(avg_probs + 1e-10)))
    return loss, jnp.transpose(quantized, (0, 3, 1, 2)), perplexity, enc


# --------------------------------------------------------------------------
if __name__ == "__main__":
    key = jax.random.PRNGKey(0)
    kx, ke = jax.random.split(key)

    batch, hh, ww = 2, 16, 16
    x = jax.random.normal(kx, (batch, EMBEDDING_DIM, hh, ww), jnp.float32)   # NCHW
    # torch init: embedding.weight ~ U(-1/num_embeddings, 1/num_embeddings)
    embedding = jax.random.uniform(
        ke, (NUM_EMBEDDINGS, EMBEDDING_DIM), jnp.float32,
        -1.0 / NUM_EMBEDDINGS, 1.0 / NUM_EMBEDDINGS)

    fwd = jax.jit(vector_quantizer_forward)
    loss, quantized, perplexity, encodings = jax.block_until_ready(fwd(embedding, x))

    assert quantized.shape == x.shape, quantized.shape
    assert encodings.shape == (batch * hh * ww, NUM_EMBEDDINGS), encodings.shape

    loss_r, quant_r, perp_r, enc_r = jax.block_until_ready(
        jax.jit(vector_quantizer_ref)(embedding, x))

    idx_k = jnp.argmax(encodings, axis=1)
    idx_r = jnp.argmax(enc_r, axis=1)
    match = float(jnp.mean((idx_k == idx_r).astype(jnp.float32)))
    assert match >= 0.98, match                       # tolerate rare bf16/FP tie flips
    assert jnp.allclose(loss, loss_r, rtol=2e-3, atol=1e-5), (float(loss), float(loss_r))
    assert jnp.allclose(perplexity, perp_r, rtol=2e-2), (float(perplexity), float(perp_r))
    assert jnp.allclose(quantized, quant_r, rtol=1e-3, atol=5e-3), (
        float(jnp.max(jnp.abs(quantized - quant_r))))

    print("KERNEL_OK")
</pallas_src>

<mosaic_0001>
module attributes {stable_mosaic.version = 11 : i64} {
  func.func @_vq_kernel(%arg0: i32, %arg1: memref<128x65xbf16, #tpu.memory_space<vmem>>, %arg2: memref<65x1024xbf16, #tpu.memory_space<vmem>>, %arg3: memref<1024x64xf32, #tpu.memory_space<vmem>>, %arg4: memref<128x64xf32, #tpu.memory_space<vmem>>, %arg5: memref<128x1xi32, #tpu.memory_space<vmem>>, %arg6: memref<1x1x1024xf32, #tpu.memory_space<vmem>>, %arg7: memref<1x1x1xf32, #tpu.memory_space<vmem>>) attributes {dimension_semantics = [#tpu.dimension_semantics<parallel>], iteration_bounds = array<i64: 4>, scalar_prefetch = 0 : i64, scratch_operands = 0 : i64, tpu.core_type = #tpu.core_type<tc>, window_params = [{transform_indices = @transform_0, window_bounds = array<i64: 128, 65>}, {pipeline_mode = #tpu.pipeline_mode<synchronous>, transform_indices = @transform_1, window_bounds = array<i64: 65, 1024>}, {pipeline_mode = #tpu.pipeline_mode<synchronous>, transform_indices = @transform_2, window_bounds = array<i64: 1024, 64>}, {transform_indices = @transform_3, window_bounds = array<i64: 128, 64>}, {transform_indices = @transform_4, window_bounds = array<i64: 128, 1>}, {transform_indices = @transform_5, window_bounds = array<i64: 1, 1, 1024>}, {transform_indices = @transform_6, window_bounds = array<i64: 1, 1, 1>}]} {
    %c0 = arith.constant 0 : index
    %c0_0 = arith.constant 0 : index
    %0 = vector.load %arg1[%c0, %c0_0] : memref<128x65xbf16, #tpu.memory_space<vmem>>, vector<128x65xbf16>
    %c0_1 = arith.constant 0 : index
    %c0_2 = arith.constant 0 : index
    %1 = vector.load %arg2[%c0_1, %c0_2] : memref<65x1024xbf16, #tpu.memory_space<vmem>>, vector<65x1024xbf16>
    %cst = arith.constant dense<0.000000e+00> : vector<128x1024xf32>
    %2 = tpu.matmul %0, %1, %cst {dimension_numbers = #tpu.dot_dimension_numbers<[1], [0], [0], [1], [0, 0, 1, 1], [], []>} : vector<128x65xbf16>, vector<65x1024xbf16>, vector<128x1024xf32> -> vector<128x1024xf32>
    %cst_3 = arith.constant dense<0x7F800000> : vector<128xf32>
    %3 = vector.multi_reduction <minimumf>, %2, %cst_3 [1] : vector<128x1024xf32> to vector<128xf32>
    %4 = vector.shape_cast %3 : vector<128xf32> to vector<128x1xf32>
    %5 = tpu.iota {dimensions = array<i32: 1>} : vector<128x1024xi32>
    %6 = vector.broadcast %4 : vector<128x1xf32> to vector<128x1024xf32>
    %7 = arith.cmpf oeq, %2, %6 : vector<128x1024xf32>
    %c1024_i32 = arith.constant 1024 : i32
    %8 = vector.broadcast %c1024_i32 : i32 to vector<128x1024xi32>
    %9 = arith.select %7, %5, %8 : vector<128x1024xi1>, vector<128x1024xi32>
    %cst_4 = arith.constant dense<2147483647> : vector<128xi32>
    %10 = vector.multi_reduction <minsi>, %9, %cst_4 [1] : vector<128x1024xi32> to vector<128xi32>
    %11 = vector.shape_cast %10 : vector<128xi32> to vector<128x1xi32>
    %c0_5 = arith.constant 0 : index
    %c0_6 = arith.constant 0 : index
    %12 = vector.load %arg5[%c0_5, %c0_6] : memref<128x1xi32, #tpu.memory_space<vmem>>, vector<128x1xi32>
    tpu.vector_store %arg5[%c0_5, %c0_6], %11 {strides = array<i32>} : memref<128x1xi32, #tpu.memory_space<vmem>>, vector<128x1xi32>,
    %13 = vector.broadcast %11 : vector<128x1xi32> to vector<128x1024xi32>
    %14 = arith.cmpi eq, %5, %13 : vector<128x1024xi32>
    %15 = arith.extui %14 : vector<128x1024xi1> to vector<128x1024xi32>
    %16 = arith.sitofp %15 : vector<128x1024xi32> to vector<128x1024xf32>
    %c0_7 = arith.constant 0 : index
    %c0_8 = arith.constant 0 : index
    %17 = vector.load %arg3[%c0_7, %c0_8] : memref<1024x64xf32, #tpu.memory_space<vmem>>, vector<1024x64xf32>
    %cst_9 = arith.constant dense<0.000000e+00> : vector<128x64xf32>
    %18 = tpu.matmul %16, %17, %cst_9 {dimension_numbers = #tpu.dot_dimension_numbers<[1], [0], [0], [1], [0, 0, 1, 1], [], []>} : vector<128x1024xf32>, vector<1024x64xf32>, vector<128x64xf32> -> vector<128x64xf32>
    %c0_10 = arith.constant 0 : index
    %c0_11 = arith.constant 0 : index
    %19 = vector.load %arg4[%c0_10, %c0_11] : memref<128x64xf32, #tpu.memory_space<vmem>>, vector<128x64xf32>
    tpu.vector_store %arg4[%c0_10, %c0_11], %18 {strides = array<i32>} : memref<128x64xf32, #tpu.memory_space<vmem>>, vector<128x64xf32>,
    %c128_i32 = arith.constant 128 : i32
    %20 = arith.muli %arg0, %c128_i32 : i32
    %21 = tpu.iota {dimensions = array<i32: 0>} : vector<128x1xi32>
    %22 = vector.broadcast %20 : i32 to vector<128x1xi32>
    %23 = arith.addi %22, %21 : vector<128x1xi32>
    %c512_i32 = arith.constant 512 : i32
    %24 = vector.broadcast %c512_i32 : i32 to vector<128x1xi32>
    %25 = arith.cmpi slt, %23, %24 : vector<128x1xi32>
    %26 = arith.extui %25 : vector<128x1xi1> to vector<128x1xi32>
    %27 = arith.sitofp %26 : vector<128x1xi32> to vector<128x1xf32>
    %28 = vector.broadcast %27 : vector<128x1xf32> to vector<128x1024xf32>
    %29 = arith.mulf %16, %28 : vector<128x1024xf32>
    %cst_12 = arith.constant dense<0.000000e+00> : vector<1024xf32>
    %30 = vector.multi_reduction <add>, %29, %cst_12 [0] : vector<128x1024xf32> to vector<1024xf32>
    %31 = vector.shape_cast %30 : vector<1024xf32> to vector<1x1024xf32>
    %32 = vector.shape_cast %31 : vector<1x1024xf32> to vector<1x1x1024xf32>
    %c0_13 = arith.constant 0 : index
    %c0_14 = arith.constant 0 : index
    %c0_15 = arith.constant 0 : index
    %33 = vector.load %arg6[%c0_13, %c0_14, %c0_15] : memref<1x1x1024xf32, #tpu.memory_space<vmem>>, vector<1x1x1024xf32>
    tpu.vector_store %arg6[%c0_13, %c0_14, %c0_15], %32 {strides = array<i32>} : memref<1x1x1024xf32, #tpu.memory_space<vmem>>, vector<1x1x1024xf32>,
    %34 = arith.mulf %4, %27 : vector<128x1xf32>
    %35 = vector.shape_cast %34 : vector<128x1xf32> to vector<1x128x1xf32>
    %cst_16 = arith.constant dense<0.000000e+00> : vector<1xf32>
    %36 = vector.multi_reduction <add>, %35, %cst_16 [1, 2] : vector<1x128x1xf32> to vector<1xf32>
    %37 = vector.shape_cast %36 : vector<1xf32> to vector<1x1x1xf32>
    %38 = vector.extract %37[0, 0, 0] : f32 from vector<1x1x1xf32>
    %39 = vector.broadcast %38 : f32 to vector<1x1xf32>
    %40 = vector.shape_cast %39 : vector<1x1xf32> to vector<1x1x1xf32>
    %c0_17 = arith.constant 0 : index
    %c0_18 = arith.constant 0 : index
    %c0_19 = arith.constant 0 : index
    %41 = vector.load %arg7[%c0_17, %c0_18, %c0_19] : memref<1x1x1xf32, #tpu.memory_space<vmem>>, vector<1x1x1xf32>
    tpu.vector_store %arg7[%c0_17, %c0_18, %c0_19], %40 {strides = array<i32>} : memref<1x1x1xf32, #tpu.memory_space<vmem>>, vector<1x1x1xf32>,
    return
  }
  func.func @transform_0(%arg0: i32) -> (i32, i32) {
    %c0_i32 = arith.constant 0 : i32
    %c0_i32_0 = arith.constant 0 : i32
    return %arg0, %c0_i32 : i32, i32
  }
  func.func @transform_1(%arg0: i32) -> (i32, i32) {
    %c0_i32 = arith.constant 0 : i32
    %c0_i32_0 = arith.constant 0 : i32
    %c0_i32_1 = arith.constant 0 : i32
    return %c0_i32, %c0_i32_0 : i32, i32
  }
  func.func @transform_2(%arg0: i32) -> (i32, i32) {
    %c0_i32 = arith.constant 0 : i32
    %c0_i32_0 = arith.constant 0 : i32
    %c0_i32_1 = arith.constant 0 : i32
    return %c0_i32, %c0_i32_0 : i32, i32
  }
  func.func @transform_3(%arg0: i32) -> (i32, i32) {
    %c0_i32 = arith.constant 0 : i32
    %c0_i32_0 = arith.constant 0 : i32
    return %arg0, %c0_i32 : i32, i32
  }
  func.func @transform_4(%arg0: i32) -> (i32, i32) {
    %c0_i32 = arith.constant 0 : i32
    %c0_i32_0 = arith.constant 0 : i32
    return %arg0, %c0_i32 : i32, i32
  }
  func.func @transform_5(%arg0: i32) -> (i32, i32, i32) {
    %c0_i32 = arith.constant 0 : i32
    %c0_i32_0 = arith.constant 0 : i32
    %c0_i32_1 = arith.constant 0 : i32
    return %arg0, %c0_i32, %c0_i32_0 : i32, i32, i32
  }
  func.func @transform_6(%arg0: i32) -> (i32, i32, i32) {
    %c0_i32 = arith.constant 0 : i32
    %c0_i32_0 = arith.constant 0 : i32
    %c0_i32_1 = arith.constant 0 : i32
    return %arg0, %c0_i32, %c0_i32_0 : i32, i32, i32
  }
}

</mosaic_0001>

<llo_original>
// kernel: vector_quantizer_forward.1
$region0: #{vector_quantizer_forward.1}
  #allocation0 [shape = 'u32[]', space=smem, size = 0x4, offset = 0x4, fixed_abs, tag = 'smem constant byte address 0x4 - core index']
  #allocation1 [shape = 'u32[72,128]{1,0:T(1,128)}', space=vmem, size = 0x9000, scoped, tag = 'internal scratch']
  %s0 = inlined_call_operand.vmem [shape: bf16[512,65], index: 0, kind: input, shape index: {}]
  %s1 = inlined_call_operand.vmem [shape: bf16[65,1024], index: 1, kind: input, shape index: {}]
  %s2 = inlined_call_operand.vmem [shape: f32[1024,64], index: 2, kind: input, shape index: {}]
  %s3 = inlined_call_operand.hbm [shape: f32[512,64], index: 3, kind: output, shape index: {0}]
  %s4 = inlined_call_operand.vmem [shape: s32[512,1], index: 4, kind: output, shape index: {1}]
  %s5 = inlined_call_operand.vmem [shape: f32[4,1,1024], index: 5, kind: output, shape index: {2}]
  %s6 = inlined_call_operand.vmem [shape: f32[4,1,1], index: 6, kind: output, shape index: {3}]
  %7 = xla_tuple %s3, %s4, %s5, %s6
  %s8 = sld [smem:[#allocation0]]
  $region69: #{vector_quantizer_forward.1} parent=0
    _
  %s10 = ssub.s32 1, %s8
  %s11 = scalar_select 0, %s10, %s8
  $region1: #{vector_quantizer_forward.1} parent=0
    #allocation2 [shape = 'u8[131072]{0}', space=vmem, size = 0x20000, scoped, tag = 'output window, operand 0']
    #allocation3 [shape = 's32[2]{0}', space=sflag, size = 0x8, scoped, tag = 'scoped memory for vector_quantizer_forward.1']
    %12 = vsyncpa [#allocation3], 0
    %s13 = scalar_lea.sflag [#allocation3], 1
    %14 = vsyncpa %s13, 0
    loop: start=0, step=1, limit=6
    $region2: #{vector_quantizer_forward.1} parent=1 // loop_pre_header
      _
    $region3: #{vector_quantizer_forward.1} parent=1 // loop_header
      %s16 = sphi 0, %s20
      %p17 = scmp.ge.s32.totalorder %s16, 6
      %s26 = sphi 0, %s28
      %s29 = sphi 0, %s26
      %s30 = sphi 0, %s29
      %s46 = sphi 0, %s30
      %s50 = sphi 0, %s50
      %s52 = sphi 0, %s50
      %s53 = sphi 0, %s52
      %s67 = sphi 0, %s53
      %s71 = sphi 0, %s71
      %s73 = sphi 0, %s71
      %s74 = sphi 0, %s73
      %s88 = sphi 0, %s74
      %s94 = sphi 0, %s96
      %s97 = sphi 0, %s94
      %s98 = sphi 0, %s97
      %s114 = sphi 0, %s98
      %s120 = sphi 0, %s122
      %s123 = sphi 0, %s120
      %s124 = sphi 0, %s123
      %s140 = sphi 0, %s124
      %s146 = sphi 0, %s148
      %s149 = sphi 0, %s146
      %s150 = sphi 0, %s149
      %s166 = sphi 0, %s150
      %s172 = sphi 0, %s174
      %s175 = sphi 0, %s172
      %s176 = sphi 0, %s175
      %s192 = sphi 0, %s176
    $region4: #{vector_quantizer_forward.1} parent=1 // loop_header_branch
      %19 = sbr.rel (%p17) target = $region8
    $region5: #{vector_quantizer_forward.1} parent=1 // loop_body
      %s21 = ssub.s32 %s16, 1
      %s22 = ssub.s32 %s16, 2
      %s23 = sadd.s32 %s16, 1
      %s24 = ssub.s32 %s16, %s23
      %p25 = scmp.eq.s32.totalorder %s24, 0
      %s27 = sadd.s32 %s26, 1
      %s28 = scalar_select %p25, %s26, %s27
      %p31 = pneg %p25
      %p32 = scmp.eq.s32.totalorder %s16, 3
      %p33 = por %p31, %p32
      %p34 = scmp.ne.s32.totalorder %s26, %s29
      %p35 = scmp.eq.s32.totalorder %s16, 0
      %p36 = por %p34, %p35
      %p37 = scmp.ne.s32.totalorder %s26, %s29
      %p38 = scmp.eq.s32.totalorder %s21, 3
      %p39 = por %p37, %p38
      %p40 = scmp.ne.s32.totalorder %s29, %s30
      %p41 = scmp.eq.s32.totalorder %s21, 0
      %p42 = por %p40, %p41
      %p43 = scmp.ne.s32.totalorder %s29, %s30
      %p44 = scmp.eq.s32.totalorder %s22, 3
      %p45 = por %p43, %p44
      %p47 = scmp.ne.s32.totalorder %s30, %s46
      %p48 = scmp.eq.s32.totalorder %s22, 0
      %p49 = por %p47, %p48
      %s51 = sadd.s32 %s50, 1
      %p54 = scmp.eq.s32.totalorder %s16, 3
      %p55 = scmp.ne.s32.totalorder %s50, %s52
      %p56 = scmp.eq.s32.totalorder %s16, 0
      %p57 = por %p55, %p56
      %p58 = scmp.ne.s32.totalorder %s50, %s52
      %p59 = scmp.eq.s32.totalorder %s21, 3
      %p60 = por %p58, %p59
      %p61 = scmp.ne.s32.totalorder %s52, %s53
      %p62 = scmp.eq.s32.totalorder %s21, 0
      %p63 = por %p61, %p62
      %p64 = scmp.ne.s32.totalorder %s52, %s53
      %p65 = scmp.eq.s32.totalorder %s22, 3
      %p66 = por %p64, %p65
      %p68 = scmp.ne.s32.totalorder %s53, %s67
      %p69 = scmp.eq.s32.totalorder %s22, 0
      %p70 = por %p68, %p69
      %s72 = sadd.s32 %s71, 1
      %p75 = scmp.eq.s32.totalorder %s16, 3
      %p76 = scmp.ne.s32.totalorder %s71, %s73
      %p77 = scmp.eq.s32.totalorder %s16, 0
      %p78 = por %p76, %p77
      %p79 = scmp.ne.s32.totalorder %s71, %s73
      %p80 = scmp.eq.s32.totalorder %s21, 3
      %p81 = por %p79, %p80
      %p82 = scmp.ne.s32.totalorder %s73, %s74
      %p83 = scmp.eq.s32.totalorder %s21, 0
      %p84 = por %p82, %p83
      %p85 = scmp.ne.s32.totalorder %s73, %s74
      %p86 = scmp.eq.s32.totalorder %s22, 3
      %p87 = por %p85, %p86
      %p89 = scmp.ne.s32.totalorder %s74, %s88
      %p90 = scmp.eq.s32.totalorder %s22, 0
      %p91 = por %p89, %p90
      %s92 = ssub.s32 %s16, %s23
      %p93 = scmp.eq.s32.totalorder %s92, 0
      %s95 = sadd.s32 %s94, 1
      %s96 = scalar_select %p93, %s94, %s95
      %p99 = pneg %p93
      %p100 = scmp.eq.s32.totalorder %s16, 3
      %p101 = por %p99, %p100
      %p102 = scmp.ne.s32.totalorder %s94, %s97
      %p103 = scmp.eq.s32.totalorder %s16, 0
      %p104 = por %p102, %p103
      %p105 = scmp.ne.s32.totalorder %s94, %s97
      %p106 = scmp.eq.s32.totalorder %s21, 3
      %p107 = por %p105, %p106
      %p108 = scmp.ne.s32.totalorder %s97, %s98
      %p109 = scmp.eq.s32.totalorder %s21, 0
      %p110 = por %p108, %p109
      %p111 = scmp.ne.s32.totalorder %s97, %s98
      %p112 = scmp.eq.s32.totalorder %s22, 3
      %p113 = por %p111, %p112
      %p115 = scmp.ne.s32.totalorder %s98, %s114
      %p116 = scmp.eq.s32.totalorder %s22, 0
      %p117 = por %p115, %p116
      %s118 = ssub.s32 %s16, %s23
      %p119 = scmp.eq.s32.totalorder %s118, 0
      %s121 = sadd.s32 %s120, 1
      %s122 = scalar_select %p119, %s120, %s121
      %p125 = pneg %p119
      %p126 = scmp.eq.s32.totalorder %s16, 3
      %p127 = por %p125, %p126
      %p128 = scmp.ne.s32.totalorder %s120, %s123
      %p129 = scmp.eq.s32.totalorder %s16, 0
      %p130 = por %p128, %p129
      %p131 = scmp.ne.s32.totalorder %s120, %s123
      %p132 = scmp.eq.s32.totalorder %s21, 3
      %p133 = por %p131, %p132
      %p134 = scmp.ne.s32.totalorder %s123, %s124
      %p135 = scmp.eq.s32.totalorder %s21, 0
      %p136 = por %p134, %p135
      %p137 = scmp.ne.s32.totalorder %s123, %s124
      %p138 = scmp.eq.s32.totalorder %s22, 3
      %p139 = por %p137, %p138
      %p141 = scmp.ne.s32.totalorder %s124, %s140
      %p142 = scmp.eq.s32.totalorder %s22, 0
      %p143 = por %p141, %p142
      %s144 = ssub.s32 %s16, %s23
      %p145 = scmp.eq.s32.totalorder %s144, 0
      %s147 = sadd.s32 %s146, 1
      %s148 = scalar_select %p145, %s146, %s147
      %p151 = pneg %p145
      %p152 = scmp.eq.s32.totalorder %s16, 3
      %p153 = por %p151, %p152
      %p154 = scmp.ne.s32.totalorder %s146, %s149
      %p155 = scmp.eq.s32.totalorder %s16, 0
      %p156 = por %p154, %p155
      %p157 = scmp.ne.s32.totalorder %s146, %s149
      %p158 = scmp.eq.s32.totalorder %s21, 3
      %p159 = por %p157, %p158
      %p160 = scmp.ne.s32.totalorder %s149, %s150
      %p161 = scmp.eq.s32.totalorder %s21, 0
      %p162 = por %p160, %p161
      %p163 = scmp.ne.s32.totalorder %s149, %s150
      %p164 = scmp.eq.s32.totalorder %s22, 3
      %p165 = por %p163, %p164
      %p167 = scmp.ne.s32.totalorder %s150, %s166
      %p168 = scmp.eq.s32.totalorder %s22, 0
      %p169 = por %p167, %p168
      %s170 = ssub.s32 %s16, %s23
      %p171 = scmp.eq.s32.totalorder %s170, 0
      %s173 = sadd.s32 %s172, 1
      %s174 = scalar_select %p171, %s172, %s173
      %p177 = pneg %p171
      %p178 = scmp.eq.s32.totalorder %s16, 3
      %p179 = por %p177, %p178
      %p180 = scmp.ne.s32.totalorder %s172, %s175
      %p181 = scmp.eq.s32.totalorder %s16, 0
      %p182 = por %p180, %p181
      %p183 = scmp.ne.s32.totalorder %s172, %s175
      %p184 = scmp.eq.s32.totalorder %s21, 3
      %p185 = por %p183, %p184
      %p186 = scmp.ne.s32.totalorder %s175, %s176
      %p187 = scmp.eq.s32.totalorder %s21, 0
      %p188 = por %p186, %p187
      %p189 = scmp.ne.s32.totalorder %s175, %s176
      %p190 = scmp.eq.s32.totalorder %s22, 3
      %p191 = por %p189, %p190
      %p193 = scmp.ne.s32.totalorder %s176, %s192
      %p194 = scmp.eq.s32.totalorder %s22, 0
      %p195 = por %p193, %p194
      %p196 = scmp.le.s32.totalorder 1, %s16
      %p197 = scmp.lt.s32.totalorder %s16, 5
      %p198 = pnand %p196, %p197
      %p199 = pneg %p198
      // Predicated region
      $region9: #{vector_quantizer_forward.1} parent=5 // pred_check
        _
      $region10: #{vector_quantizer_forward.1} parent=5 // pred_check_branch
        %201 = sbr.rel (%p198) target = $region12
      $region11: #{vector_quantizer_forward.1} parent=5 // pred_region
        %s202 = ssub.s32 %s16, 1
        // Predicated region
        $region13: #{vector_quantizer_forward.1} parent=11 // pred_check
          %p203 = pneg %p63
        $region14: #{vector_quantizer_forward.1} parent=11 // pred_check_branch
          %205 = sbr.rel (%p203) target = $region16
        $region15: #{vector_quantizer_forward.1} parent=11 // pred_region
          _
        $region16: #{vector_quantizer_forward.1} parent=11 // pred_fallthru
          _
        // Predicated region
        $region17: #{vector_quantizer_forward.1} parent=11 // pred_check
          %p206 = pneg %p84
        $region18: #{vector_quantizer_forward.1} parent=11 // pred_check_branch
          %208 = sbr.rel (%p206) target = $region20
        $region19: #{vector_quantizer_forward.1} parent=11 // pred_region
          _
        $region20: #{vector_quantizer_forward.1} parent=11 // pred_fallthru
          _
      $region12: #{vector_quantizer_forward.1} parent=5 // pred_fallthru
        _
      %p209 = scmp.lt.s32.totalorder %s16, 4
      // Predicated region
      $region21: #{vector_quantizer_forward.1} parent=5 // pred_check
        %p210 = pneg %p209
      $region22: #{vector_quantizer_forward.1} parent=5 // pred_check_branch
        %212 = sbr.rel (%p210) target = $region24
      $region23: #{vector_quantizer_forward.1} parent=5 // pred_region
        // Predicated region
        $region25: #{vector_quantizer_forward.1} parent=23 // pred_check
          %p213 = pneg %p36
        $region26: #{vector_quantizer_forward.1} parent=23 // pred_check_branch
          %215 = sbr.rel (%p213) target = $region28
        $region27: #{vector_quantizer_forward.1} parent=23 // pred_region
          %s216 = smul.u32 16, %s16
          %p217 = scmp.lt.s32.totalorder %s216, 63
          %s218 = scalar_select %p217, %s216, 63
          %s219 = smul.addr %s218, 4
          %s220 = scalar_lea.vmem %s0, %s219
          %s221 = smul.u32 16, %s16
        $region28: #{vector_quantizer_forward.1} parent=23 // pred_fallthru
          _
      $region24: #{vector_quantizer_forward.1} parent=5 // pred_fallthru
        _
      %p222 = scmp.le.s32.totalorder 1, %s16
      %p223 = scmp.lt.s32.totalorder %s16, 5
      %p224 = pnand %p222, %p223
      %p225 = pneg %p224
      // Predicated region
      $region29: #{vector_quantizer_forward.1} parent=5 // pred_check
        _
      $region30: #{vector_quantizer_forward.1} parent=5 // pred_check_branch
        %227 = sbr.rel (%p224) target = $region32
      $region31: #{vector_quantizer_forward.1} parent=5 // pred_region
        %s228 = ssub.s32 %s16, 1
        %s229 = smul.u32 16, %s21
        %p230 = scmp.lt.s32.totalorder %s229, 63
        %s231 = scalar_select %p230, %s229, 63
        %s232 = smul.addr %s231, 4
        %s233 = scalar_lea.vmem %s0, %s232
        %p234 = pneg %p42
        %p235 = pneg %p39
        %p236 = pneg %p63
        %p237 = pneg %p60
        %p238 = pneg %p84
        %p239 = pneg %p81
        %p240 = pneg %p110
        %p241 = pneg %p107
        %s242 = sand.u32 %s97, 1
        %s243 = scalar_lea.sflag [#allocation3], %s242
        %s244 = sand.u32 %s97, 1
        %s245 = smul.addr %s244, 128
        %s246 = scalar_lea.vmem [#allocation2], %s245
        %p247 = pneg %p136
        %p248 = pneg %p133
        %s249 = smul.u32 16, %s21
        %p250 = scmp.lt.s32.totalorder %s249, 63
        %s251 = scalar_select %p250, %s249, 63
        %s252 = smul.addr %s251, 8
        %s253 = scalar_lea.vmem %s4, %s252
        %p254 = pneg %p162
        %p255 = pneg %p159
        %p256 = scmp.lt.s32.totalorder %s21, 3
        %s257 = scalar_select %p256, %s21, 3
        %s258 = smul.addr %s257, 8
        %s259 = scalar_lea.vmem %s5, %s258
        %p260 = pneg %p188
        %p261 = pneg %p185
        %p262 = scmp.lt.s32.totalorder %s21, 3
        %s263 = scalar_select %p262, %s21, 3
        %s264 = scalar_lea.vmem %s6, %s263
        %s265 = smul.u32 16, %s21
        %p266 = scmp.lt.s32.totalorder %s265, 63
        %s267 = scalar_select %p266, %s265, 63
        %s268 = smul.addr %s267, 4
        %s269 = scalar_lea.vmem %s0, %s268
        %s270 = smul.u32 16, %s21
        %s271 = smul.u32 16, %s21
        %s272 = smul.u32 16, %s21
        %p273 = scmp.lt.s32.totalorder %s272, 63
        %s274 = scalar_select %p273, %s272, 63
        %s275 = smul.addr %s274, 8
        %s276 = scalar_lea.vmem %s4, %s275
        %s277 = smul.u32 16, %s21
        %p278 = scmp.lt.s32.totalorder %s21, 3
        %s279 = scalar_select %p278, %s21, 3
        %s280 = smul.addr %s279, 8
        %s281 = scalar_lea.vmem %s5, %s280
        %p282 = scmp.lt.s32.totalorder %s21, 3
        %s283 = scalar_select %p282, %s21, 3
        %s284 = scalar_lea.vmem %s6, %s283
        %v286 = vld [vmem:[%s269] sm:$0xf]
        %v287 = vld [vmem:[%s269 + $0x4] sm:$0xf]
        %v288 = vld [vmem:[%s269 + $0x8] sm:$0xf]
        %v289 = vld [vmem:[%s269 + $0xc] sm:$0xf]
        %v290 = vld [vmem:[%s269 + $0x10] sm:$0xf]
        %v291 = vld [vmem:[%s269 + $0x14] sm:$0xf]
        %v292 = vld [vmem:[%s269 + $0x18] sm:$0xf]
        %v293 = vld [vmem:[%s269 + $0x1c] sm:$0xf]
        %v294 = vld [vmem:[%s269 + $0x20] sm:$0xf]
        %v295 = vld [vmem:[%s269 + $0x24] sm:$0xf]
        %v296 = vld [vmem:[%s269 + $0x28] sm:$0xf]
        %v297 = vld [vmem:[%s269 + $0x2c] sm:$0xf]
        %v298 = vld [vmem:[%s269 + $0x30] sm:$0xf]
        %v299 = vld [vmem:[%s269 + $0x34] sm:$0xf]
        %v300 = vld [vmem:[%s269 + $0x38] sm:$0xf]
        %v301 = vld [vmem:[%s269 + $0x3c] sm:$0xf]
        %v302 = vld [vmem:[%s1] sm:$0xff]
        %v303 = vld [vmem:[%s1 + $0x8] sm:$0xff]
        %v304 = vld [vmem:[%s1 + $0x10] sm:$0xff]
        %v305 = vld [vmem:[%s1 + $0x18] sm:$0xff]
        %v306 = vld [vmem:[%s1 + $0x20] sm:$0xff]
        %v307 = vld [vmem:[%s1 + $0x28] sm:$0xff]
        %v308 = vld [vmem:[%s1 + $0x30] sm:$0xff]
        %v309 = vld [vmem:[%s1 + $0x38] sm:$0xff]
        %v310 = vld [vmem:[%s1 + $0x40] sm:$0xff]
        %v311 = vld [vmem:[%s1 + $0x48] sm:$0xff]
        %v312 = vld [vmem:[%s1 + $0x50] sm:$0xff]
        %v313 = vld [vmem:[%s1 + $0x58] sm:$0xff]
        %v314 = vld [vmem:[%s1 + $0x60] sm:$0xff]
        %v315 = vld [vmem:[%s1 + $0x68] sm:$0xff]
        %v316 = vld [vmem:[%s1 + $0x70] sm:$0xff]
        %v317 = vld [vmem:[%s1 + $0x78] sm:$0xff]
        %v318 = vld [vmem:[%s1 + $0x80] sm:$0xff]
        %v319 = vld [vmem:[%s1 + $0x88] sm:$0xff]
        %v320 = vld [vmem:[%s1 + $0x90] sm:$0xff]
        %v321 = vld [vmem:[%s1 + $0x98] sm:$0xff]
        %v322 = vld [vmem:[%s1 + $0xa0] sm:$0xff]
        %v323 = vld [vmem:[%s1 + $0xa8] sm:$0xff]
        %v324 = vld [vmem:[%s1 + $0xb0] sm:$0xff]
        %v325 = vld [vmem:[%s1 + $0xb8] sm:$0xff]
        %v326 = vld [vmem:[%s1 + $0xc0] sm:$0xff]
        %v327 = vld [vmem:[%s1 + $0xc8] sm:$0xff]
        %v328 = vld [vmem:[%s1 + $0xd0] sm:$0xff]
        %v329 = vld [vmem:[%s1 + $0xd8] sm:$0xff]
        %v330 = vld [vmem:[%s1 + $0xe0] sm:$0xff]
        %v331 = vld [vmem:[%s1 + $0xe8] sm:$0xff]
        %v332 = vld [vmem:[%s1 + $0xf0] sm:$0xff]
        %v333 = vld [vmem:[%s1 + $0xf8] sm:$0xff]
        %v334 = vld [vmem:[%s1 + $0x100] sm:$0x11]
        %v335 = vld [vmem:[%s1 + $0x108] sm:$0x11]
        %v336 = vld [vmem:[%s1 + $0x110] sm:$0x11]
        %v337 = vld [vmem:[%s1 + $0x118] sm:$0x11]
        %v354 = vunpack.c.l.b16 %v286
        %v355 = vunpack.c.l.b16 %v287
        %v356 = vunpack.c.l.b16 %v288
        %v357 = vunpack.c.l.b16 %v289
        %v358 = vunpack.c.l.b16 %v290
        %v359 = vunpack.c.l.b16 %v291
        %v360 = vunpack.c.l.b16 %v292
        %v361 = vunpack.c.l.b16 %v293
        %v362 = vunpack.c.l.b16 %v294
        %v363 = vunpack.c.l.b16 %v295
        %v364 = vunpack.c.l.b16 %v296
        %v365 = vunpack.c.l.b16 %v297
        %v366 = vunpack.c.l.b16 %v298
        %v367 = vunpack.c.l.b16 %v299
        %v368 = vunpack.c.l.b16 %v300
        %v369 = vunpack.c.l.b16 %v301
        %v370 = vpack.c.b16 %v355, %v354
        %v371 = vpack.c.b16 %v357, %v356
        %v372 = vpack.c.b16 %v359, %v358
        %v373 = vpack.c.b16 %v361, %v360
        %v374 = vpack.c.b16 %v363, %v362
        %v375 = vpack.c.b16 %v365, %v364
        %v376 = vpack.c.b16 %v367, %v366
        %v377 = vpack.c.b16 %v369, %v368
        %v414 = vunpack.c.l.b16 %v302
        %v415 = vunpack.c.h.b16 %v302
        %v416 = vunpack.c.l.b16 %v303
        %v417 = vunpack.c.h.b16 %v303
        %v418 = vunpack.c.l.b16 %v304
        %v419 = vunpack.c.h.b16 %v304
        %v420 = vunpack.c.l.b16 %v305
        %v421 = vunpack.c.h.b16 %v305
        %v422 = vunpack.c.l.b16 %v306
        %v423 = vunpack.c.h.b16 %v306
        %v424 = vunpack.c.l.b16 %v307
        %v425 = vunpack.c.h.b16 %v307
        %v426 = vunpack.c.l.b16 %v308
        %v427 = vunpack.c.h.b16 %v308
        %v428 = vunpack.c.l.b16 %v309
        %v429 = vunpack.c.h.b16 %v309
        %v430 = vunpack.c.l.b16 %v310
        %v431 = vunpack.c.h.b16 %v310
        %v432 = vunpack.c.l.b16 %v311
        %v433 = vunpack.c.h.b16 %v311
        %v434 = vunpack.c.l.b16 %v312
        %v435 = vunpack.c.h.b16 %v312
        %v436 = vunpack.c.l.b16 %v313
        %v437 = vunpack.c.h.b16 %v313
        %v438 = vunpack.c.l.b16 %v314
        %v439 = vunpack.c.h.b16 %v314
        %v440 = vunpack.c.l.b16 %v315
        %v441 = vunpack.c.h.b16 %v315
        %v442 = vunpack.c.l.b16 %v316
        %v443 = vunpack.c.h.b16 %v316
        %v444 = vunpack.c.l.b16 %v317
        %v445 = vunpack.c.h.b16 %v317
        %v446 = vunpack.c.l.b16 %v318
        %v447 = vunpack.c.h.b16 %v318
        %v448 = vunpack.c.l.b16 %v319
        %v449 = vunpack.c.h.b16 %v319
        %v450 = vunpack.c.l.b16 %v320
        %v451 = vunpack.c.h.b16 %v320
        %v452 = vunpack.c.l.b16 %v321
        %v453 = vunpack.c.h.b16 %v321
        %v454 = vunpack.c.l.b16 %v322
        %v455 = vunpack.c.h.b16 %v322
        %v456 = vunpack.c.l.b16 %v323
        %v457 = vunpack.c.h.b16 %v323
        %v458 = vunpack.c.l.b16 %v324
        %v459 = vunpack.c.h.b16 %v324
        %v460 = vunpack.c.l.b16 %v325
        %v461 = vunpack.c.h.b16 %v325
        %v462 = vunpack.c.l.b16 %v326
        %v463 = vunpack.c.h.b16 %v326
        %v464 = vunpack.c.l.b16 %v327
        %v465 = vunpack.c.h.b16 %v327
        %v466 = vunpack.c.l.b16 %v328
        %v467 = vunpack.c.h.b16 %v328
        %v468 = vunpack.c.l.b16 %v329
        %v469 = vunpack.c.h.b16 %v329
        %v470 = vunpack.c.l.b16 %v330
        %v471 = vunpack.c.h.b16 %v330
        %v472 = vunpack.c.l.b16 %v331
        %v473 = vunpack.c.h.b16 %v331
        %v474 = vunpack.c.l.b16 %v332
        %v475 = vunpack.c.h.b16 %v332
        %v476 = vunpack.c.l.b16 %v333
        %v477 = vunpack.c.h.b16 %v333
        %v478 = vunpack.c.l.b16 %v334
        %v479 = vunpack.c.h.b16 %v334
        %v480 = vunpack.c.l.b16 %v335
        %v481 = vunpack.c.h.b16 %v335
        %v482 = vunpack.c.l.b16 %v336
        %v483 = vunpack.c.h.b16 %v336
        %v484 = vunpack.c.l.b16 %v337
        %v485 = vunpack.c.h.b16 %v337
        %v486 = vpack.c.b16 %v422, %v414
        %v487 = vpack.c.b16 %v423, %v415
        %v488 = vpack.c.b16 %v424, %v416
        %v489 = vpack.c.b16 %v425, %v417
        %v490 = vpack.c.b16 %v426, %v418
        %v491 = vpack.c.b16 %v427, %v419
        %v492 = vpack.c.b16 %v428, %v420
        %v493 = vpack.c.b16 %v429, %v421
        %v494 = vpack.c.b16 %v438, %v430
        %v495 = vpack.c.b16 %v439, %v431
        %v496 = vpack.c.b16 %v440, %v432
        %v497 = vpack.c.b16 %v441, %v433
        %v498 = vpack.c.b16 %v442, %v434
        %v499 = vpack.c.b16 %v443, %v435
        %v500 = vpack.c.b16 %v444, %v436
        %v501 = vpack.c.b16 %v445, %v437
        %v502 = vpack.c.b16 %v454, %v446
        %v503 = vpack.c.b16 %v455, %v447
        %v504 = vpack.c.b16 %v456, %v448
        %v505 = vpack.c.b16 %v457, %v449
        %v506 = vpack.c.b16 %v458, %v450
        %v507 = vpack.c.b16 %v459, %v451
        %v508 = vpack.c.b16 %v460, %v452
        %v509 = vpack.c.b16 %v461, %v453
        %v510 = vpack.c.b16 %v470, %v462
        %v511 = vpack.c.b16 %v471, %v463
        %v512 = vpack.c.b16 %v472, %v464
        %v513 = vpack.c.b16 %v473, %v465
        %v514 = vpack.c.b16 %v474, %v466
        %v515 = vpack.c.b16 %v475, %v467
        %v516 = vpack.c.b16 %v476, %v468
        %v517 = vpack.c.b16 %v477, %v469
        %v518 = vpack.c.b16 %v478, %v478
        %v519 = vpack.c.b16 %v479, %v479
        %v520 = vpack.c.b16 %v480, %v480
        %v521 = vpack.c.b16 %v481, %v481
        %v522 = vpack.c.b16 %v482, %v482
        %v523 = vpack.c.b16 %v483, %v483
        %v524 = vpack.c.b16 %v484, %v484
        %v525 = vpack.c.b16 %v485, %v485
        %vm558 = vcmask 531456
        %v560 = vsel %vm558, %v370, 0
        %v563 = vsel %vm558, %v371, 0
        %v566 = vsel %vm558, %v372, 0
        %v569 = vsel %vm558, %v373, 0
        %v572 = vsel %vm558, %v374, 0
        %v575 = vsel %vm558, %v375, 0
        %v578 = vsel %vm558, %v376, 0
        %v581 = vsel %vm558, %v377, 0
        %vm583 = vcmask 1040384
        %v584 = vsel 0, 4294967295, 65535
        %v585 = vsel %vm583, %v584, 0
        %v587 = vand.u32 %v518, %v585
        %v590 = vand.u32 %v519, %v585
        %v593 = vand.u32 %v520, %v585
        %v596 = vand.u32 %v521, %v585
        %v599 = vand.u32 %v522, %v585
        %v602 = vand.u32 %v523, %v585
        %v605 = vand.u32 %v524, %v585
        %v608 = vand.u32 %v525, %v585
        %610 = vmatpush.bf16.msra.mxu0 0
        %611 = vmatpush.bf16.msra.mxu0 0
        %612 = vmatpush.bf16.msra.mxu0 0
        %613 = vmatpush.bf16.msra.mxu0 %v587
        %614 = vmatpush.bf16.msra.mxu0 %v510
        %615 = vmatpush.bf16.msra.mxu0 %v502
        %616 = vmatpush.bf16.msra.mxu0 %v494
        %617 = vmatpush.bf16.msra.mxu0 %v486
        %618 = vmatmul.bf16.gmra.mxu0 %v560
        %v619 = vpop.f32.mrf.mxu0
        %v620 = vadd.f32 0.0, %v619
        %v621 = vpop.f32.mrf.mxu0
        %v622 = vadd.f32 0.0, %v621
        %623 = vmatmul.bf16.gmra.mxu0 %v563
        %v624 = vpop.f32.mrf.mxu0
        %v625 = vadd.f32 0.0, %v624
        %v626 = vpop.f32.mrf.mxu0
        %v627 = vadd.f32 0.0, %v626
        %628 = vmatmul.bf16.gmra.mxu0 %v566
        %v629 = vpop.f32.mrf.mxu0
        %v630 = vadd.f32 0.0, %v629
        %v631 = vpop.f32.mrf.mxu0
        %v632 = vadd.f32 0.0, %v631
        %633 = vmatmul.bf16.gmra.mxu0 %v569
        %v634 = vpop.f32.mrf.mxu0
        %v635 = vadd.f32 0.0, %v634
        %v636 = vpop.f32.mrf.mxu0
        %v637 = vadd.f32 0.0, %v636
        %638 = vmatmul.bf16.gmra.mxu0 %v572
        %v639 = vpop.f32.mrf.mxu0
        %v640 = vadd.f32 0.0, %v639
        %v641 = vpop.f32.mrf.mxu0
        %v642 = vadd.f32 0.0, %v641
        %643 = vmatmul.bf16.gmra.mxu0 %v575
        %v644 = vpop.f32.mrf.mxu0
        %v645 = vadd.f32 0.0, %v644
        %v646 = vpop.f32.mrf.mxu0
        %v647 = vadd.f32 0.0, %v646
        %648 = vmatmul.bf16.gmra.mxu0 %v578
        %v649 = vpop.f32.mrf.mxu0
        %v650 = vadd.f32 0.0, %v649
        %v651 = vpop.f32.mrf.mxu0
        %v652 = vadd.f32 0.0, %v651
        %653 = vmatmul.bf16.gmra.mxu0 %v581
        %v654 = vpop.f32.mrf.mxu0
        %v655 = vadd.f32 0.0, %v654
        %v656 = vpop.f32.mrf.mxu0
        %v657 = vadd.f32 0.0, %v656
        %658 = vdwg.mxu0
        %659 = vmatpush.bf16.msra.mxu0 0
        %660 = vmatpush.bf16.msra.mxu0 0
        %661 = vmatpush.bf16.msra.mxu0 0
        %662 = vmatpush.bf16.msra.mxu0 %v590
        %663 = vmatpush.bf16.msra.mxu0 %v511
        %664 = vmatpush.bf16.msra.mxu0 %v503
        %665 = vmatpush.bf16.msra.mxu0 %v495
        %666 = vmatpush.bf16.msra.mxu0 %v487
        %667 = vmatmul.bf16.gmra.mxu0 %v560
        %v668 = vpop.f32.mrf.mxu0
        %v669 = vadd.f32 0.0, %v668
        %v670 = vpop.f32.mrf.mxu0
        %v671 = vadd.f32 0.0, %v670
        %672 = vmatmul.bf16.gmra.mxu0 %v563
        %v673 = vpop.f32.mrf.mxu0
        %v674 = vadd.f32 0.0, %v673
        %v675 = vpop.f32.mrf.mxu0
        %v676 = vadd.f32 0.0, %v675
        %677 = vmatmul.bf16.gmra.mxu0 %v566
        %v678 = vpop.f32.mrf.mxu0
        %v679 = vadd.f32 0.0, %v678
        %v680 = vpop.f32.mrf.mxu0
        %v681 = vadd.f32 0.0, %v680
        %682 = vmatmul.bf16.gmra.mxu0 %v569
        %v683 = vpop.f32.mrf.mxu0
        %v684 = vadd.f32 0.0, %v683
        %v685 = vpop.f32.mrf.mxu0
        %v686 = vadd.f32 0.0, %v685
        %687 = vmatmul.bf16.gmra.mxu0 %v572
        %v688 = vpop.f32.mrf.mxu0
        %v689 = vadd.f32 0.0, %v688
        %v690 = vpop.f32.mrf.mxu0
        %v691 = vadd.f32 0.0, %v690
        %692 = vmatmul.bf16.gmra.mxu0 %v575
        %v693 = vpop.f32.mrf.mxu0
        %v694 = vadd.f32 0.0, %v693
        %v695 = vpop.f32.mrf.mxu0
        %v696 = vadd.f32 0.0, %v695
        %697 = vmatmul.bf16.gmra.mxu0 %v578
        %v698 = vpop.f32.mrf.mxu0
        %v699 = vadd.f32 0.0, %v698
        %v700 = vpop.f32.mrf.mxu0
        %v701 = vadd.f32 0.0, %v700
        %702 = vmatmul.bf16.gmra.mxu0 %v581
        %v703 = vpop.f32.mrf.mxu0
        %v704 = vadd.f32 0.0, %v703
        %v705 = vpop.f32.mrf.mxu0
        %v706 = vadd.f32 0.0, %v705
        %707 = vdwg.mxu0
        %708 = vmatpush.bf16.msra.mxu0 0
        %709 = vmatpush.bf16.msra.mxu0 0
        %710 = vmatpush.bf16.msra.mxu0 0
        %711 = vmatpush.bf16.msra.mxu0 %v593
        %712 = vmatpush.bf16.msra.mxu0 %v512
        %713 = vmatpush.bf16.msra.mxu0 %v504
        %714 = vmatpush.bf16.msra.mxu0 %v496
        %715 = vmatpush.bf16.msra.mxu0 %v488
        %716 = vmatmul.bf16.gmra.mxu0 %v560
        %v717 = vpop.f32.mrf.mxu0
        %v718 = vadd.f32 0.0, %v717
        %v719 = vpop.f32.mrf.mxu0
        %v720 = vadd.f32 0.0, %v719
        %721 = vmatmul.bf16.gmra.mxu0 %v563
        %v722 = vpop.f32.mrf.mxu0
        %v723 = vadd.f32 0.0, %v722
        %v724 = vpop.f32.mrf.mxu0
        %v725 = vadd.f32 0.0, %v724
        %726 = vmatmul.bf16.gmra.mxu0 %v566
        %v727 = vpop.f32.mrf.mxu0
        %v728 = vadd.f32 0.0, %v727
        %v729 = vpop.f32.mrf.mxu0
        %v730 = vadd.f32 0.0, %v729
        %731 = vmatmul.bf16.gmra.mxu0 %v569
        %v732 = vpop.f32.mrf.mxu0
        %v733 = vadd.f32 0.0, %v732
        %v734 = vpop.f32.mrf.mxu0
        %v735 = vadd.f32 0.0, %v734
        %736 = vmatmul.bf16.gmra.mxu0 %v572
        %v737 = vpop.f32.mrf.mxu0
        %v738 = vadd.f32 0.0, %v737
        %v739 = vpop.f32.mrf.mxu0
        %v740 = vadd.f32 0.0, %v739
        %741 = vmatmul.bf16.gmra.mxu0 %v575
        %v742 = vpop.f32.mrf.mxu0
        %v743 = vadd.f32 0.0, %v742
        %v744 = vpop.f32.mrf.mxu0
        %v745 = vadd.f32 0.0, %v744
        %746 = vmatmul.bf16.gmra.mxu0 %v578
        %v747 = vpop.f32.mrf.mxu0
        %v748 = vadd.f32 0.0, %v747
        %v749 = vpop.f32.mrf.mxu0
        %v750 = vadd.f32 0.0, %v749
        %751 = vmatmul.bf16.gmra.mxu0 %v581
        %v752 = vpop.f32.mrf.mxu0
        %v753 = vadd.f32 0.0, %v752
        %v754 = vpop.f32.mrf.mxu0
        %v755 = vadd.f32 0.0, %v754
        %756 = vdwg.mxu0
        %757 = vmatpush.bf16.msra.mxu0 0
        %758 = vmatpush.bf16.msra.mxu0 0
        %759 = vmatpush.bf16.msra.mxu0 0
        %760 = vmatpush.bf16.msra.mxu0 %v596
        %761 = vmatpush.bf16.msra.mxu0 %v513
        %762 = vmatpush.bf16.msra.mxu0 %v505
        %763 = vmatpush.bf16.msra.mxu0 %v497
        %764 = vmatpush.bf16.msra.mxu0 %v489
        %765 = vmatmul.bf16.gmra.mxu0 %v560
        %v766 = vpop.f32.mrf.mxu0
        %v767 = vadd.f32 0.0, %v766
        %v768 = vpop.f32.mrf.mxu0
        %v769 = vadd.f32 0.0, %v768
        %770 = vmatmul.bf16.gmra.mxu0 %v563
        %v771 = vpop.f32.mrf.mxu0
        %v772 = vadd.f32 0.0, %v771
        %v773 = vpop.f32.mrf.mxu0
        %v774 = vadd.f32 0.0, %v773
        %775 = vmatmul.bf16.gmra.mxu0 %v566
        %v776 = vpop.f32.mrf.mxu0
        %v777 = vadd.f32 0.0, %v776
        %v778 = vpop.f32.mrf.mxu0
        %v779 = vadd.f32 0.0, %v778
        %780 = vmatmul.bf16.gmra.mxu0 %v569
        %v781 = vpop.f32.mrf.mxu0
        %v782 = vadd.f32 0.0, %v781
        %v783 = vpop.f32.mrf.mxu0
        %v784 = vadd.f32 0.0, %v783
        %785 = vmatmul.bf16.gmra.mxu0 %v572
        %v786 = vpop.f32.mrf.mxu0
        %v787 = vadd.f32 0.0, %v786
        %v788 = vpop.f32.mrf.mxu0
        %v789 = vadd.f32 0.0, %v788
        %790 = vmatmul.bf16.gmra.mxu0 %v575
        %v791 = vpop.f32.mrf.mxu0
        %v792 = vadd.f32 0.0, %v791
        %v793 = vpop.f32.mrf.mxu0
        %v794 = vadd.f32 0.0, %v793
        %795 = vmatmul.bf16.gmra.mxu0 %v578
        %v796 = vpop.f32.mrf.mxu0
        %v797 = vadd.f32 0.0, %v796
        %v798 = vpop.f32.mrf.mxu0
        %v799 = vadd.f32 0.0, %v798
        %800 = vmatmul.bf16.gmra.mxu0 %v581
        %v801 = vpop.f32.mrf.mxu0
        %v802 = vadd.f32 0.0, %v801
        %v803 = vpop.f32.mrf.mxu0
        %v804 = vadd.f32 0.0, %v803
        %805 = vdwg.mxu0
        %806 = vmatpush.bf16.msra.mxu0 0
        %807 = vmatpush.bf16.msra.mxu0 0
        %808 = vmatpush.bf16.msra.mxu0 0
        %809 = vmatpush.bf16.msra.mxu0 %v599
        %810 = vmatpush.bf16.msra.mxu0 %v514
        %811 = vmatpush.bf16.msra.mxu0 %v506
        %812 = vmatpush.bf16.msra.mxu0 %v498
        %813 = vmatpush.bf16.msra.mxu0 %v490
        %814 = vmatmul.bf16.gmra.mxu0 %v560
        %v815 = vpop.f32.mrf.mxu0
        %v816 = vadd.f32 0.0, %v815
        %v817 = vpop.f32.mrf.mxu0
        %v818 = vadd.f32 0.0, %v817
        %819 = vmatmul.bf16.gmra.mxu0 %v563
        %v820 = vpop.f32.mrf.mxu0
        %v821 = vadd.f32 0.0, %v820
        %v822 = vpop.f32.mrf.mxu0
        %v823 = vadd.f32 0.0, %v822
        %824 = vmatmul.bf16.gmra.mxu0 %v566
        %v825 = vpop.f32.mrf.mxu0
        %v826 = vadd.f32 0.0, %v825
        %v827 = vpop.f32.mrf.mxu0
        %v828 = vadd.f32 0.0, %v827
        %829 = vmatmul.bf16.gmra.mxu0 %v569
        %v830 = vpop.f32.mrf.mxu0
        %v831 = vadd.f32 0.0, %v830
        %v832 = vpop.f32.mrf.mxu0
        %v833 = vadd.f32 0.0, %v832
        %834 = vmatmul.bf16.gmra.mxu0 %v572
        %v835 = vpop.f32.mrf.mxu0
        %v836 = vadd.f32 0.0, %v835
        %v837 = vpop.f32.mrf.mxu0
        %v838 = vadd.f32 0.0, %v837
        %839 = vmatmul.bf16.gmra.mxu0 %v575
        %v840 = vpop.f32.mrf.mxu0
        %v841 = vadd.f32 0.0, %v840
        %v842 = vpop.f32.mrf.mxu0
        %v843 = vadd.f32 0.0, %v842
        %844 = vmatmul.bf16.gmra.mxu0 %v578
        %v845 = vpop.f32.mrf.mxu0
        %v846 = vadd.f32 0.0, %v845
        %v847 = vpop.f32.mrf.mxu0
        %v848 = vadd.f32 0.0, %v847
        %849 = vmatmul.bf16.gmra.mxu0 %v581
        %v850 = vpop.f32.mrf.mxu0
        %v851 = vadd.f32 0.0, %v850
        %v852 = vpop.f32.mrf.mxu0
        %v853 = vadd.f32 0.0, %v852
        %854 = vdwg.mxu0
        %855 = vmatpush.bf16.msra.mxu0 0
        %856 = vmatpush.bf16.msra.mxu0 0
        %857 = vmatpush.bf16.msra.mxu0 0
        %858 = vmatpush.bf16.msra.mxu0 %v602
        %859 = vmatpush.bf16.msra.mxu0 %v515
        %860 = vmatpush.bf16.msra.mxu0 %v507
        %861 = vmatpush.bf16.msra.mxu0 %v499
        %862 = vmatpush.bf16.msra.mxu0 %v491
        %863 = vmatmul.bf16.gmra.mxu0 %v560
        %v864 = vpop.f32.mrf.mxu0
        %v865 = vadd.f32 0.0, %v864
        %v866 = vpop.f32.mrf.mxu0
        %v867 = vadd.f32 0.0, %v866
        %868 = vmatmul.bf16.gmra.mxu0 %v563
        %v869 = vpop.f32.mrf.mxu0
        %v870 = vadd.f32 0.0, %v869
        %v871 = vpop.f32.mrf.mxu0
        %v872 = vadd.f32 0.0, %v871
        %873 = vmatmul.bf16.gmra.mxu0 %v566
        %v874 = vpop.f32.mrf.mxu0
        %v875 = vadd.f32 0.0, %v874
        %v876 = vpop.f32.mrf.mxu0
        %v877 = vadd.f32 0.0, %v876
        %878 = vmatmul.bf16.gmra.mxu0 %v569
        %v879 = vpop.f32.mrf.mxu0
        %v880 = vadd.f32 0.0, %v879
        %v881 = vpop.f32.mrf.mxu0
        %v882 = vadd.f32 0.0, %v881
        %883 = vmatmul.bf16.gmra.mxu0 %v572
        %v884 = vpop.f32.mrf.mxu0
        %v885 = vadd.f32 0.0, %v884
        %v886 = vpop.f32.mrf.mxu0
        %v887 = vadd.f32 0.0, %v886
        %888 = vmatmul.bf16.gmra.mxu0 %v575
        %v889 = vpop.f32.mrf.mxu0
        %v890 = vadd.f32 0.0, %v889
        %v891 = vpop.f32.mrf.mxu0
        %v892 = vadd.f32 0.0, %v891
        %893 = vmatmul.bf16.gmra.mxu0 %v578
        %v894 = vpop.f32.mrf.mxu0
        %v895 = vadd.f32 0.0, %v894
        %v896 = vpop.f32.mrf.mxu0
        %v897 = vadd.f32 0.0, %v896
        %898 = vmatmul.bf16.gmra.mxu0 %v581
        %v899 = vpop.f32.mrf.mxu0
        %v900 = vadd.f32 0.0, %v899
        %v901 = vpop.f32.mrf.mxu0
        %v902 = vadd.f32 0.0, %v901
        %903 = vdwg.mxu0
        %904 = vmatpush.bf16.msra.mxu0 0
        %905 = vmatpush.bf16.msra.mxu0 0
        %906 = vmatpush.bf16.msra.mxu0 0
        %907 = vmatpush.bf16.msra.mxu0 %v605
        %908 = vmatpush.bf16.msra.mxu0 %v516
        %909 = vmatpush.bf16.msra.mxu0 %v508
        %910 = vmatpush.bf16.msra.mxu0 %v500
        %911 = vmatpush.bf16.msra.mxu0 %v492
        %912 = vmatmul.bf16.gmra.mxu0 %v560
        %v913 = vpop.f32.mrf.mxu0
        %v914 = vadd.f32 0.0, %v913
        %v915 = vpop.f32.mrf.mxu0
        %v916 = vadd.f32 0.0, %v915
        %917 = vmatmul.bf16.gmra.mxu0 %v563
        %v918 = vpop.f32.mrf.mxu0
        %v919 = vadd.f32 0.0, %v918
        %v920 = vpop.f32.mrf.mxu0
        %v921 = vadd.f32 0.0, %v920
        %922 = vmatmul.bf16.gmra.mxu0 %v566
        %v923 = vpop.f32.mrf.mxu0
        %v924 = vadd.f32 0.0, %v923
        %v925 = vpop.f32.mrf.mxu0
        %v926 = vadd.f32 0.0, %v925
        %927 = vmatmul.bf16.gmra.mxu0 %v569
        %v928 = vpop.f32.mrf.mxu0
        %v929 = vadd.f32 0.0, %v928
        %v930 = vpop.f32.mrf.mxu0
        %v931 = vadd.f32 0.0, %v930
        %932 = vmatmul.bf16.gmra.mxu0 %v572
        %v933 = vpop.f32.mrf.mxu0
        %v934 = vadd.f32 0.0, %v933
        %v935 = vpop.f32.mrf.mxu0
        %v936 = vadd.f32 0.0, %v935
        %937 = vmatmul.bf16.gmra.mxu0 %v575
        %v938 = vpop.f32.mrf.mxu0
        %v939 = vadd.f32 0.0, %v938
        %v940 = vpop.f32.mrf.mxu0
        %v941 = vadd.f32 0.0, %v940
        %942 = vmatmul.bf16.gmra.mxu0 %v578
        %v943 = vpop.f32.mrf.mxu0
        %v944 = vadd.f32 0.0, %v943
        %v945 = vpop.f32.mrf.mxu0
        %v946 = vadd.f32 0.0, %v945
        %947 = vmatmul.bf16.gmra.mxu0 %v581
        %v948 = vpop.f32.mrf.mxu0
        %v949 = vadd.f32 0.0, %v948
        %v950 = vpop.f32.mrf.mxu0
        %v951 = vadd.f32 0.0, %v950
        %952 = vdwg.mxu0
        %953 = vmatpush.bf16.msra.mxu0 0
        %954 = vmatpush.bf16.msra.mxu0 0
        %955 = vmatpush.bf16.msra.mxu0 0
        %956 = vmatpush.bf16.msra.mxu0 %v608
        %957 = vmatpush.bf16.msra.mxu0 %v517
        %958 = vmatpush.bf16.msra.mxu0 %v509
        %959 = vmatpush.bf16.msra.mxu0 %v501
        %960 = vmatpush.bf16.msra.mxu0 %v493
        %961 = vmatmul.bf16.gmra.mxu0 %v560
        %v962 = vpop.f32.mrf.mxu0
        %v963 = vadd.f32 0.0, %v962
        %v964 = vpop.f32.mrf.mxu0
        %v965 = vadd.f32 0.0, %v964
        %966 = vmatmul.bf16.gmra.mxu0 %v563
        %v967 = vpop.f32.mrf.mxu0
        %v968 = vadd.f32 0.0, %v967
        %v969 = vpop.f32.mrf.mxu0
        %v970 = vadd.f32 0.0, %v969
        %971 = vmatmul.bf16.gmra.mxu0 %v566
        %v972 = vpop.f32.mrf.mxu0
        %v973 = vadd.f32 0.0, %v972
        %v974 = vpop.f32.mrf.mxu0
        %v975 = vadd.f32 0.0, %v974
        %976 = vmatmul.bf16.gmra.mxu0 %v569
        %v977 = vpop.f32.mrf.mxu0
        %v978 = vadd.f32 0.0, %v977
        %v979 = vpop.f32.mrf.mxu0
        %v980 = vadd.f32 0.0, %v979
        %981 = vmatmul.bf16.gmra.mxu0 %v572
        %v982 = vpop.f32.mrf.mxu0
        %v983 = vadd.f32 0.0, %v982
        %v984 = vpop.f32.mrf.mxu0
        %v985 = vadd.f32 0.0, %v984
        %986 = vmatmul.bf16.gmra.mxu0 %v575
        %v987 = vpop.f32.mrf.mxu0
        %v988 = vadd.f32 0.0, %v987
        %v989 = vpop.f32.mrf.mxu0
        %v990 = vadd.f32 0.0, %v989
        %991 = vmatmul.bf16.gmra.mxu0 %v578
        %v992 = vpop.f32.mrf.mxu0
        %v993 = vadd.f32 0.0, %v992
        %v994 = vpop.f32.mrf.mxu0
        %v995 = vadd.f32 0.0, %v994
        %996 = vmatmul.bf16.gmra.mxu0 %v581
        %v997 = vpop.f32.mrf.mxu0
        %v998 = vadd.f32 0.0, %v997
        %v999 = vpop.f32.mrf.mxu0
        %v1000 = vadd.f32 0.0, %v999
        %1001 = vdwg.mxu0
        %v1002 = vmin.f32 %v620, %v669
        %v1003 = vmin.f32 %v1002, %v718
        %v1004 = vmin.f32 %v1003, %v767
        %v1005 = vmin.f32 %v1004, %v816
        %v1006 = vmin.f32 %v1005, %v865
        %v1007 = vmin.f32 %v1006, %v914
        %v1008 = vmin.f32 %v1007, %v963
        %1009 = vmin.xlane.f32.xlu0 %v1008
        %v1010 = vpop.xlane.xlu0 %1009
        %v1011 = vmin.f32 %v622, %v671
        %v1012 = vmin.f32 %v1011, %v720
        %v1013 = vmin.f32 %v1012, %v769
        %v1014 = vmin.f32 %v1013, %v818
        %v1015 = vmin.f32 %v1014, %v867
        %v1016 = vmin.f32 %v1015, %v916
        %v1017 = vmin.f32 %v1016, %v965
        %1018 = vmin.xlane.f32.xlu0 %v1017
        %v1019 = vpop.xlane.xlu0 %1018
        %v1020 = vmin.f32 %v625, %v674
        %v1021 = vmin.f32 %v1020, %v723
        %v1022 = vmin.f32 %v1021, %v772
        %v1023 = vmin.f32 %v1022, %v821
        %v1024 = vmin.f32 %v1023, %v870
        %v1025 = vmin.f32 %v1024, %v919
        %v1026 = vmin.f32 %v1025, %v968
        %1027 = vmin.xlane.f32.xlu0 %v1026
        %v1028 = vpop.xlane.xlu0 %1027
        %v1029 = vmin.f32 %v627, %v676
        %v1030 = vmin.f32 %v1029, %v725
        %v1031 = vmin.f32 %v1030, %v774
        %v1032 = vmin.f32 %v1031, %v823
        %v1033 = vmin.f32 %v1032, %v872
        %v1034 = vmin.f32 %v1033, %v921
        %v1035 = vmin.f32 %v1034, %v970
        %1036 = vmin.xlane.f32.xlu0 %v1035
        %v1037 = vpop.xlane.xlu0 %1036
        %v1038 = vmin.f32 %v630, %v679
        %v1039 = vmin.f32 %v1038, %v728
        %v1040 = vmin.f32 %v1039, %v777
        %v1041 = vmin.f32 %v1040, %v826
        %v1042 = vmin.f32 %v1041, %v875
        %v1043 = vmin.f32 %v1042, %v924
        %v1044 = vmin.f32 %v1043, %v973
        %1045 = vmin.xlane.f32.xlu0 %v1044
        %v1046 = vpop.xlane.xlu0 %1045
        %v1047 = vmin.f32 %v632, %v681
        %v1048 = vmin.f32 %v1047, %v730
        %v1049 = vmin.f32 %v1048, %v779
        %v1050 = vmin.f32 %v1049, %v828
        %v1051 = vmin.f32 %v1050, %v877
        %v1052 = vmin.f32 %v1051, %v926
        %v1053 = vmin.f32 %v1052, %v975
        %1054 = vmin.xlane.f32.xlu0 %v1053
        %v1055 = vpop.xlane.xlu0 %1054
        %v1056 = vmin.f32 %v635, %v684
        %v1057 = vmin.f32 %v1056, %v733
        %v1058 = vmin.f32 %v1057, %v782
        %v1059 = vmin.f32 %v1058, %v831
        %v1060 = vmin.f32 %v1059, %v880
        %v1061 = vmin.f32 %v1060, %v929
        %v1062 = vmin.f32 %v1061, %v978
        %1063 = vmin.xlane.f32.xlu0 %v1062
        %v1064 = vpop.xlane.xlu0 %1063
        %v1065 = vmin.f32 %v637, %v686
        %v1066 = vmin.f32 %v1065, %v735
        %v1067 = vmin.f32 %v1066, %v784
        %v1068 = vmin.f32 %v1067, %v833
        %v1069 = vmin.f32 %v1068, %v882
        %v1070 = vmin.f32 %v1069, %v931
        %v1071 = vmin.f32 %v1070, %v980
        %1072 = vmin.xlane.f32.xlu0 %v1071
        %v1073 = vpop.xlane.xlu0 %1072
        %v1074 = vmin.f32 %v640, %v689
        %v1075 = vmin.f32 %v1074, %v738
        %v1076 = vmin.f32 %v1075, %v787
        %v1077 = vmin.f32 %v1076, %v836
        %v1078 = vmin.f32 %v1077, %v885
        %v1079 = vmin.f32 %v1078, %v934
        %v1080 = vmin.f32 %v1079, %v983
        %1081 = vmin.xlane.f32.xlu0 %v1080
        %v1082 = vpop.xlane.xlu0 %1081
        %v1083 = vmin.f32 %v642, %v691
        %v1084 = vmin.f32 %v1083, %v740
        %v1085 = vmin.f32 %v1084, %v789
        %v1086 = vmin.f32 %v1085, %v838
        %v1087 = vmin.f32 %v1086, %v887
        %v1088 = vmin.f32 %v1087, %v936
        %v1089 = vmin.f32 %v1088, %v985
        %1090 = vmin.xlane.f32.xlu0 %v1089
        %v1091 = vpop.xlane.xlu0 %1090
        %v1092 = vmin.f32 %v645, %v694
        %v1093 = vmin.f32 %v1092, %v743
        %v1094 = vmin.f32 %v1093, %v792
        %v1095 = vmin.f32 %v1094, %v841
        %v1096 = vmin.f32 %v1095, %v890
        %v1097 = vmin.f32 %v1096, %v939
        %v1098 = vmin.f32 %v1097, %v988
        %1099 = vmin.xlane.f32.xlu0 %v1098
        %v1100 = vpop.xlane.xlu0 %1099
        %v1101 = vmin.f32 %v647, %v696
        %v1102 = vmin.f32 %v1101, %v745
        %v1103 = vmin.f32 %v1102, %v794
        %v1104 = vmin.f32 %v1103, %v843
        %v1105 = vmin.f32 %v1104, %v892
        %v1106 = vmin.f32 %v1105, %v941
        %v1107 = vmin.f32 %v1106, %v990
        %1108 = vmin.xlane.f32.xlu0 %v1107
        %v1109 = vpop.xlane.xlu0 %1108
        %v1110 = vmin.f32 %v650, %v699
        %v1111 = vmin.f32 %v1110, %v748
        %v1112 = vmin.f32 %v1111, %v797
        %v1113 = vmin.f32 %v1112, %v846
        %v1114 = vmin.f32 %v1113, %v895
        %v1115 = vmin.f32 %v1114, %v944
        %v1116 = vmin.f32 %v1115, %v993
        %1117 = vmin.xlane.f32.xlu0 %v1116
        %v1118 = vpop.xlane.xlu0 %1117
        %v1119 = vmin.f32 %v652, %v701
        %v1120 = vmin.f32 %v1119, %v750
        %v1121 = vmin.f32 %v1120, %v799
        %v1122 = vmin.f32 %v1121, %v848
        %v1123 = vmin.f32 %v1122, %v897
        %v1124 = vmin.f32 %v1123, %v946
        %v1125 = vmin.f32 %v1124, %v995
        %1126 = vmin.xlane.f32.xlu0 %v1125
        %v1127 = vpop.xlane.xlu0 %1126
        %v1128 = vmin.f32 %v655, %v704
        %v1129 = vmin.f32 %v1128, %v753
        %v1130 = vmin.f32 %v1129, %v802
        %v1131 = vmin.f32 %v1130, %v851
        %v1132 = vmin.f32 %v1131, %v900
        %v1133 = vmin.f32 %v1132, %v949
        %v1134 = vmin.f32 %v1133, %v998
        %1135 = vmin.xlane.f32.xlu0 %v1134
        %v1136 = vpop.xlane.xlu0 %1135
        %v1137 = vmin.f32 %v657, %v706
        %v1138 = vmin.f32 %v1137, %v755
        %v1139 = vmin.f32 %v1138, %v804
        %v1140 = vmin.f32 %v1139, %v853
        %v1141 = vmin.f32 %v1140, %v902
        %v1142 = vmin.f32 %v1141, %v951
        %v1143 = vmin.f32 %v1142, %v1000
        %1144 = vmin.xlane.f32.xlu0 %v1143
        %v1145 = vpop.xlane.xlu0 %1144
        %v1146 = vlaneseq
        %v1147 = vand.u32 %v1146, 127
        %v1148 = vadd.s32 %v1147, 128
        %v1149 = vadd.s32 %v1147, 256
        %v1150 = vadd.s32 %v1147, 384
        %v1151 = vadd.s32 %v1147, 512
        %v1152 = vadd.s32 %v1147, 640
        %v1153 = vadd.s32 %v1147, 768
        %v1154 = vadd.s32 %v1147, 896
        %vm1155 = vcmp.eq.f32.partialorder %v620, %v1010
        %vm1156 = vcmp.eq.f32.partialorder %v669, %v1010
        %vm1157 = vcmp.eq.f32.partialorder %v718, %v1010
        %vm1158 = vcmp.eq.f32.partialorder %v767, %v1010
        %vm1159 = vcmp.eq.f32.partialorder %v816, %v1010
        %vm1160 = vcmp.eq.f32.partialorder %v865, %v1010
        %vm1161 = vcmp.eq.f32.partialorder %v914, %v1010
        %vm1162 = vcmp.eq.f32.partialorder %v963, %v1010
        %vm1163 = vcmp.eq.f32.partialorder %v622, %v1019
        %vm1164 = vcmp.eq.f32.partialorder %v671, %v1019
        %vm1165 = vcmp.eq.f32.partialorder %v720, %v1019
        %vm1166 = vcmp.eq.f32.partialorder %v769, %v1019
        %vm1167 = vcmp.eq.f32.partialorder %v818, %v1019
        %vm1168 = vcmp.eq.f32.partialorder %v867, %v1019
        %vm1169 = vcmp.eq.f32.partialorder %v916, %v1019
        %vm1170 = vcmp.eq.f32.partialorder %v965, %v1019
        %vm1171 = vcmp.eq.f32.partialorder %v625, %v1028
        %vm1172 = vcmp.eq.f32.partialorder %v674, %v1028
        %vm1173 = vcmp.eq.f32.partialorder %v723, %v1028
        %vm1174 = vcmp.eq.f32.partialorder %v772, %v1028
        %vm1175 = vcmp.eq.f32.partialorder %v821, %v1028
        %vm1176 = vcmp.eq.f32.partialorder %v870, %v1028
        %vm1177 = vcmp.eq.f32.partialorder %v919, %v1028
        %vm1178 = vcmp.eq.f32.partialorder %v968, %v1028
        %vm1179 = vcmp.eq.f32.partialorder %v627, %v1037
        %vm1180 = vcmp.eq.f32.partialorder %v676, %v1037
        %vm1181 = vcmp.eq.f32.partialorder %v725, %v1037
        %vm1182 = vcmp.eq.f32.partialorder %v774, %v1037
        %vm1183 = vcmp.eq.f32.partialorder %v823, %v1037
        %vm1184 = vcmp.eq.f32.partialorder %v872, %v1037
        %vm1185 = vcmp.eq.f32.partialorder %v921, %v1037
        %vm1186 = vcmp.eq.f32.partialorder %v970, %v1037
        %vm1187 = vcmp.eq.f32.partialorder %v630, %v1046
        %vm1188 = vcmp.eq.f32.partialorder %v679, %v1046
        %vm1189 = vcmp.eq.f32.partialorder %v728, %v1046
        %vm1190 = vcmp.eq.f32.partialorder %v777, %v1046
        %vm1191 = vcmp.eq.f32.partialorder %v826, %v1046
        %vm1192 = vcmp.eq.f32.partialorder %v875, %v1046
        %vm1193 = vcmp.eq.f32.partialorder %v924, %v1046
        %vm1194 = vcmp.eq.f32.partialorder %v973, %v1046
        %vm1195 = vcmp.eq.f32.partialorder %v632, %v1055
        %vm1196 = vcmp.eq.f32.partialorder %v681, %v1055
        %vm1197 = vcmp.eq.f32.partialorder %v730, %v1055
        %vm1198 = vcmp.eq.f32.partialorder %v779, %v1055
        %vm1199 = vcmp.eq.f32.partialorder %v828, %v1055
        %vm1200 = vcmp.eq.f32.partialorder %v877, %v1055
        %vm1201 = vcmp.eq.f32.partialorder %v926, %v1055
        %vm1202 = vcmp.eq.f32.partialorder %v975, %v1055
        %vm1203 = vcmp.eq.f32.partialorder %v635, %v1064
        %vm1204 = vcmp.eq.f32.partialorder %v684, %v1064
        %vm1205 = vcmp.eq.f32.partialorder %v733, %v1064
        %vm1206 = vcmp.eq.f32.partialorder %v782, %v1064
        %vm1207 = vcmp.eq.f32.partialorder %v831, %v1064
        %vm1208 = vcmp.eq.f32.partialorder %v880, %v1064
        %vm1209 = vcmp.eq.f32.partialorder %v929, %v1064
        %vm1210 = vcmp.eq.f32.partialorder %v978, %v1064
        %vm1211 = vcmp.eq.f32.partialorder %v637, %v1073
        %vm1212 = vcmp.eq.f32.partialorder %v686, %v1073
        %vm1213 = vcmp.eq.f32.partialorder %v735, %v1073
        %vm1214 = vcmp.eq.f32.partialorder %v784, %v1073
        %vm1215 = vcmp.eq.f32.partialorder %v833, %v1073
        %vm1216 = vcmp.eq.f32.partialorder %v882, %v1073
        %vm1217 = vcmp.eq.f32.partialorder %v931, %v1073
        %vm1218 = vcmp.eq.f32.partialorder %v980, %v1073
        %vm1219 = vcmp.eq.f32.partialorder %v640, %v1082
        %vm1220 = vcmp.eq.f32.partialorder %v689, %v1082
        %vm1221 = vcmp.eq.f32.partialorder %v738, %v1082
        %vm1222 = vcmp.eq.f32.partialorder %v787, %v1082
        %vm1223 = vcmp.eq.f32.partialorder %v836, %v1082
        %vm1224 = vcmp.eq.f32.partialorder %v885, %v1082
        %vm1225 = vcmp.eq.f32.partialorder %v934, %v1082
        %vm1226 = vcmp.eq.f32.partialorder %v983, %v1082
        %vm1227 = vcmp.eq.f32.partialorder %v642, %v1091
        %vm1228 = vcmp.eq.f32.partialorder %v691, %v1091
        %vm1229 = vcmp.eq.f32.partialorder %v740, %v1091
        %vm1230 = vcmp.eq.f32.partialorder %v789, %v1091
        %vm1231 = vcmp.eq.f32.partialorder %v838, %v1091
        %vm1232 = vcmp.eq.f32.partialorder %v887, %v1091
        %vm1233 = vcmp.eq.f32.partialorder %v936, %v1091
        %vm1234 = vcmp.eq.f32.partialorder %v985, %v1091
        %vm1235 = vcmp.eq.f32.partialorder %v645, %v1100
        %vm1236 = vcmp.eq.f32.partialorder %v694, %v1100
        %vm1237 = vcmp.eq.f32.partialorder %v743, %v1100
        %vm1238 = vcmp.eq.f32.partialorder %v792, %v1100
        %vm1239 = vcmp.eq.f32.partialorder %v841, %v1100
        %vm1240 = vcmp.eq.f32.partialorder %v890, %v1100
        %vm1241 = vcmp.eq.f32.partialorder %v939, %v1100
        %vm1242 = vcmp.eq.f32.partialorder %v988, %v1100
        %vm1243 = vcmp.eq.f32.partialorder %v647, %v1109
        %vm1244 = vcmp.eq.f32.partialorder %v696, %v1109
        %vm1245 = vcmp.eq.f32.partialorder %v745, %v1109
        %vm1246 = vcmp.eq.f32.partialorder %v794, %v1109
        %vm1247 = vcmp.eq.f32.partialorder %v843, %v1109
        %vm1248 = vcmp.eq.f32.partialorder %v892, %v1109
        %vm1249 = vcmp.eq.f32.partialorder %v941, %v1109
        %vm1250 = vcmp.eq.f32.partialorder %v990, %v1109
        %vm1251 = vcmp.eq.f32.partialorder %v650, %v1118
        %vm1252 = vcmp.eq.f32.partialorder %v699, %v1118
        %vm1253 = vcmp.eq.f32.partialorder %v748, %v1118
        %vm1254 = vcmp.eq.f32.partialorder %v797, %v1118
        %vm1255 = vcmp.eq.f32.partialorder %v846, %v1118
        %vm1256 = vcmp.eq.f32.partialorder %v895, %v1118
        %vm1257 = vcmp.eq.f32.partialorder %v944, %v1118
        %vm1258 = vcmp.eq.f32.partialorder %v993, %v1118
        %vm1259 = vcmp.eq.f32.partialorder %v652, %v1127
        %vm1260 = vcmp.eq.f32.partialorder %v701, %v1127
        %vm1261 = vcmp.eq.f32.partialorder %v750, %v1127
        %vm1262 = vcmp.eq.f32.partialorder %v799, %v1127
        %vm1263 = vcmp.eq.f32.partialorder %v848, %v1127
        %vm1264 = vcmp.eq.f32.partialorder %v897, %v1127
        %vm1265 = vcmp.eq.f32.partialorder %v946, %v1127
        %vm1266 = vcmp.eq.f32.partialorder %v995, %v1127
        %vm1267 = vcmp.eq.f32.partialorder %v655, %v1136
        %vm1268 = vcmp.eq.f32.partialorder %v704, %v1136
        %vm1269 = vcmp.eq.f32.partialorder %v753, %v1136
        %vm1270 = vcmp.eq.f32.partialorder %v802, %v1136
        %vm1271 = vcmp.eq.f32.partialorder %v851, %v1136
        %vm1272 = vcmp.eq.f32.partialorder %v900, %v1136
        %vm1273 = vcmp.eq.f32.partialorder %v949, %v1136
        %vm1274 = vcmp.eq.f32.partialorder %v998, %v1136
        %vm1275 = vcmp.eq.f32.partialorder %v657, %v1145
        %vm1276 = vcmp.eq.f32.partialorder %v706, %v1145
        %vm1277 = vcmp.eq.f32.partialorder %v755, %v1145
        %vm1278 = vcmp.eq.f32.partialorder %v804, %v1145
        %vm1279 = vcmp.eq.f32.partialorder %v853, %v1145
        %vm1280 = vcmp.eq.f32.partialorder %v902, %v1145
        %vm1281 = vcmp.eq.f32.partialorder %v951, %v1145
        %vm1282 = vcmp.eq.f32.partialorder %v1000, %v1145
        %v1283 = vsel %vm1155, %v1147, 1024
        %v1284 = vsel %vm1156, %v1148, 1024
        %v1285 = vsel %vm1157, %v1149, 1024
        %v1286 = vsel %vm1158, %v1150, 1024
        %v1287 = vsel %vm1159, %v1151, 1024
        %v1288 = vsel %vm1160, %v1152, 1024
        %v1289 = vsel %vm1161, %v1153, 1024
        %v1290 = vsel %vm1162, %v1154, 1024
        %v1291 = vsel %vm1163, %v1147, 1024
        %v1292 = vsel %vm1164, %v1148, 1024
        %v1293 = vsel %vm1165, %v1149, 1024
        %v1294 = vsel %vm1166, %v1150, 1024
        %v1295 = vsel %vm1167, %v1151, 1024
        %v1296 = vsel %vm1168, %v1152, 1024
        %v1297 = vsel %vm1169, %v1153, 1024
        %v1298 = vsel %vm1170, %v1154, 1024
        %v1299 = vsel %vm1171, %v1147, 1024
        %v1300 = vsel %vm1172, %v1148, 1024
        %v1301 = vsel %vm1173, %v1149, 1024
        %v1302 = vsel %vm1174, %v1150, 1024
        %v1303 = vsel %vm1175, %v1151, 1024
        %v1304 = vsel %vm1176, %v1152, 1024
        %v1305 = vsel %vm1177, %v1153, 1024
        %v1306 = vsel %vm1178, %v1154, 1024
        %v1307 = vsel %vm1179, %v1147, 1024
        %v1308 = vsel %vm1180, %v1148, 1024
        %v1309 = vsel %vm1181, %v1149, 1024
        %v1310 = vsel %vm1182, %v1150, 1024
        %v1311 = vsel %vm1183, %v1151, 1024
        %v1312 = vsel %vm1184, %v1152, 1024
        %v1313 = vsel %vm1185, %v1153, 1024
        %v1314 = vsel %vm1186, %v1154, 1024
        %v1315 = vsel %vm1187, %v1147, 1024
        %v1316 = vsel %vm1188, %v1148, 1024
        %v1317 = vsel %vm1189, %v1149, 1024
        %v1318 = vsel %vm1190, %v1150, 1024
        %v1319 = vsel %vm1191, %v1151, 1024
        %v1320 = vsel %vm1192, %v1152, 1024
        %v1321 = vsel %vm1193, %v1153, 1024
        %v1322 = vsel %vm1194, %v1154, 1024
        %v1323 = vsel %vm1195, %v1147, 1024
        %v1324 = vsel %vm1196, %v1148, 1024
        %v1325 = vsel %vm1197, %v1149, 1024
        %v1326 = vsel %vm1198, %v1150, 1024
        %v1327 = vsel %vm1199, %v1151, 1024
        %v1328 = vsel %vm1200, %v1152, 1024
        %v1329 = vsel %vm1201, %v1153, 1024
        %v1330 = vsel %vm1202, %v1154, 1024
        %v1331 = vsel %vm1203, %v1147, 1024
        %v1332 = vsel %vm1204, %v1148, 1024
        %v1333 = vsel %vm1205, %v1149, 1024
        %v1334 = vsel %vm1206, %v1150, 1024
        %v1335 = vsel %vm1207, %v1151, 1024
        %v1336 = vsel %vm1208, %v1152, 1024
        %v1337 = vsel %vm1209, %v1153, 1024
        %v1338 = vsel %vm1210, %v1154, 1024
        %v1339 = vsel %vm1211, %v1147, 1024
        %v1340 = vsel %vm1212, %v1148, 1024
        %v1341 = vsel %vm1213, %v1149, 1024
        %v1342 = vsel %vm1214, %v1150, 1024
        %v1343 = vsel %vm1215, %v1151, 1024
        %v1344 = vsel %vm1216, %v1152, 1024
        %v1345 = vsel %vm1217, %v1153, 1024
        %v1346 = vsel %vm1218, %v1154, 1024
        %v1347 = vsel %vm1219, %v1147, 1024
        %v1348 = vsel %vm1220, %v1148, 1024
        %v1349 = vsel %vm1221, %v1149, 1024
        %v1350 = vsel %vm1222, %v1150, 1024
        %v1351 = vsel %vm1223, %v1151, 1024
        %v1352 = vsel %vm1224, %v1152, 1024
        %v1353 = vsel %vm1225, %v1153, 1024
        %v1354 = vsel %vm1226, %v1154, 1024
        %v1355 = vsel %vm1227, %v1147, 1024
        %v1356 = vsel %vm1228, %v1148, 1024
        %v1357 = vsel %vm1229, %v1149, 1024
        %v1358 = vsel %vm1230, %v1150, 1024
        %v1359 = vsel %vm1231, %v1151, 1024
        %v1360 = vsel %vm1232, %v1152, 1024
        %v1361 = vsel %vm1233, %v1153, 1024
        %v1362 = vsel %vm1234, %v1154, 1024
        %v1363 = vsel %vm1235, %v1147, 1024
        %v1364 = vsel %vm1236, %v1148, 1024
        %v1365 = vsel %vm1237, %v1149, 1024
        %v1366 = vsel %vm1238, %v1150, 1024
        %v1367 = vsel %vm1239, %v1151, 1024
        %v1368 = vsel %vm1240, %v1152, 1024
        %v1369 = vsel %vm1241, %v1153, 1024
        %v1370 = vsel %vm1242, %v1154, 1024
        %v1371 = vsel %vm1243, %v1147, 1024
        %v1372 = vsel %vm1244, %v1148, 1024
        %v1373 = vsel %vm1245, %v1149, 1024
        %v1374 = vsel %vm1246, %v1150, 1024
        %v1375 = vsel %vm1247, %v1151, 1024
        %v1376 = vsel %vm1248, %v1152, 1024
        %v1377 = vsel %vm1249, %v1153, 1024
        %v1378 = vsel %vm1250, %v1154, 1024
        %v1379 = vsel %vm1251, %v1147, 1024
        %v1380 = vsel %vm1252, %v1148, 1024
        %v1381 = vsel %vm1253, %v1149, 1024
        %v1382 = vsel %vm1254, %v1150, 1024
        %v1383 = vsel %vm1255, %v1151, 1024
        %v1384 = vsel %vm1256, %v1152, 1024
        %v1385 = vsel %vm1257, %v1153, 1024
        %v1386 = vsel %vm1258, %v1154, 1024
        %v1387 = vsel %vm1259, %v1147, 1024
        %v1388 = vsel %vm1260, %v1148, 1024
        %v1389 = vsel %vm1261, %v1149, 1024
        %v1390 = vsel %vm1262, %v1150, 1024
        %v1391 = vsel %vm1263, %v1151, 1024
        %v1392 = vsel %vm1264, %v1152, 1024
        %v1393 = vsel %vm1265, %v1153, 1024
        %v1394 = vsel %vm1266, %v1154, 1024
        %v1395 = vsel %vm1267, %v1147, 1024
        %v1396 = vsel %vm1268, %v1148, 1024
        %v1397 = vsel %vm1269, %v1149, 1024
        %v1398 = vsel %vm1270, %v1150, 1024
        %v1399 = vsel %vm1271, %v1151, 1024
        %v1400 = vsel %vm1272, %v1152, 1024
        %v1401 = vsel %vm1273, %v1153, 1024
        %v1402 = vsel %vm1274, %v1154, 1024
        %v1403 = vsel %vm1275, %v1147, 1024
        %v1404 = vsel %vm1276, %v1148, 1024
        %v1405 = vsel %vm1277, %v1149, 1024
        %v1406 = vsel %vm1278, %v1150, 1024
        %v1407 = vsel %vm1279, %v1151, 1024
        %v1408 = vsel %vm1280, %v1152, 1024
        %v1409 = vsel %vm1281, %v1153, 1024
        %v1410 = vsel %vm1282, %v1154, 1024
        %vm1411 = vcmp.lt.s32.totalorder %v1283, %v1284
        %v1412 = vsel %vm1411, %v1283, %v1284
        %vm1413 = vcmp.lt.s32.totalorder %v1412, %v1285
        %v1414 = vsel %vm1413, %v1412, %v1285
        %vm1415 = vcmp.lt.s32.totalorder %v1414, %v1286
        %v1416 = vsel %vm1415, %v1414, %v1286
        %vm1417 = vcmp.lt.s32.totalorder %v1416, %v1287
        %v1418 = vsel %vm1417, %v1416, %v1287
        %vm1419 = vcmp.lt.s32.totalorder %v1418, %v1288
        %v1420 = vsel %vm1419, %v1418, %v1288
        %vm1421 = vcmp.lt.s32.totalorder %v1420, %v1289
        %v1422 = vsel %vm1421, %v1420, %v1289
        %vm1423 = vcmp.lt.s32.totalorder %v1422, %v1290
        %v1424 = vsel %vm1423, %v1422, %v1290
        %v1425 = vand.u32 %v1424, 65535
        %v1426 = vshra.s32 %v1424, 16
        %v1427 = vcvt.s32.f32 %v1425
        %v1428 = vcvt.s32.f32 %v1426
        %1429 = vmin.xlane.f32.xlu0 %v1428
        %v1430 = vpop.xlane.xlu0 %1429
        %vm1431 = vcmp.eq.f32.partialorder %v1428, %v1430
        %v1432 = vsel %vm1431, %v1427, inf
        %1433 = vmin.xlane.f32.xlu0 %v1432
        %v1434 = vpop.xlane.xlu0 %1433
        %v1435 = vcvt.f32.s32 %v1434
        %v1436 = vcvt.f32.s32 %v1430
        %v1437 = vshll.u32 %v1436, 16
        %v1438 = vadd.s32 %v1437, %v1435
        %vm1439 = vcmp.lt.s32.totalorder %v1291, %v1292
        %v1440 = vsel %vm1439, %v1291, %v1292
        %vm1441 = vcmp.lt.s32.totalorder %v1440, %v1293
        %v1442 = vsel %vm1441, %v1440, %v1293
        %vm1443 = vcmp.lt.s32.totalorder %v1442, %v1294
        %v1444 = vsel %vm1443, %v1442, %v1294
        %vm1445 = vcmp.lt.s32.totalorder %v1444, %v1295
        %v1446 = vsel %vm1445, %v1444, %v1295
        %vm1447 = vcmp.lt.s32.totalorder %v1446, %v1296
        %v1448 = vsel %vm1447, %v1446, %v1296
        %vm1449 = vcmp.lt.s32.totalorder %v1448, %v1297
        %v1450 = vsel %vm1449, %v1448, %v1297
        %vm1451 = vcmp.lt.s32.totalorder %v1450, %v1298
        %v1452 = vsel %vm1451, %v1450, %v1298
        %v1453 = vand.u32 %v1452, 65535
        %v1454 = vshra.s32 %v1452, 16
        %v1455 = vcvt.s32.f32 %v1453
        %v1456 = vcvt.s32.f32 %v1454
        %1457 = vmin.xlane.f32.xlu0 %v1456
        %v1458 = vpop.xlane.xlu0 %1457
        %vm1459 = vcmp.eq.f32.partialorder %v1456, %v1458
        %v1460 = vsel %vm1459, %v1455, inf
        %1461 = vmin.xlane.f32.xlu0 %v1460
        %v1462 = vpop.xlane.xlu0 %1461
        %v1463 = vcvt.f32.s32 %v1462
        %v1464 = vcvt.f32.s32 %v1458
        %v1465 = vshll.u32 %v1464, 16
        %v1466 = vadd.s32 %v1465, %v1463
        %vm1467 = vcmp.lt.s32.totalorder %v1299, %v1300
        %v1468 = vsel %vm1467, %v1299, %v1300
        %vm1469 = vcmp.lt.s32.totalorder %v1468, %v1301
        %v1470 = vsel %vm1469, %v1468, %v1301
        %vm1471 = vcmp.lt.s32.totalorder %v1470, %v1302
        %v1472 = vsel %vm1471, %v1470, %v1302
        %vm1473 = vcmp.lt.s32.totalorder %v1472, %v1303
        %v1474 = vsel %vm1473, %v1472, %v1303
        %vm1475 = vcmp.lt.s32.totalorder %v1474, %v1304
        %v1476 = vsel %vm1475, %v1474, %v1304
        %vm1477 = vcmp.lt.s32.totalorder %v1476, %v1305
        %v1478 = vsel %vm1477, %v1476, %v1305
        %vm1479 = vcmp.lt.s32.totalorder %v1478, %v1306
        %v1480 = vsel %vm1479, %v1478, %v1306
        %v1481 = vand.u32 %v1480, 65535
        %v1482 = vshra.s32 %v1480, 16
        %v1483 = vcvt.s32.f32 %v1481
        %v1484 = vcvt.s32.f32 %v1482
        %1485 = vmin.xlane.f32.xlu0 %v1484
        %v1486 = vpop.xlane.xlu0 %1485
        %vm1487 = vcmp.eq.f32.partialorder %v1484, %v1486
        %v1488 = vsel %vm1487, %v1483, inf
        %1489 = vmin.xlane.f32.xlu0 %v1488
        %v1490 = vpop.xlane.xlu0 %1489
        %v1491 = vcvt.f32.s32 %v1490
        %v1492 = vcvt.f32.s32 %v1486
        %v1493 = vshll.u32 %v1492, 16
        %v1494 = vadd.s32 %v1493, %v1491
        %vm1495 = vcmp.lt.s32.totalorder %v1307, %v1308
        %v1496 = vsel %vm1495, %v1307, %v1308
        %vm1497 = vcmp.lt.s32.totalorder %v1496, %v1309
        %v1498 = vsel %vm1497, %v1496, %v1309
        %vm1499 = vcmp.lt.s32.totalorder %v1498, %v1310
        %v1500 = vsel %vm1499, %v1498, %v1310
        %vm1501 = vcmp.lt.s32.totalorder %v1500, %v1311
        %v1502 = vsel %vm1501, %v1500, %v1311
        %vm1503 = vcmp.lt.s32.totalorder %v1502, %v1312
        %v1504 = vsel %vm1503, %v1502, %v1312
        %vm1505 = vcmp.lt.s32.totalorder %v1504, %v1313
        %v1506 = vsel %vm1505, %v1504, %v1313
        %vm1507 = vcmp.lt.s32.totalorder %v1506, %v1314
        %v1508 = vsel %vm1507, %v1506, %v1314
        %v1509 = vand.u32 %v1508, 65535
        %v1510 = vshra.s32 %v1508, 16
        %v1511 = vcvt.s32.f32 %v1509
        %v1512 = vcvt.s32.f32 %v1510
        %1513 = vmin.xlane.f32.xlu0 %v1512
        %v1514 = vpop.xlane.xlu0 %1513
        %vm1515 = vcmp.eq.f32.partialorder %v1512, %v1514
        %v1516 = vsel %vm1515, %v1511, inf
        %1517 = vmin.xlane.f32.xlu0 %v1516
        %v1518 = vpop.xlane.xlu0 %1517
        %v1519 = vcvt.f32.s32 %v1518
        %v1520 = vcvt.f32.s32 %v1514
        %v1521 = vshll.u32 %v1520, 16
        %v1522 = vadd.s32 %v1521, %v1519
        %vm1523 = vcmp.lt.s32.totalorder %v1315, %v1316
        %v1524 = vsel %vm1523, %v1315, %v1316
        %vm1525 = vcmp.lt.s32.totalorder %v1524, %v1317
        %v1526 = vsel %vm1525, %v1524, %v1317
        %vm1527 = vcmp.lt.s32.totalorder %v1526, %v1318
        %v1528 = vsel %vm1527, %v1526, %v1318
        %vm1529 = vcmp.lt.s32.totalorder %v1528, %v1319
        %v1530 = vsel %vm1529, %v1528, %v1319
        %vm1531 = vcmp.lt.s32.totalorder %v1530, %v1320
        %v1532 = vsel %vm1531, %v1530, %v1320
        %vm1533 = vcmp.lt.s32.totalorder %v1532, %v1321
        %v1534 = vsel %vm1533, %v1532, %v1321
        %vm1535 = vcmp.lt.s32.totalorder %v1534, %v1322
        %v1536 = vsel %vm1535, %v1534, %v1322
        %v1537 = vand.u32 %v1536, 65535
        %v1538 = vshra.s32 %v1536, 16
        %v1539 = vcvt.s32.f32 %v1537
        %v1540 = vcvt.s32.f32 %v1538
        %1541 = vmin.xlane.f32.xlu0 %v1540
        %v1542 = vpop.xlane.xlu0 %1541
        %vm1543 = vcmp.eq.f32.partialorder %v1540, %v1542
        %v1544 = vsel %vm1543, %v1539, inf
        %1545 = vmin.xlane.f32.xlu0 %v1544
        %v1546 = vpop.xlane.xlu0 %1545
        %v1547 = vcvt.f32.s32 %v1546
        %v1548 = vcvt.f32.s32 %v1542
        %v1549 = vshll.u32 %v1548, 16
        %v1550 = vadd.s32 %v1549, %v1547
        %vm1551 = vcmp.lt.s32.totalorder %v1323, %v1324
        %v1552 = vsel %vm1551, %v1323, %v1324
        %vm1553 = vcmp.lt.s32.totalorder %v1552, %v1325
        %v1554 = vsel %vm1553, %v1552, %v1325
        %vm1555 = vcmp.lt.s32.totalorder %v1554, %v1326
        %v1556 = vsel %vm1555, %v1554, %v1326
        %vm1557 = vcmp.lt.s32.totalorder %v1556, %v1327
        %v1558 = vsel %vm1557, %v1556, %v1327
        %vm1559 = vcmp.lt.s32.totalorder %v1558, %v1328
        %v1560 = vsel %vm1559, %v1558, %v1328
        %vm1561 = vcmp.lt.s32.totalorder %v1560, %v1329
        %v1562 = vsel %vm1561, %v1560, %v1329
        %vm1563 = vcmp.lt.s32.totalorder %v1562, %v1330
        %v1564 = vsel %vm1563, %v1562, %v1330
        %v1565 = vand.u32 %v1564, 65535
        %v1566 = vshra.s32 %v1564, 16
        %v1567 = vcvt.s32.f32 %v1565
        %v1568 = vcvt.s32.f32 %v1566
        %1569 = vmin.xlane.f32.xlu0 %v1568
        %v1570 = vpop.xlane.xlu0 %1569
        %vm1571 = vcmp.eq.f32.partialorder %v1568, %v1570
        %v1572 = vsel %vm1571, %v1567, inf
        %1573 = vmin.xlane.f32.xlu0 %v1572
        %v1574 = vpop.xlane.xlu0 %1573
        %v1575 = vcvt.f32.s32 %v1574
        %v1576 = vcvt.f32.s32 %v1570
        %v1577 = vshll.u32 %v1576, 16
        %v1578 = vadd.s32 %v1577, %v1575
        %vm1579 = vcmp.lt.s32.totalorder %v1331, %v1332
        %v1580 = vsel %vm1579, %v1331, %v1332
        %vm1581 = vcmp.lt.s32.totalorder %v1580, %v1333
        %v1582 = vsel %vm1581, %v1580, %v1333
        %vm1583 = vcmp.lt.s32.totalorder %v1582, %v1334
        %v1584 = vsel %vm1583, %v1582, %v1334
        %vm1585 = vcmp.lt.s32.totalorder %v1584, %v1335
        %v1586 = vsel %vm1585, %v1584, %v1335
        %vm1587 = vcmp.lt.s32.totalorder %v1586, %v1336
        %v1588 = vsel %vm1587, %v1586, %v1336
        %vm1589 = vcmp.lt.s32.totalorder %v1588, %v1337
        %v1590 = vsel %vm1589, %v1588, %v1337
        %vm1591 = vcmp.lt.s32.totalorder %v1590, %v1338
        %v1592 = vsel %vm1591, %v1590, %v1338
        %v1593 = vand.u32 %v1592, 65535
        %v1594 = vshra.s32 %v1592, 16
        %v1595 = vcvt.s32.f32 %v1593
        %v1596 = vcvt.s32.f32 %v1594
        %1597 = vmin.xlane.f32.xlu0 %v1596
        %v1598 = vpop.xlane.xlu0 %1597
        %vm1599 = vcmp.eq.f32.partialorder %v1596, %v1598
        %v1600 = vsel %vm1599, %v1595, inf
        %1601 = vmin.xlane.f32.xlu0 %v1600
        %v1602 = vpop.xlane.xlu0 %1601
        %v1603 = vcvt.f32.s32 %v1602
        %v1604 = vcvt.f32.s32 %v1598
        %v1605 = vshll.u32 %v1604, 16
        %v1606 = vadd.s32 %v1605, %v1603
        %vm1607 = vcmp.lt.s32.totalorder %v1339, %v1340
        %v1608 = vsel %vm1607, %v1339, %v1340
        %vm1609 = vcmp.lt.s32.totalorder %v1608, %v1341
        %v1610 = vsel %vm1609, %v1608, %v1341
        %vm1611 = vcmp.lt.s32.totalorder %v1610, %v1342
        %v1612 = vsel %vm1611, %v1610, %v1342
        %vm1613 = vcmp.lt.s32.totalorder %v1612, %v1343
        %v1614 = vsel %vm1613, %v1612, %v1343
        %vm1615 = vcmp.lt.s32.totalorder %v1614, %v1344
        %v1616 = vsel %vm1615, %v1614, %v1344
        %vm1617 = vcmp.lt.s32.totalorder %v1616, %v1345
        %v1618 = vsel %vm1617, %v1616, %v1345
        %vm1619 = vcmp.lt.s32.totalorder %v1618, %v1346
        %v1620 = vsel %vm1619, %v1618, %v1346
        %v1621 = vand.u32 %v1620, 65535
        %v1622 = vshra.s32 %v1620, 16
        %v1623 = vcvt.s32.f32 %v1621
        %v1624 = vcvt.s32.f32 %v1622
        %1625 = vmin.xlane.f32.xlu0 %v1624
        %v1626 = vpop.xlane.xlu0 %1625
        %vm1627 = vcmp.eq.f32.partialorder %v1624, %v1626
        %v1628 = vsel %vm1627, %v1623, inf
        %1629 = vmin.xlane.f32.xlu0 %v1628
        %v1630 = vpop.xlane.xlu0 %1629
        %v1631 = vcvt.f32.s32 %v1630
        %v1632 = vcvt.f32.s32 %v1626
        %v1633 = vshll.u32 %v1632, 16
        %v1634 = vadd.s32 %v1633, %v1631
        %vm1635 = vcmp.lt.s32.totalorder %v1347, %v1348
        %v1636 = vsel %vm1635, %v1347, %v1348
        %vm1637 = vcmp.lt.s32.totalorder %v1636, %v1349
        %v1638 = vsel %vm1637, %v1636, %v1349
        %vm1639 = vcmp.lt.s32.totalorder %v1638, %v1350
        %v1640 = vsel %vm1639, %v1638, %v1350
        %vm1641 = vcmp.lt.s32.totalorder %v1640, %v1351
        %v1642 = vsel %vm1641, %v1640, %v1351
        %vm1643 = vcmp.lt.s32.totalorder %v1642, %v1352
        %v1644 = vsel %vm1643, %v1642, %v1352
        %vm1645 = vcmp.lt.s32.totalorder %v1644, %v1353
        %v1646 = vsel %vm1645, %v1644, %v1353
        %vm1647 = vcmp.lt.s32.totalorder %v1646, %v1354
        %v1648 = vsel %vm1647, %v1646, %v1354
        %v1649 = vand.u32 %v1648, 65535
        %v1650 = vshra.s32 %v1648, 16
        %v1651 = vcvt.s32.f32 %v1649
        %v1652 = vcvt.s32.f32 %v1650
        %1653 = vmin.xlane.f32.xlu0 %v1652
        %v1654 = vpop.xlane.xlu0 %1653
        %vm1655 = vcmp.eq.f32.partialorder %v1652, %v1654
        %v1656 = vsel %vm1655, %v1651, inf
        %1657 = vmin.xlane.f32.xlu0 %v1656
        %v1658 = vpop.xlane.xlu0 %1657
        %v1659 = vcvt.f32.s32 %v1658
        %v1660 = vcvt.f32.s32 %v1654
        %v1661 = vshll.u32 %v1660, 16
        %v1662 = vadd.s32 %v1661, %v1659
        %vm1663 = vcmp.lt.s32.totalorder %v1355, %v1356
        %v1664 = vsel %vm1663, %v1355, %v1356
        %vm1665 = vcmp.lt.s32.totalorder %v1664, %v1357
        %v1666 = vsel %vm1665, %v1664, %v1357
        %vm1667 = vcmp.lt.s32.totalorder %v1666, %v1358
        %v1668 = vsel %vm1667, %v1666, %v1358
        %vm1669 = vcmp.lt.s32.totalorder %v1668, %v1359
        %v1670 = vsel %vm1669, %v1668, %v1359
        %vm1671 = vcmp.lt.s32.totalorder %v1670, %v1360
        %v1672 = vsel %vm1671, %v1670, %v1360
        %vm1673 = vcmp.lt.s32.totalorder %v1672, %v1361
        %v1674 = vsel %vm1673, %v1672, %v1361
        %vm1675 = vcmp.lt.s32.totalorder %v1674, %v1362
        %v1676 = vsel %vm1675, %v1674, %v1362
        %v1677 = vand.u32 %v1676, 65535
        %v1678 = vshra.s32 %v1676, 16
        %v1679 = vcvt.s32.f32 %v1677
        %v1680 = vcvt.s32.f32 %v1678
        %1681 = vmin.xlane.f32.xlu0 %v1680
        %v1682 = vpop.xlane.xlu0 %1681
        %vm1683 = vcmp.eq.f32.partialorder %v1680, %v1682
        %v1684 = vsel %vm1683, %v1679, inf
        %1685 = vmin.xlane.f32.xlu0 %v1684
        %v1686 = vpop.xlane.xlu0 %1685
        %v1687 = vcvt.f32.s32 %v1686
        %v1688 = vcvt.f32.s32 %v1682
        %v1689 = vshll.u32 %v1688, 16
        %v1690 = vadd.s32 %v1689, %v1687
        %vm1691 = vcmp.lt.s32.totalorder %v1363, %v1364
        %v1692 = vsel %vm1691, %v1363, %v1364
        %vm1693 = vcmp.lt.s32.totalorder %v1692, %v1365
        %v1694 = vsel %vm1693, %v1692, %v1365
        %vm1695 = vcmp.lt.s32.totalorder %v1694, %v1366
        %v1696 = vsel %vm1695, %v1694, %v1366
        %vm1697 = vcmp.lt.s32.totalorder %v1696, %v1367
        %v1698 = vsel %vm1697, %v1696, %v1367
        %vm1699 = vcmp.lt.s32.totalorder %v1698, %v1368
        %v1700 = vsel %vm1699, %v1698, %v1368
        %vm1701 = vcmp.lt.s32.totalorder %v1700, %v1369
        %v1702 = vsel %vm1701, %v1700, %v1369
        %vm1703 = vcmp.lt.s32.totalorder %v1702, %v1370
        %v1704 = vsel %vm1703, %v1702, %v1370
        %v1705 = vand.u32 %v1704, 65535
        %v1706 = vshra.s32 %v1704, 16
        %v1707 = vcvt.s32.f32 %v1705
        %v1708 = vcvt.s32.f32 %v1706
        %1709 = vmin.xlane.f32.xlu0 %v1708
        %v1710 = vpop.xlane.xlu0 %1709
        %vm1711 = vcmp.eq.f32.partialorder %v1708, %v1710
        %v1712 = vsel %vm1711, %v1707, inf
        %1713 = vmin.xlane.f32.xlu0 %v1712
        %v1714 = vpop.xlane.xlu0 %1713
        %v1715 = vcvt.f32.s32 %v1714
        %v1716 = vcvt.f32.s32 %v1710
        %v1717 = vshll.u32 %v1716, 16
        %v1718 = vadd.s32 %v1717, %v1715
        %vm1719 = vcmp.lt.s32.totalorder %v1371, %v1372
        %v1720 = vsel %vm1719, %v1371, %v1372
        %vm1721 = vcmp.lt.s32.totalorder %v1720, %v1373
        %v1722 = vsel %vm1721, %v1720, %v1373
        %vm1723 = vcmp.lt.s32.totalorder %v1722, %v1374
        %v1724 = vsel %vm1723, %v1722, %v1374
        %vm1725 = vcmp.lt.s32.totalorder %v1724, %v1375
        %v1726 = vsel %vm1725, %v1724, %v1375
        %vm1727 = vcmp.lt.s32.totalorder %v1726, %v1376
        %v1728 = vsel %vm1727, %v1726, %v1376
        %vm1729 = vcmp.lt.s32.totalorder %v1728, %v1377
        %v1730 = vsel %vm1729, %v1728, %v1377
        %vm1731 = vcmp.lt.s32.totalorder %v1730, %v1378
        %v1732 = vsel %vm1731, %v1730, %v1378
        %v1733 = vand.u32 %v1732, 65535
        %v1734 = vshra.s32 %v1732, 16
        %v1735 = vcvt.s32.f32 %v1733
        %v1736 = vcvt.s32.f32 %v1734
        %1737 = vmin.xlane.f32.xlu0 %v1736
        %v1738 = vpop.xlane.xlu0 %1737
        %vm1739 = vcmp.eq.f32.partialorder %v1736, %v1738
        %v1740 = vsel %vm1739, %v1735, inf
        %1741 = vmin.xlane.f32.xlu0 %v1740
        %v1742 = vpop.xlane.xlu0 %1741
        %v1743 = vcvt.f32.s32 %v1742
        %v1744 = vcvt.f32.s32 %v1738
        %v1745 = vshll.u32 %v1744, 16
        %v1746 = vadd.s32 %v1745, %v1743
        %vm1747 = vcmp.lt.s32.totalorder %v1379, %v1380
        %v1748 = vsel %vm1747, %v1379, %v1380
        %vm1749 = vcmp.lt.s32.totalorder %v1748, %v1381
        %v1750 = vsel %vm1749, %v1748, %v1381
        %vm1751 = vcmp.lt.s32.totalorder %v1750, %v1382
        %v1752 = vsel %vm1751, %v1750, %v1382
        %vm1753 = vcmp.lt.s32.totalorder %v1752, %v1383
        %v1754 = vsel %vm1753, %v1752, %v1383
        %vm1755 = vcmp.lt.s32.totalorder %v1754, %v1384
        %v1756 = vsel %vm1755, %v1754, %v1384
        %vm1757 = vcmp.lt.s32.totalorder %v1756, %v1385
        %v1758 = vsel %vm1757, %v1756, %v1385
        %vm1759 = vcmp.lt.s32.totalorder %v1758, %v1386
        %v1760 = vsel %vm1759, %v1758, %v1386
        %v1761 = vand.u32 %v1760, 65535
        %v1762 = vshra.s32 %v1760, 16
        %v1763 = vcvt.s32.f32 %v1761
        %v1764 = vcvt.s32.f32 %v1762
        %1765 = vmin.xlane.f32.xlu0 %v1764
        %v1766 = vpop.xlane.xlu0 %1765
        %vm1767 = vcmp.eq.f32.partialorder %v1764, %v1766
        %v1768 = vsel %vm1767, %v1763, inf
        %1769 = vmin.xlane.f32.xlu0 %v1768
        %v1770 = vpop.xlane.xlu0 %1769
        %v1771 = vcvt.f32.s32 %v1770
        %v1772 = vcvt.f32.s32 %v1766
        %v1773 = vshll.u32 %v1772, 16
        %v1774 = vadd.s32 %v1773, %v1771
        %vm1775 = vcmp.lt.s32.totalorder %v1387, %v1388
        %v1776 = vsel %vm1775, %v1387, %v1388
        %vm1777 = vcmp.lt.s32.totalorder %v1776, %v1389
        %v1778 = vsel %vm1777, %v1776, %v1389
        %vm1779 = vcmp.lt.s32.totalorder %v1778, %v1390
        %v1780 = vsel %vm1779, %v1778, %v1390
        %vm1781 = vcmp.lt.s32.totalorder %v1780, %v1391
        %v1782 = vsel %vm1781, %v1780, %v1391
        %vm1783 = vcmp.lt.s32.totalorder %v1782, %v1392
        %v1784 = vsel %vm1783, %v1782, %v1392
        %vm1785 = vcmp.lt.s32.totalorder %v1784, %v1393
        %v1786 = vsel %vm1785, %v1784, %v1393
        %vm1787 = vcmp.lt.s32.totalorder %v1786, %v1394
        %v1788 = vsel %vm1787, %v1786, %v1394
        %v1789 = vand.u32 %v1788, 65535
        %v1790 = vshra.s32 %v1788, 16
        %v1791 = vcvt.s32.f32 %v1789
        %v1792 = vcvt.s32.f32 %v1790
        %1793 = vmin.xlane.f32.xlu0 %v1792
        %v1794 = vpop.xlane.xlu0 %1793
        %vm1795 = vcmp.eq.f32.partialorder %v1792, %v1794
        %v1796 = vsel %vm1795, %v1791, inf
        %1797 = vmin.xlane.f32.xlu0 %v1796
        %v1798 = vpop.xlane.xlu0 %1797
        %v1799 = vcvt.f32.s32 %v1798
        %v1800 = vcvt.f32.s32 %v1794
        %v1801 = vshll.u32 %v1800, 16
        %v1802 = vadd.s32 %v1801, %v1799
        %vm1803 = vcmp.lt.s32.totalorder %v1395, %v1396
        %v1804 = vsel %vm1803, %v1395, %v1396
        %vm1805 = vcmp.lt.s32.totalorder %v1804, %v1397
        %v1806 = vsel %vm1805, %v1804, %v1397
        %vm1807 = vcmp.lt.s32.totalorder %v1806, %v1398
        %v1808 = vsel %vm1807, %v1806, %v1398
        %vm1809 = vcmp.lt.s32.totalorder %v1808, %v1399
        %v1810 = vsel %vm1809, %v1808, %v1399
        %vm1811 = vcmp.lt.s32.totalorder %v1810, %v1400
        %v1812 = vsel %vm1811, %v1810, %v1400
        %vm1813 = vcmp.lt.s32.totalorder %v1812, %v1401
        %v1814 = vsel %vm1813, %v1812, %v1401
        %vm1815 = vcmp.lt.s32.totalorder %v1814, %v1402
        %v1816 = vsel %vm1815, %v1814, %v1402
        %v1817 = vand.u32 %v1816, 65535
        %v1818 = vshra.s32 %v1816, 16
        %v1819 = vcvt.s32.f32 %v1817
        %v1820 = vcvt.s32.f32 %v1818
        %1821 = vmin.xlane.f32.xlu0 %v1820
        %v1822 = vpop.xlane.xlu0 %1821
        %vm1823 = vcmp.eq.f32.partialorder %v1820, %v1822
        %v1824 = vsel %vm1823, %v1819, inf
        %1825 = vmin.xlane.f32.xlu0 %v1824
        %v1826 = vpop.xlane.xlu0 %1825
        %v1827 = vcvt.f32.s32 %v1826
        %v1828 = vcvt.f32.s32 %v1822
        %v1829 = vshll.u32 %v1828, 16
        %v1830 = vadd.s32 %v1829, %v1827
        %vm1831 = vcmp.lt.s32.totalorder %v1403, %v1404
        %v1832 = vsel %vm1831, %v1403, %v1404
        %vm1833 = vcmp.lt.s32.totalorder %v1832, %v1405
        %v1834 = vsel %vm1833, %v1832, %v1405
        %vm1835 = vcmp.lt.s32.totalorder %v1834, %v1406
        %v1836 = vsel %vm1835, %v1834, %v1406
        %vm1837 = vcmp.lt.s32.totalorder %v1836, %v1407
        %v1838 = vsel %vm1837, %v1836, %v1407
        %vm1839 = vcmp.lt.s32.totalorder %v1838, %v1408
        %v1840 = vsel %vm1839, %v1838, %v1408
        %vm1841 = vcmp.lt.s32.totalorder %v1840, %v1409
        %v1842 = vsel %vm1841, %v1840, %v1409
        %vm1843 = vcmp.lt.s32.totalorder %v1842, %v1410
        %v1844 = vsel %vm1843, %v1842, %v1410
        %v1845 = vand.u32 %v1844, 65535
        %v1846 = vshra.s32 %v1844, 16
        %v1847 = vcvt.s32.f32 %v1845
        %v1848 = vcvt.s32.f32 %v1846
        %1849 = vmin.xlane.f32.xlu0 %v1848
        %v1850 = vpop.xlane.xlu0 %1849
        %vm1851 = vcmp.eq.f32.partialorder %v1848, %v1850
        %v1852 = vsel %vm1851, %v1847, inf
        %1853 = vmin.xlane.f32.xlu0 %v1852
        %v1854 = vpop.xlane.xlu0 %1853
        %v1855 = vcvt.f32.s32 %v1854
        %v1856 = vcvt.f32.s32 %v1850
        %v1857 = vshll.u32 %v1856, 16
        %v1858 = vadd.s32 %v1857, %v1855
        %vm1859 = vcmask 7168
        %1860 = vst.msk [vmem:[%s276] sm:$0xff] %vm1859, %v1438
        %1861 = vst.msk [vmem:[%s276 + $0x8] sm:$0xff] %vm1859, %v1466
        %1862 = vst.msk [vmem:[%s276 + $0x10] sm:$0xff] %vm1859, %v1494
        %1863 = vst.msk [vmem:[%s276 + $0x18] sm:$0xff] %vm1859, %v1522
        %1864 = vst.msk [vmem:[%s276 + $0x20] sm:$0xff] %vm1859, %v1550
        %1865 = vst.msk [vmem:[%s276 + $0x28] sm:$0xff] %vm1859, %v1578
        %1866 = vst.msk [vmem:[%s276 + $0x30] sm:$0xff] %vm1859, %v1606
        %1867 = vst.msk [vmem:[%s276 + $0x38] sm:$0xff] %vm1859, %v1634
        %1868 = vst.msk [vmem:[%s276 + $0x40] sm:$0xff] %vm1859, %v1662
        %1869 = vst.msk [vmem:[%s276 + $0x48] sm:$0xff] %vm1859, %v1690
        %1870 = vst.msk [vmem:[%s276 + $0x50] sm:$0xff] %vm1859, %v1718
        %1871 = vst.msk [vmem:[%s276 + $0x58] sm:$0xff] %vm1859, %v1746
        %1872 = vst.msk [vmem:[%s276 + $0x60] sm:$0xff] %vm1859, %v1774
        %1873 = vst.msk [vmem:[%s276 + $0x68] sm:$0xff] %vm1859, %v1802
        %1874 = vst.msk [vmem:[%s276 + $0x70] sm:$0xff] %vm1859, %v1830
        %1875 = vst.msk [vmem:[%s276 + $0x78] sm:$0xff] %vm1859, %v1858
        %vm1876 = vcmp.eq.s32.totalorder %v1147, %v1438
        %vm1877 = vcmp.eq.s32.totalorder %v1148, %v1438
        %vm1878 = vcmp.eq.s32.totalorder %v1149, %v1438
        %vm1879 = vcmp.eq.s32.totalorder %v1150, %v1438
        %vm1880 = vcmp.eq.s32.totalorder %v1151, %v1438
        %vm1881 = vcmp.eq.s32.totalorder %v1152, %v1438
        %vm1882 = vcmp.eq.s32.totalorder %v1153, %v1438
        %vm1883 = vcmp.eq.s32.totalorder %v1154, %v1438
        %vm1884 = vcmp.eq.s32.totalorder %v1147, %v1466
        %vm1885 = vcmp.eq.s32.totalorder %v1148, %v1466
        %vm1886 = vcmp.eq.s32.totalorder %v1149, %v1466
        %vm1887 = vcmp.eq.s32.totalorder %v1150, %v1466
        %vm1888 = vcmp.eq.s32.totalorder %v1151, %v1466
        %vm1889 = vcmp.eq.s32.totalorder %v1152, %v1466
        %vm1890 = vcmp.eq.s32.totalorder %v1153, %v1466
        %vm1891 = vcmp.eq.s32.totalorder %v1154, %v1466
        %vm1892 = vcmp.eq.s32.totalorder %v1147, %v1494
        %vm1893 = vcmp.eq.s32.totalorder %v1148, %v1494
        %vm1894 = vcmp.eq.s32.totalorder %v1149, %v1494
        %vm1895 = vcmp.eq.s32.totalorder %v1150, %v1494
        %vm1896 = vcmp.eq.s32.totalorder %v1151, %v1494
        %vm1897 = vcmp.eq.s32.totalorder %v1152, %v1494
        %vm1898 = vcmp.eq.s32.totalorder %v1153, %v1494
        %vm1899 = vcmp.eq.s32.totalorder %v1154, %v1494
        %vm1900 = vcmp.eq.s32.totalorder %v1147, %v1522
        %vm1901 = vcmp.eq.s32.totalorder %v1148, %v1522
        %vm1902 = vcmp.eq.s32.totalorder %v1149, %v1522
        %vm1903 = vcmp.eq.s32.totalorder %v1150, %v1522
        %vm1904 = vcmp.eq.s32.totalorder %v1151, %v1522
        %vm1905 = vcmp.eq.s32.totalorder %v1152, %v1522
        %vm1906 = vcmp.eq.s32.totalorder %v1153, %v1522
        %vm1907 = vcmp.eq.s32.totalorder %v1154, %v1522
        %vm1908 = vcmp.eq.s32.totalorder %v1147, %v1550
        %vm1909 = vcmp.eq.s32.totalorder %v1148, %v1550
        %vm1910 = vcmp.eq.s32.totalorder %v1149, %v1550
        %vm1911 = vcmp.eq.s32.totalorder %v1150, %v1550
        %vm1912 = vcmp.eq.s32.totalorder %v1151, %v1550
        %vm1913 = vcmp.eq.s32.totalorder %v1152, %v1550
        %vm1914 = vcmp.eq.s32.totalorder %v1153, %v1550
        %vm1915 = vcmp.eq.s32.totalorder %v1154, %v1550
        %vm1916 = vcmp.eq.s32.totalorder %v1147, %v1578
        %vm1917 = vcmp.eq.s32.totalorder %v1148, %v1578
        %vm1918 = vcmp.eq.s32.totalorder %v1149, %v1578
        %vm1919 = vcmp.eq.s32.totalorder %v1150, %v1578
        %vm1920 = vcmp.eq.s32.totalorder %v1151, %v1578
        %vm1921 = vcmp.eq.s32.totalorder %v1152, %v1578
        %vm1922 = vcmp.eq.s32.totalorder %v1153, %v1578
        %vm1923 = vcmp.eq.s32.totalorder %v1154, %v1578
        %vm1924 = vcmp.eq.s32.totalorder %v1147, %v1606
        %vm1925 = vcmp.eq.s32.totalorder %v1148, %v1606
        %vm1926 = vcmp.eq.s32.totalorder %v1149, %v1606
        %vm1927 = vcmp.eq.s32.totalorder %v1150, %v1606
        %vm1928 = vcmp.eq.s32.totalorder %v1151, %v1606
        %vm1929 = vcmp.eq.s32.totalorder %v1152, %v1606
        %vm1930 = vcmp.eq.s32.totalorder %v1153, %v1606
        %vm1931 = vcmp.eq.s32.totalorder %v1154, %v1606
        %vm1932 = vcmp.eq.s32.totalorder %v1147, %v1634
        %vm1933 = vcmp.eq.s32.totalorder %v1148, %v1634
        %vm1934 = vcmp.eq.s32.totalorder %v1149, %v1634
        %vm1935 = vcmp.eq.s32.totalorder %v1150, %v1634
        %vm1936 = vcmp.eq.s32.totalorder %v1151, %v1634
        %vm1937 = vcmp.eq.s32.totalorder %v1152, %v1634
        %vm1938 = vcmp.eq.s32.totalorder %v1153, %v1634
        %vm1939 = vcmp.eq.s32.totalorder %v1154, %v1634
        %vm1940 = vcmp.eq.s32.totalorder %v1147, %v1662
        %vm1941 = vcmp.eq.s32.totalorder %v1148, %v1662
        %vm1942 = vcmp.eq.s32.totalorder %v1149, %v1662
        %vm1943 = vcmp.eq.s32.totalorder %v1150, %v1662
        %vm1944 = vcmp.eq.s32.totalorder %v1151, %v1662
        %vm1945 = vcmp.eq.s32.totalorder %v1152, %v1662
        %vm1946 = vcmp.eq.s32.totalorder %v1153, %v1662
        %vm1947 = vcmp.eq.s32.totalorder %v1154, %v1662
        %vm1948 = vcmp.eq.s32.totalorder %v1147, %v1690
        %vm1949 = vcmp.eq.s32.totalorder %v1148, %v1690
        %vm1950 = vcmp.eq.s32.totalorder %v1149, %v1690
        %vm1951 = vcmp.eq.s32.totalorder %v1150, %v1690
        %vm1952 = vcmp.eq.s32.totalorder %v1151, %v1690
        %vm1953 = vcmp.eq.s32.totalorder %v1152, %v1690
        %vm1954 = vcmp.eq.s32.totalorder %v1153, %v1690
        %vm1955 = vcmp.eq.s32.totalorder %v1154, %v1690
        %vm1956 = vcmp.eq.s32.totalorder %v1147, %v1718
        %vm1957 = vcmp.eq.s32.totalorder %v1148, %v1718
        %vm1958 = vcmp.eq.s32.totalorder %v1149, %v1718
        %vm1959 = vcmp.eq.s32.totalorder %v1150, %v1718
        %vm1960 = vcmp.eq.s32.totalorder %v1151, %v1718
        %vm1961 = vcmp.eq.s32.totalorder %v1152, %v1718
        %vm1962 = vcmp.eq.s32.totalorder %v1153, %v1718
        %vm1963 = vcmp.eq.s32.totalorder %v1154, %v1718
        %vm1964 = vcmp.eq.s32.totalorder %v1147, %v1746
        %vm1965 = vcmp.eq.s32.totalorder %v1148, %v1746
        %vm1966 = vcmp.eq.s32.totalorder %v1149, %v1746
        %vm1967 = vcmp.eq.s32.totalorder %v1150, %v1746
        %vm1968 = vcmp.eq.s32.totalorder %v1151, %v1746
        %vm1969 = vcmp.eq.s32.totalorder %v1152, %v1746
        %vm1970 = vcmp.eq.s32.totalorder %v1153, %v1746
        %vm1971 = vcmp.eq.s32.totalorder %v1154, %v1746
        %vm1972 = vcmp.eq.s32.totalorder %v1147, %v1774
        %vm1973 = vcmp.eq.s32.totalorder %v1148, %v1774
        %vm1974 = vcmp.eq.s32.totalorder %v1149, %v1774
        %vm1975 = vcmp.eq.s32.totalorder %v1150, %v1774
        %vm1976 = vcmp.eq.s32.totalorder %v1151, %v1774
        %vm1977 = vcmp.eq.s32.totalorder %v1152, %v1774
        %vm1978 = vcmp.eq.s32.totalorder %v1153, %v1774
        %vm1979 = vcmp.eq.s32.totalorder %v1154, %v1774
        %vm1980 = vcmp.eq.s32.totalorder %v1147, %v1802
        %vm1981 = vcmp.eq.s32.totalorder %v1148, %v1802
        %vm1982 = vcmp.eq.s32.totalorder %v1149, %v1802
        %vm1983 = vcmp.eq.s32.totalorder %v1150, %v1802
        %vm1984 = vcmp.eq.s32.totalorder %v1151, %v1802
        %vm1985 = vcmp.eq.s32.totalorder %v1152, %v1802
        %vm1986 = vcmp.eq.s32.totalorder %v1153, %v1802
        %vm1987 = vcmp.eq.s32.totalorder %v1154, %v1802
        %vm1988 = vcmp.eq.s32.totalorder %v1147, %v1830
        %vm1989 = vcmp.eq.s32.totalorder %v1148, %v1830
        %vm1990 = vcmp.eq.s32.totalorder %v1149, %v1830
        %vm1991 = vcmp.eq.s32.totalorder %v1150, %v1830
        %vm1992 = vcmp.eq.s32.totalorder %v1151, %v1830
        %vm1993 = vcmp.eq.s32.totalorder %v1152, %v1830
        %vm1994 = vcmp.eq.s32.totalorder %v1153, %v1830
        %vm1995 = vcmp.eq.s32.totalorder %v1154, %v1830
        %vm1996 = vcmp.eq.s32.totalorder %v1147, %v1858
        %vm1997 = vcmp.eq.s32.totalorder %v1148, %v1858
        %vm1998 = vcmp.eq.s32.totalorder %v1149, %v1858
        %vm1999 = vcmp.eq.s32.totalorder %v1150, %v1858
        %vm2000 = vcmp.eq.s32.totalorder %v1151, %v1858
        %vm2001 = vcmp.eq.s32.totalorder %v1152, %v1858
        %vm2002 = vcmp.eq.s32.totalorder %v1153, %v1858
        %vm2003 = vcmp.eq.s32.totalorder %v1154, %v1858
        %v2004 = vsel %vm1876, 1, 0
        %v2005 = vsel %vm1877, 1, 0
        %v2006 = vsel %vm1878, 1, 0
        %v2007 = vsel %vm1879, 1, 0
        %v2008 = vsel %vm1880, 1, 0
        %v2009 = vsel %vm1881, 1, 0
        %v2010 = vsel %vm1882, 1, 0
        %v2011 = vsel %vm1883, 1, 0
        %v2012 = vsel %vm1884, 1, 0
        %v2013 = vsel %vm1885, 1, 0
        %v2014 = vsel %vm1886, 1, 0
        %v2015 = vsel %vm1887, 1, 0
        %v2016 = vsel %vm1888, 1, 0
        %v2017 = vsel %vm1889, 1, 0
        %v2018 = vsel %vm1890, 1, 0
        %v2019 = vsel %vm1891, 1, 0
        %v2020 = vsel %vm1892, 1, 0
        %v2021 = vsel %vm1893, 1, 0
        %v2022 = vsel %vm1894, 1, 0
        %v2023 = vsel %vm1895, 1, 0
        %v2024 = vsel %vm1896, 1, 0
        %v2025 = vsel %vm1897, 1, 0
        %v2026 = vsel %vm1898, 1, 0
        %v2027 = vsel %vm1899, 1, 0
        %v2028 = vsel %vm1900, 1, 0
        %v2029 = vsel %vm1901, 1, 0
        %v2030 = vsel %vm1902, 1, 0
        %v2031 = vsel %vm1903, 1, 0
        %v2032 = vsel %vm1904, 1, 0
        %v2033 = vsel %vm1905, 1, 0
        %v2034 = vsel %vm1906, 1, 0
        %v2035 = vsel %vm1907, 1, 0
        %v2036 = vsel %vm1908, 1, 0
        %v2037 = vsel %vm1909, 1, 0
        %v2038 = vsel %vm1910, 1, 0
        %v2039 = vsel %vm1911, 1, 0
        %v2040 = vsel %vm1912, 1, 0
        %v2041 = vsel %vm1913, 1, 0
        %v2042 = vsel %vm1914, 1, 0
        %v2043 = vsel %vm1915, 1, 0
        %v2044 = vsel %vm1916, 1, 0
        %v2045 = vsel %vm1917, 1, 0
        %v2046 = vsel %vm1918, 1, 0
        %v2047 = vsel %vm1919, 1, 0
        %v2048 = vsel %vm1920, 1, 0
        %v2049 = vsel %vm1921, 1, 0
        %v2050 = vsel %vm1922, 1, 0
        %v2051 = vsel %vm1923, 1, 0
        %v2052 = vsel %vm1924, 1, 0
        %v2053 = vsel %vm1925, 1, 0
        %v2054 = vsel %vm1926, 1, 0
        %v2055 = vsel %vm1927, 1, 0
        %v2056 = vsel %vm1928, 1, 0
        %v2057 = vsel %vm1929, 1, 0
        %v2058 = vsel %vm1930, 1, 0
        %v2059 = vsel %vm1931, 1, 0
        %v2060 = vsel %vm1932, 1, 0
        %v2061 = vsel %vm1933, 1, 0
        %v2062 = vsel %vm1934, 1, 0
        %v2063 = vsel %vm1935, 1, 0
        %v2064 = vsel %vm1936, 1, 0
        %v2065 = vsel %vm1937, 1, 0
        %v2066 = vsel %vm1938, 1, 0
        %v2067 = vsel %vm1939, 1, 0
        %v2068 = vsel %vm1940, 1, 0
        %v2069 = vsel %vm1941, 1, 0
        %v2070 = vsel %vm1942, 1, 0
        %v2071 = vsel %vm1943, 1, 0
        %v2072 = vsel %vm1944, 1, 0
        %v2073 = vsel %vm1945, 1, 0
        %v2074 = vsel %vm1946, 1, 0
        %v2075 = vsel %vm1947, 1, 0
        %v2076 = vsel %vm1948, 1, 0
        %v2077 = vsel %vm1949, 1, 0
        %v2078 = vsel %vm1950, 1, 0
        %v2079 = vsel %vm1951, 1, 0
        %v2080 = vsel %vm1952, 1, 0
        %v2081 = vsel %vm1953, 1, 0
        %v2082 = vsel %vm1954, 1, 0
        %v2083 = vsel %vm1955, 1, 0
        %v2084 = vsel %vm1956, 1, 0
        %v2085 = vsel %vm1957, 1, 0
        %v2086 = vsel %vm1958, 1, 0
        %v2087 = vsel %vm1959, 1, 0
        %v2088 = vsel %vm1960, 1, 0
        %v2089 = vsel %vm1961, 1, 0
        %v2090 = vsel %vm1962, 1, 0
        %v2091 = vsel %vm1963, 1, 0
        %v2092 = vsel %vm1964, 1, 0
        %v2093 = vsel %vm1965, 1, 0
        %v2094 = vsel %vm1966, 1, 0
        %v2095 = vsel %vm1967, 1, 0
        %v2096 = vsel %vm1968, 1, 0
        %v2097 = vsel %vm1969, 1, 0
        %v2098 = vsel %vm1970, 1, 0
        %v2099 = vsel %vm1971, 1, 0
        %v2100 = vsel %vm1972, 1, 0
        %v2101 = vsel %vm1973, 1, 0
        %v2102 = vsel %vm1974, 1, 0
        %v2103 = vsel %vm1975, 1, 0
        %v2104 = vsel %vm1976, 1, 0
        %v2105 = vsel %vm1977, 1, 0
        %v2106 = vsel %vm1978, 1, 0
        %v2107 = vsel %vm1979, 1, 0
        %v2108 = vsel %vm1980, 1, 0
        %v2109 = vsel %vm1981, 1, 0
        %v2110 = vsel %vm1982, 1, 0
        %v2111 = vsel %vm1983, 1, 0
        %v2112 = vsel %vm1984, 1, 0
        %v2113 = vsel %vm1985, 1, 0
        %v2114 = vsel %vm1986, 1, 0
        %v2115 = vsel %vm1987, 1, 0
        %v2116 = vsel %vm1988, 1, 0
        %v2117 = vsel %vm1989, 1, 0
        %v2118 = vsel %vm1990, 1, 0
        %v2119 = vsel %vm1991, 1, 0
        %v2120 = vsel %vm1992, 1, 0
        %v2121 = vsel %vm1993, 1, 0
        %v2122 = vsel %vm1994, 1, 0
        %v2123 = vsel %vm1995, 1, 0
        %v2124 = vsel %vm1996, 1, 0
        %v2125 = vsel %vm1997, 1, 0
        %v2126 = vsel %vm1998, 1, 0
        %v2127 = vsel %vm1999, 1, 0
        %v2128 = vsel %vm2000, 1, 0
        %v2129 = vsel %vm2001, 1, 0
        %v2130 = vsel %vm2002, 1, 0
        %v2131 = vsel %vm2003, 1, 0
        %v2132 = vcvt.s32.f32 %v2004
        %v2133 = vcvt.s32.f32 %v2005
        %v2134 = vcvt.s32.f32 %v2006
        %v2135 = vcvt.s32.f32 %v2007
        %v2136 = vcvt.s32.f32 %v2008
        %v2137 = vcvt.s32.f32 %v2009
        %v2138 = vcvt.s32.f32 %v2010
        %v2139 = vcvt.s32.f32 %v2011
        %v2140 = vcvt.s32.f32 %v2012
        %v2141 = vcvt.s32.f32 %v2013
        %v2142 = vcvt.s32.f32 %v2014
        %v2143 = vcvt.s32.f32 %v2015
        %v2144 = vcvt.s32.f32 %v2016
        %v2145 = vcvt.s32.f32 %v2017
        %v2146 = vcvt.s32.f32 %v2018
        %v2147 = vcvt.s32.f32 %v2019
        %v2148 = vcvt.s32.f32 %v2020
        %v2149 = vcvt.s32.f32 %v2021
        %v2150 = vcvt.s32.f32 %v2022
        %v2151 = vcvt.s32.f32 %v2023
        %v2152 = vcvt.s32.f32 %v2024
        %v2153 = vcvt.s32.f32 %v2025
        %v2154 = vcvt.s32.f32 %v2026
        %v2155 = vcvt.s32.f32 %v2027
        %v2156 = vcvt.s32.f32 %v2028
        %v2157 = vcvt.s32.f32 %v2029
        %v2158 = vcvt.s32.f32 %v2030
        %v2159 = vcvt.s32.f32 %v2031
        %v2160 = vcvt.s32.f32 %v2032
        %v2161 = vcvt.s32.f32 %v2033
        %v2162 = vcvt.s32.f32 %v2034
        %v2163 = vcvt.s32.f32 %v2035
        %v2164 = vcvt.s32.f32 %v2036
        %v2165 = vcvt.s32.f32 %v2037
        %v2166 = vcvt.s32.f32 %v2038
        %v2167 = vcvt.s32.f32 %v2039
        %v2168 = vcvt.s32.f32 %v2040
        %v2169 = vcvt.s32.f32 %v2041
        %v2170 = vcvt.s32.f32 %v2042
        %v2171 = vcvt.s32.f32 %v2043
        %v2172 = vcvt.s32.f32 %v2044
        %v2173 = vcvt.s32.f32 %v2045
        %v2174 = vcvt.s32.f32 %v2046
        %v2175 = vcvt.s32.f32 %v2047
        %v2176 = vcvt.s32.f32 %v2048
        %v2177 = vcvt.s32.f32 %v2049
        %v2178 = vcvt.s32.f32 %v2050
        %v2179 = vcvt.s32.f32 %v2051
        %v2180 = vcvt.s32.f32 %v2052
        %v2181 = vcvt.s32.f32 %v2053
        %v2182 = vcvt.s32.f32 %v2054
        %v2183 = vcvt.s32.f32 %v2055
        %v2184 = vcvt.s32.f32 %v2056
        %v2185 = vcvt.s32.f32 %v2057
        %v2186 = vcvt.s32.f32 %v2058
        %v2187 = vcvt.s32.f32 %v2059
        %v2188 = vcvt.s32.f32 %v2060
        %v2189 = vcvt.s32.f32 %v2061
        %v2190 = vcvt.s32.f32 %v2062
        %v2191 = vcvt.s32.f32 %v2063
        %v2192 = vcvt.s32.f32 %v2064
        %v2193 = vcvt.s32.f32 %v2065
        %v2194 = vcvt.s32.f32 %v2066
        %v2195 = vcvt.s32.f32 %v2067
        %v2196 = vcvt.s32.f32 %v2068
        %v2197 = vcvt.s32.f32 %v2069
        %v2198 = vcvt.s32.f32 %v2070
        %v2199 = vcvt.s32.f32 %v2071
        %v2200 = vcvt.s32.f32 %v2072
        %v2201 = vcvt.s32.f32 %v2073
        %v2202 = vcvt.s32.f32 %v2074
        %v2203 = vcvt.s32.f32 %v2075
        %v2204 = vcvt.s32.f32 %v2076
        %v2205 = vcvt.s32.f32 %v2077
        %v2206 = vcvt.s32.f32 %v2078
        %v2207 = vcvt.s32.f32 %v2079
        %v2208 = vcvt.s32.f32 %v2080
        %v2209 = vcvt.s32.f32 %v2081
        %v2210 = vcvt.s32.f32 %v2082
        %v2211 = vcvt.s32.f32 %v2083
        %v2212 = vcvt.s32.f32 %v2084
        %v2213 = vcvt.s32.f32 %v2085
        %v2214 = vcvt.s32.f32 %v2086
        %v2215 = vcvt.s32.f32 %v2087
        %v2216 = vcvt.s32.f32 %v2088
        %v2217 = vcvt.s32.f32 %v2089
        %v2218 = vcvt.s32.f32 %v2090
        %v2219 = vcvt.s32.f32 %v2091
        %v2220 = vcvt.s32.f32 %v2092
        %v2221 = vcvt.s32.f32 %v2093
        %v2222 = vcvt.s32.f32 %v2094
        %v2223 = vcvt.s32.f32 %v2095
        %v2224 = vcvt.s32.f32 %v2096
        %v2225 = vcvt.s32.f32 %v2097
        %v2226 = vcvt.s32.f32 %v2098
        %v2227 = vcvt.s32.f32 %v2099
        %v2228 = vcvt.s32.f32 %v2100
        %v2229 = vcvt.s32.f32 %v2101
        %v2230 = vcvt.s32.f32 %v2102
        %v2231 = vcvt.s32.f32 %v2103
        %v2232 = vcvt.s32.f32 %v2104
        %v2233 = vcvt.s32.f32 %v2105
        %v2234 = vcvt.s32.f32 %v2106
        %v2235 = vcvt.s32.f32 %v2107
        %v2236 = vcvt.s32.f32 %v2108
        %v2237 = vcvt.s32.f32 %v2109
        %v2238 = vcvt.s32.f32 %v2110
        %v2239 = vcvt.s32.f32 %v2111
        %v2240 = vcvt.s32.f32 %v2112
        %v2241 = vcvt.s32.f32 %v2113
        %v2242 = vcvt.s32.f32 %v2114
        %v2243 = vcvt.s32.f32 %v2115
        %v2244 = vcvt.s32.f32 %v2116
        %v2245 = vcvt.s32.f32 %v2117
        %v2246 = vcvt.s32.f32 %v2118
        %v2247 = vcvt.s32.f32 %v2119
        %v2248 = vcvt.s32.f32 %v2120
        %v2249 = vcvt.s32.f32 %v2121
        %v2250 = vcvt.s32.f32 %v2122
        %v2251 = vcvt.s32.f32 %v2123
        %v2252 = vcvt.s32.f32 %v2124
        %v2253 = vcvt.s32.f32 %v2125
        %v2254 = vcvt.s32.f32 %v2126
        %v2255 = vcvt.s32.f32 %v2127
        %v2256 = vcvt.s32.f32 %v2128
        %v2257 = vcvt.s32.f32 %v2129
        %v2258 = vcvt.s32.f32 %v2130
        %v2259 = vcvt.s32.f32 %v2131
        %v2260 = vld [vmem:[%s2] sm:$0xff]
        %v2261 = vld [vmem:[%s2 + $0x8] sm:$0xff]
        %v2262 = vld [vmem:[%s2 + $0x10] sm:$0xff]
        %v2263 = vld [vmem:[%s2 + $0x18] sm:$0xff]
        %v2264 = vld [vmem:[%s2 + $0x20] sm:$0xff]
        %v2265 = vld [vmem:[%s2 + $0x28] sm:$0xff]
        %v2266 = vld [vmem:[%s2 + $0x30] sm:$0xff]
        %v2267 = vld [vmem:[%s2 + $0x38] sm:$0xff]
        %v2268 = vld [vmem:[%s2 + $0x40] sm:$0xff]
        %v2269 = vld [vmem:[%s2 + $0x48] sm:$0xff]
        %v2270 = vld [vmem:[%s2 + $0x50] sm:$0xff]
        %v2271 = vld [vmem:[%s2 + $0x58] sm:$0xff]
        %v2272 = vld [vmem:[%s2 + $0x60] sm:$0xff]
        %v2273 = vld [vmem:[%s2 + $0x68] sm:$0xff]
        %v2274 = vld [vmem:[%s2 + $0x70] sm:$0xff]
        %v2275 = vld [vmem:[%s2 + $0x78] sm:$0xff]
        %v2276 = vld [vmem:[%s2 + $0x80] sm:$0xff]
        %v2277 = vld [vmem:[%s2 + $0x88] sm:$0xff]
        %v2278 = vld [vmem:[%s2 + $0x90] sm:$0xff]
        %v2279 = vld [vmem:[%s2 + $0x98] sm:$0xff]
        %v2280 = vld [vmem:[%s2 + $0xa0] sm:$0xff]
        %v2281 = vld [vmem:[%s2 + $0xa8] sm:$0xff]
        %v2282 = vld [vmem:[%s2 + $0xb0] sm:$0xff]
        %v2283 = vld [vmem:[%s2 + $0xb8] sm:$0xff]
        %v2284 = vld [vmem:[%s2 + $0xc0] sm:$0xff]
        %v2285 = vld [vmem:[%s2 + $0xc8] sm:$0xff]
        %v2286 = vld [vmem:[%s2 + $0xd0] sm:$0xff]
        %v2287 = vld [vmem:[%s2 + $0xd8] sm:$0xff]
        %v2288 = vld [vmem:[%s2 + $0xe0] sm:$0xff]
        %v2289 = vld [vmem:[%s2 + $0xe8] sm:$0xff]
        %v2290 = vld [vmem:[%s2 + $0xf0] sm:$0xff]
        %v2291 = vld [vmem:[%s2 + $0xf8] sm:$0xff]
        %v2292 = vld [vmem:[%s2 + $0x100] sm:$0xff]
        %v2293 = vld [vmem:[%s2 + $0x108] sm:$0xff]
        %v2294 = vld [vmem:[%s2 + $0x110] sm:$0xff]
        %v2295 = vld [vmem:[%s2 + $0x118] sm:$0xff]
        %v2296 = vld [vmem:[%s2 + $0x120] sm:$0xff]
        %v2297 = vld [vmem:[%s2 + $0x128] sm:$0xff]
        %v2298 = vld [vmem:[%s2 + $0x130] sm:$0xff]
        %v2299 = vld [vmem:[%s2 + $0x138] sm:$0xff]
        %v2300 = vld [vmem:[%s2 + $0x140] sm:$0xff]
        %v2301 = vld [vmem:[%s2 + $0x148] sm:$0xff]
        %v2302 = vld [vmem:[%s2 + $0x150] sm:$0xff]
        %v2303 = vld [vmem:[%s2 + $0x158] sm:$0xff]
        %v2304 = vld [vmem:[%s2 + $0x160] sm:$0xff]
        %v2305 = vld [vmem:[%s2 + $0x168] sm:$0xff]
        %v2306 = vld [vmem:[%s2 + $0x170] sm:$0xff]
        %v2307 = vld [vmem:[%s2 + $0x178] sm:$0xff]
        %v2308 = vld [vmem:[%s2 + $0x180] sm:$0xff]
        %v2309 = vld [vmem:[%s2 + $0x188] sm:$0xff]
        %v2310 = vld [vmem:[%s2 + $0x190] sm:$0xff]
        %v2311 = vld [vmem:[%s2 + $0x198] sm:$0xff]
        %v2312 = vld [vmem:[%s2 + $0x1a0] sm:$0xff]
        %v2313 = vld [vmem:[%s2 + $0x1a8] sm:$0xff]
        %v2314 = vld [vmem:[%s2 + $0x1b0] sm:$0xff]
        %v2315 = vld [vmem:[%s2 + $0x1b8] sm:$0xff]
        %v2316 = vld [vmem:[%s2 + $0x1c0] sm:$0xff]
        %v2317 = vld [vmem:[%s2 + $0x1c8] sm:$0xff]
        %v2318 = vld [vmem:[%s2 + $0x1d0] sm:$0xff]
        %v2319 = vld [vmem:[%s2 + $0x1d8] sm:$0xff]
        %v2320 = vld [vmem:[%s2 + $0x1e0] sm:$0xff]
        %v2321 = vld [vmem:[%s2 + $0x1e8] sm:$0xff]
        %v2322 = vld [vmem:[%s2 + $0x1f0] sm:$0xff]
        %v2323 = vld [vmem:[%s2 + $0x1f8] sm:$0xff]
        %v2324 = vld [vmem:[%s2 + $0x200] sm:$0xff]
        %v2325 = vld [vmem:[%s2 + $0x208] sm:$0xff]
        %v2326 = vld [vmem:[%s2 + $0x210] sm:$0xff]
        %v2327 = vld [vmem:[%s2 + $0x218] sm:$0xff]
        %v2328 = vld [vmem:[%s2 + $0x220] sm:$0xff]
        %v2329 = vld [vmem:[%s2 + $0x228] sm:$0xff]
        %v2330 = vld [vmem:[%s2 + $0x230] sm:$0xff]
        %v2331 = vld [vmem:[%s2 + $0x238] sm:$0xff]
        %v2332 = vld [vmem:[%s2 + $0x240] sm:$0xff]
        %v2333 = vld [vmem:[%s2 + $0x248] sm:$0xff]
        %v2334 = vld [vmem:[%s2 + $0x250] sm:$0xff]
        %v2335 = vld [vmem:[%s2 + $0x258] sm:$0xff]
        %v2336 = vld [vmem:[%s2 + $0x260] sm:$0xff]
        %v2337 = vld [vmem:[%s2 + $0x268] sm:$0xff]
        %v2338 = vld [vmem:[%s2 + $0x270] sm:$0xff]
        %v2339 = vld [vmem:[%s2 + $0x278] sm:$0xff]
        %v2340 = vld [vmem:[%s2 + $0x280] sm:$0xff]
        %v2341 = vld [vmem:[%s2 + $0x288] sm:$0xff]
        %v2342 = vld [vmem:[%s2 + $0x290] sm:$0xff]
        %v2343 = vld [vmem:[%s2 + $0x298] sm:$0xff]
        %v2344 = vld [vmem:[%s2 + $0x2a0] sm:$0xff]
        %v2345 = vld [vmem:[%s2 + $0x2a8] sm:$0xff]
        %v2346 = vld [vmem:[%s2 + $0x2b0] sm:$0xff]
        %v2347 = vld [vmem:[%s2 + $0x2b8] sm:$0xff]
        %v2348 = vld [vmem:[%s2 + $0x2c0] sm:$0xff]
        %v2349 = vld [vmem:[%s2 + $0x2c8] sm:$0xff]
        %v2350 = vld [vmem:[%s2 + $0x2d0] sm:$0xff]
        %v2351 = vld [vmem:[%s2 + $0x2d8] sm:$0xff]
        %v2352 = vld [vmem:[%s2 + $0x2e0] sm:$0xff]
        %v2353 = vld [vmem:[%s2 + $0x2e8] sm:$0xff]
        %v2354 = vld [vmem:[%s2 + $0x2f0] sm:$0xff]
        %v2355 = vld [vmem:[%s2 + $0x2f8] sm:$0xff]
        %v2356 = vld [vmem:[%s2 + $0x300] sm:$0xff]
        %v2357 = vld [vmem:[%s2 + $0x308] sm:$0xff]
        %v2358 = vld [vmem:[%s2 + $0x310] sm:$0xff]
        %v2359 = vld [vmem:[%s2 + $0x318] sm:$0xff]
        %v2360 = vld [vmem:[%s2 + $0x320] sm:$0xff]
        %v2361 = vld [vmem:[%s2 + $0x328] sm:$0xff]
        %v2362 = vld [vmem:[%s2 + $0x330] sm:$0xff]
        %v2363 = vld [vmem:[%s2 + $0x338] sm:$0xff]
        %v2364 = vld [vmem:[%s2 + $0x340] sm:$0xff]
        %v2365 = vld [vmem:[%s2 + $0x348] sm:$0xff]
        %v2366 = vld [vmem:[%s2 + $0x350] sm:$0xff]
        %v2367 = vld [vmem:[%s2 + $0x358] sm:$0xff]
        %v2368 = vld [vmem:[%s2 + $0x360] sm:$0xff]
        %v2369 = vld [vmem:[%s2 + $0x368] sm:$0xff]
        %v2370 = vld [vmem:[%s2 + $0x370] sm:$0xff]
        %v2371 = vld [vmem:[%s2 + $0x378] sm:$0xff]
        %v2372 = vld [vmem:[%s2 + $0x380] sm:$0xff]
        %v2373 = vld [vmem:[%s2 + $0x388] sm:$0xff]
        %v2374 = vld [vmem:[%s2 + $0x390] sm:$0xff]
        %v2375 = vld [vmem:[%s2 + $0x398] sm:$0xff]
        %v2376 = vld [vmem:[%s2 + $0x3a0] sm:$0xff]
        %v2377 = vld [vmem:[%s2 + $0x3a8] sm:$0xff]
        %v2378 = vld [vmem:[%s2 + $0x3b0] sm:$0xff]
        %v2379 = vld [vmem:[%s2 + $0x3b8] sm:$0xff]
        %v2380 = vld [vmem:[%s2 + $0x3c0] sm:$0xff]
        %v2381 = vld [vmem:[%s2 + $0x3c8] sm:$0xff]
        %v2382 = vld [vmem:[%s2 + $0x3d0] sm:$0xff]
        %v2383 = vld [vmem:[%s2 + $0x3d8] sm:$0xff]
        %v2384 = vld [vmem:[%s2 + $0x3e0] sm:$0xff]
        %v2385 = vld [vmem:[%s2 + $0x3e8] sm:$0xff]
        %v2386 = vld [vmem:[%s2 + $0x3f0] sm:$0xff]
        %v2387 = vld [vmem:[%s2 + $0x3f8] sm:$0xff]
        %2388 = vmatpush.msra.mxu0 %v2275
        %2389 = vmatpush.msra.mxu0 %v2274
        %2390 = vmatpush.msra.mxu0 %v2273
        %2391 = vmatpush.msra.mxu0 %v2272
        %2392 = vmatpush.msra.mxu0 %v2271
        %2393 = vmatpush.msra.mxu0 %v2270
        %2394 = vmatpush.msra.mxu0 %v2269
        %2395 = vmatpush.msra.mxu0 %v2268
        %2396 = vmatpush.msra.mxu0 %v2267
        %2397 = vmatpush.msra.mxu0 %v2266
        %2398 = vmatpush.msra.mxu0 %v2265
        %2399 = vmatpush.msra.mxu0 %v2264
        %2400 = vmatpush.msra.mxu0 %v2263
        %2401 = vmatpush.msra.mxu0 %v2262
        %2402 = vmatpush.msra.mxu0 %v2261
        %2403 = vmatpush.msra.mxu0 %v2260
        %2404 = vmatmul.f32.gmra.mxu0 %v2132
        %v2405 = vpop.f32.mrf.mxu0
        %v2406 = vadd.f32 0.0, %v2405
        %2407 = vmatmul.f32.gmra.mxu0 %v2140
        %v2408 = vpop.f32.mrf.mxu0
        %v2409 = vadd.f32 0.0, %v2408
        %2410 = vmatmul.f32.gmra.mxu0 %v2148
        %v2411 = vpop.f32.mrf.mxu0
        %v2412 = vadd.f32 0.0, %v2411
        %2413 = vmatmul.f32.gmra.mxu0 %v2156
        %v2414 = vpop.f32.mrf.mxu0
        %v2415 = vadd.f32 0.0, %v2414
        %2416 = vmatmul.f32.gmra.mxu0 %v2164
        %v2417 = vpop.f32.mrf.mxu0
        %v2418 = vadd.f32 0.0, %v2417
        %2419 = vmatmul.f32.gmra.mxu0 %v2172
        %v2420 = vpop.f32.mrf.mxu0
        %v2421 = vadd.f32 0.0, %v2420
        %2422 = vmatmul.f32.gmra.mxu0 %v2180
        %v2423 = vpop.f32.mrf.mxu0
        %v2424 = vadd.f32 0.0, %v2423
        %2425 = vmatmul.f32.gmra.mxu0 %v2188
        %v2426 = vpop.f32.mrf.mxu0
        %v2427 = vadd.f32 0.0, %v2426
        %2428 = vmatmul.f32.gmra.mxu0 %v2196
        %v2429 = vpop.f32.mrf.mxu0
        %v2430 = vadd.f32 0.0, %v2429
        %2431 = vmatmul.f32.gmra.mxu0 %v2204
        %v2432 = vpop.f32.mrf.mxu0
        %v2433 = vadd.f32 0.0, %v2432
        %2434 = vmatmul.f32.gmra.mxu0 %v2212
        %v2435 = vpop.f32.mrf.mxu0
        %v2436 = vadd.f32 0.0, %v2435
        %2437 = vmatmul.f32.gmra.mxu0 %v2220
        %v2438 = vpop.f32.mrf.mxu0
        %v2439 = vadd.f32 0.0, %v2438
        %2440 = vmatmul.f32.gmra.mxu0 %v2228
        %v2441 = vpop.f32.mrf.mxu0
        %v2442 = vadd.f32 0.0, %v2441
        %2443 = vmatmul.f32.gmra.mxu0 %v2236
        %v2444 = vpop.f32.mrf.mxu0
        %v2445 = vadd.f32 0.0, %v2444
        %2446 = vmatmul.f32.gmra.mxu0 %v2244
        %v2447 = vpop.f32.mrf.mxu0
        %v2448 = vadd.f32 0.0, %v2447
        %2449 = vmatmul.f32.gmra.mxu0 %v2252
        %v2450 = vpop.f32.mrf.mxu0
        %v2451 = vadd.f32 0.0, %v2450
        %2452 = vdwg.mxu0
        %2453 = vmatpush.msra.mxu0 %v2291
        %2454 = vmatpush.msra.mxu0 %v2290
        %2455 = vmatpush.msra.mxu0 %v2289
        %2456 = vmatpush.msra.mxu0 %v2288
        %2457 = vmatpush.msra.mxu0 %v2287
        %2458 = vmatpush.msra.mxu0 %v2286
        %2459 = vmatpush.msra.mxu0 %v2285
        %2460 = vmatpush.msra.mxu0 %v2284
        %2461 = vmatpush.msra.mxu0 %v2283
        %2462 = vmatpush.msra.mxu0 %v2282
        %2463 = vmatpush.msra.mxu0 %v2281
        %2464 = vmatpush.msra.mxu0 %v2280
        %2465 = vmatpush.msra.mxu0 %v2279
        %2466 = vmatpush.msra.mxu0 %v2278
        %2467 = vmatpush.msra.mxu0 %v2277
        %2468 = vmatpush.msra.mxu0 %v2276
        %2469 = vmatmul.f32.gmra.mxu0 %v2133
        %v2470 = vpop.f32.mrf.mxu0
        %v2471 = vadd.f32 %v2406, %v2470
        %2472 = vmatmul.f32.gmra.mxu0 %v2141
        %v2473 = vpop.f32.mrf.mxu0
        %v2474 = vadd.f32 %v2409, %v2473
        %2475 = vmatmul.f32.gmra.mxu0 %v2149
        %v2476 = vpop.f32.mrf.mxu0
        %v2477 = vadd.f32 %v2412, %v2476
        %2478 = vmatmul.f32.gmra.mxu0 %v2157
        %v2479 = vpop.f32.mrf.mxu0
        %v2480 = vadd.f32 %v2415, %v2479
        %2481 = vmatmul.f32.gmra.mxu0 %v2165
        %v2482 = vpop.f32.mrf.mxu0
        %v2483 = vadd.f32 %v2418, %v2482
        %2484 = vmatmul.f32.gmra.mxu0 %v2173
        %v2485 = vpop.f32.mrf.mxu0
        %v2486 = vadd.f32 %v2421, %v2485
        %2487 = vmatmul.f32.gmra.mxu0 %v2181
        %v2488 = vpop.f32.mrf.mxu0
        %v2489 = vadd.f32 %v2424, %v2488
        %2490 = vmatmul.f32.gmra.mxu0 %v2189
        %v2491 = vpop.f32.mrf.mxu0
        %v2492 = vadd.f32 %v2427, %v2491
        %2493 = vmatmul.f32.gmra.mxu0 %v2197
        %v2494 = vpop.f32.mrf.mxu0
        %v2495 = vadd.f32 %v2430, %v2494
        %2496 = vmatmul.f32.gmra.mxu0 %v2205
        %v2497 = vpop.f32.mrf.mxu0
        %v2498 = vadd.f32 %v2433, %v2497
        %2499 = vmatmul.f32.gmra.mxu0 %v2213
        %v2500 = vpop.f32.mrf.mxu0
        %v2501 = vadd.f32 %v2436, %v2500
        %2502 = vmatmul.f32.gmra.mxu0 %v2221
        %v2503 = vpop.f32.mrf.mxu0
        %v2504 = vadd.f32 %v2439, %v2503
        %2505 = vmatmul.f32.gmra.mxu0 %v2229
        %v2506 = vpop.f32.mrf.mxu0
        %v2507 = vadd.f32 %v2442, %v2506
        %2508 = vmatmul.f32.gmra.mxu0 %v2237
        %v2509 = vpop.f32.mrf.mxu0
        %v2510 = vadd.f32 %v2445, %v2509
        %2511 = vmatmul.f32.gmra.mxu0 %v2245
        %v2512 = vpop.f32.mrf.mxu0
        %v2513 = vadd.f32 %v2448, %v2512
        %2514 = vmatmul.f32.gmra.mxu0 %v2253
        %v2515 = vpop.f32.mrf.mxu0
        %v2516 = vadd.f32 %v2451, %v2515
        %2517 = vdwg.mxu0
        %2518 = vmatpush.msra.mxu0 %v2307
        %2519 = vmatpush.msra.mxu0 %v2306
        %2520 = vmatpush.msra.mxu0 %v2305
        %2521 = vmatpush.msra.mxu0 %v2304
        %2522 = vmatpush.msra.mxu0 %v2303
        %2523 = vmatpush.msra.mxu0 %v2302
        %2524 = vmatpush.msra.mxu0 %v2301
        %2525 = vmatpush.msra.mxu0 %v2300
        %2526 = vmatpush.msra.mxu0 %v2299
        %2527 = vmatpush.msra.mxu0 %v2298
        %2528 = vmatpush.msra.mxu0 %v2297
        %2529 = vmatpush.msra.mxu0 %v2296
        %2530 = vmatpush.msra.mxu0 %v2295
        %2531 = vmatpush.msra.mxu0 %v2294
        %2532 = vmatpush.msra.mxu0 %v2293
        %2533 = vmatpush.msra.mxu0 %v2292
        %2534 = vmatmul.f32.gmra.mxu0 %v2134
        %v2535 = vpop.f32.mrf.mxu0
        %v2536 = vadd.f32 %v2471, %v2535
        %2537 = vmatmul.f32.gmra.mxu0 %v2142
        %v2538 = vpop.f32.mrf.mxu0
        %v2539 = vadd.f32 %v2474, %v2538
        %2540 = vmatmul.f32.gmra.mxu0 %v2150
        %v2541 = vpop.f32.mrf.mxu0
        %v2542 = vadd.f32 %v2477, %v2541
        %2543 = vmatmul.f32.gmra.mxu0 %v2158
        %v2544 = vpop.f32.mrf.mxu0
        %v2545 = vadd.f32 %v2480, %v2544
        %2546 = vmatmul.f32.gmra.mxu0 %v2166
        %v2547 = vpop.f32.mrf.mxu0
        %v2548 = vadd.f32 %v2483, %v2547
        %2549 = vmatmul.f32.gmra.mxu0 %v2174
        %v2550 = vpop.f32.mrf.mxu0
        %v2551 = vadd.f32 %v2486, %v2550
        %2552 = vmatmul.f32.gmra.mxu0 %v2182
        %v2553 = vpop.f32.mrf.mxu0
        %v2554 = vadd.f32 %v2489, %v2553
        %2555 = vmatmul.f32.gmra.mxu0 %v2190
        %v2556 = vpop.f32.mrf.mxu0
        %v2557 = vadd.f32 %v2492, %v2556
        %2558 = vmatmul.f32.gmra.mxu0 %v2198
        %v2559 = vpop.f32.mrf.mxu0
        %v2560 = vadd.f32 %v2495, %v2559
        %2561 = vmatmul.f32.gmra.mxu0 %v2206
        %v2562 = vpop.f32.mrf.mxu0
        %v2563 = vadd.f32 %v2498, %v2562
        %2564 = vmatmul.f32.gmra.mxu0 %v2214
        %v2565 = vpop.f32.mrf.mxu0
        %v2566 = vadd.f32 %v2501, %v2565
        %2567 = vmatmul.f32.gmra.mxu0 %v2222
        %v2568 = vpop.f32.mrf.mxu0
        %v2569 = vadd.f32 %v2504, %v2568
        %2570 = vmatmul.f32.gmra.mxu0 %v2230
        %v2571 = vpop.f32.mrf.mxu0
        %v2572 = vadd.f32 %v2507, %v2571
        %2573 = vmatmul.f32.gmra.mxu0 %v2238
        %v2574 = vpop.f32.mrf.mxu0
        %v2575 = vadd.f32 %v2510, %v2574
        %2576 = vmatmul.f32.gmra.mxu0 %v2246
        %v2577 = vpop.f32.mrf.mxu0
        %v2578 = vadd.f32 %v2513, %v2577
        %2579 = vmatmul.f32.gmra.mxu0 %v2254
        %v2580 = vpop.f32.mrf.mxu0
        %v2581 = vadd.f32 %v2516, %v2580
        %2582 = vdwg.mxu0
        %2583 = vmatpush.msra.mxu0 %v2323
        %2584 = vmatpush.msra.mxu0 %v2322
        %2585 = vmatpush.msra.mxu0 %v2321
        %2586 = vmatpush.msra.mxu0 %v2320
        %2587 = vmatpush.msra.mxu0 %v2319
        %2588 = vmatpush.msra.mxu0 %v2318
        %2589 = vmatpush.msra.mxu0 %v2317
        %2590 = vmatpush.msra.mxu0 %v2316
        %2591 = vmatpush.msra.mxu0 %v2315
        %2592 = vmatpush.msra.mxu0 %v2314
        %2593 = vmatpush.msra.mxu0 %v2313
        %2594 = vmatpush.msra.mxu0 %v2312
        %2595 = vmatpush.msra.mxu0 %v2311
        %2596 = vmatpush.msra.mxu0 %v2310
        %2597 = vmatpush.msra.mxu0 %v2309
        %2598 = vmatpush.msra.mxu0 %v2308
        %2599 = vmatmul.f32.gmra.mxu0 %v2135
        %v2600 = vpop.f32.mrf.mxu0
        %v2601 = vadd.f32 %v2536, %v2600
        %2602 = vmatmul.f32.gmra.mxu0 %v2143
        %v2603 = vpop.f32.mrf.mxu0
        %v2604 = vadd.f32 %v2539, %v2603
        %2605 = vmatmul.f32.gmra.mxu0 %v2151
        %v2606 = vpop.f32.mrf.mxu0
        %v2607 = vadd.f32 %v2542, %v2606
        %2608 = vmatmul.f32.gmra.mxu0 %v2159
        %v2609 = vpop.f32.mrf.mxu0
        %v2610 = vadd.f32 %v2545, %v2609
        %2611 = vmatmul.f32.gmra.mxu0 %v2167
        %v2612 = vpop.f32.mrf.mxu0
        %v2613 = vadd.f32 %v2548, %v2612
        %2614 = vmatmul.f32.gmra.mxu0 %v2175
        %v2615 = vpop.f32.mrf.mxu0
        %v2616 = vadd.f32 %v2551, %v2615
        %2617 = vmatmul.f32.gmra.mxu0 %v2183
        %v2618 = vpop.f32.mrf.mxu0
        %v2619 = vadd.f32 %v2554, %v2618
        %2620 = vmatmul.f32.gmra.mxu0 %v2191
        %v2621 = vpop.f32.mrf.mxu0
        %v2622 = vadd.f32 %v2557, %v2621
        %2623 = vmatmul.f32.gmra.mxu0 %v2199
        %v2624 = vpop.f32.mrf.mxu0
        %v2625 = vadd.f32 %v2560, %v2624
        %2626 = vmatmul.f32.gmra.mxu0 %v2207
        %v2627 = vpop.f32.mrf.mxu0
        %v2628 = vadd.f32 %v2563, %v2627
        %2629 = vmatmul.f32.gmra.mxu0 %v2215
        %v2630 = vpop.f32.mrf.mxu0
        %v2631 = vadd.f32 %v2566, %v2630
        %2632 = vmatmul.f32.gmra.mxu0 %v2223
        %v2633 = vpop.f32.mrf.mxu0
        %v2634 = vadd.f32 %v2569, %v2633
        %2635 = vmatmul.f32.gmra.mxu0 %v2231
        %v2636 = vpop.f32.mrf.mxu0
        %v2637 = vadd.f32 %v2572, %v2636
        %2638 = vmatmul.f32.gmra.mxu0 %v2239
        %v2639 = vpop.f32.mrf.mxu0
        %v2640 = vadd.f32 %v2575, %v2639
        %2641 = vmatmul.f32.gmra.mxu0 %v2247
        %v2642 = vpop.f32.mrf.mxu0
        %v2643 = vadd.f32 %v2578, %v2642
        %2644 = vmatmul.f32.gmra.mxu0 %v2255
        %v2645 = vpop.f32.mrf.mxu0
        %v2646 = vadd.f32 %v2581, %v2645
        %2647 = vdwg.mxu0
        %2648 = vmatpush.msra.mxu0 %v2339
        %2649 = vmatpush.msra.mxu0 %v2338
        %2650 = vmatpush.msra.mxu0 %v2337
        %2651 = vmatpush.msra.mxu0 %v2336
        %2652 = vmatpush.msra.mxu0 %v2335
        %2653 = vmatpush.msra.mxu0 %v2334
        %2654 = vmatpush.msra.mxu0 %v2333
        %2655 = vmatpush.msra.mxu0 %v2332
        %2656 = vmatpush.msra.mxu0 %v2331
        %2657 = vmatpush.msra.mxu0 %v2330
        %2658 = vmatpush.msra.mxu0 %v2329
        %2659 = vmatpush.msra.mxu0 %v2328
        %2660 = vmatpush.msra.mxu0 %v2327
        %2661 = vmatpush.msra.mxu0 %v2326
        %2662 = vmatpush.msra.mxu0 %v2325
        %2663 = vmatpush.msra.mxu0 %v2324
        %2664 = vmatmul.f32.gmra.mxu0 %v2136
        %v2665 = vpop.f32.mrf.mxu0
        %v2666 = vadd.f32 %v2601, %v2665
        %2667 = vmatmul.f32.gmra.mxu0 %v2144
        %v2668 = vpop.f32.mrf.mxu0
        %v2669 = vadd.f32 %v2604, %v2668
        %2670 = vmatmul.f32.gmra.mxu0 %v2152
        %v2671 = vpop.f32.mrf.mxu0
        %v2672 = vadd.f32 %v2607, %v2671
        %2673 = vmatmul.f32.gmra.mxu0 %v2160
        %v2674 = vpop.f32.mrf.mxu0
        %v2675 = vadd.f32 %v2610, %v2674
        %2676 = vmatmul.f32.gmra.mxu0 %v2168
        %v2677 = vpop.f32.mrf.mxu0
        %v2678 = vadd.f32 %v2613, %v2677
        %2679 = vmatmul.f32.gmra.mxu0 %v2176
        %v2680 = vpop.f32.mrf.mxu0
        %v2681 = vadd.f32 %v2616, %v2680
        %2682 = vmatmul.f32.gmra.mxu0 %v2184
        %v2683 = vpop.f32.mrf.mxu0
        %v2684 = vadd.f32 %v2619, %v2683
        %2685 = vmatmul.f32.gmra.mxu0 %v2192
        %v2686 = vpop.f32.mrf.mxu0
        %v2687 = vadd.f32 %v2622, %v2686
        %2688 = vmatmul.f32.gmra.mxu0 %v2200
        %v2689 = vpop.f32.mrf.mxu0
        %v2690 = vadd.f32 %v2625, %v2689
        %2691 = vmatmul.f32.gmra.mxu0 %v2208
        %v2692 = vpop.f32.mrf.mxu0
        %v2693 = vadd.f32 %v2628, %v2692
        %2694 = vmatmul.f32.gmra.mxu0 %v2216
        %v2695 = vpop.f32.mrf.mxu0
        %v2696 = vadd.f32 %v2631, %v2695
        %2697 = vmatmul.f32.gmra.mxu0 %v2224
        %v2698 = vpop.f32.mrf.mxu0
        %v2699 = vadd.f32 %v2634, %v2698
        %2700 = vmatmul.f32.gmra.mxu0 %v2232
        %v2701 = vpop.f32.mrf.mxu0
        %v2702 = vadd.f32 %v2637, %v2701
        %2703 = vmatmul.f32.gmra.mxu0 %v2240
        %v2704 = vpop.f32.mrf.mxu0
        %v2705 = vadd.f32 %v2640, %v2704
        %2706 = vmatmul.f32.gmra.mxu0 %v2248
        %v2707 = vpop.f32.mrf.mxu0
        %v2708 = vadd.f32 %v2643, %v2707
        %2709 = vmatmul.f32.gmra.mxu0 %v2256
        %v2710 = vpop.f32.mrf.mxu0
        %v2711 = vadd.f32 %v2646, %v2710
        %2712 = vdwg.mxu0
        %2713 = vmatpush.msra.mxu0 %v2355
        %2714 = vmatpush.msra.mxu0 %v2354
        %2715 = vmatpush.msra.mxu0 %v2353
        %2716 = vmatpush.msra.mxu0 %v2352
        %2717 = vmatpush.msra.mxu0 %v2351
        %2718 = vmatpush.msra.mxu0 %v2350
        %2719 = vmatpush.msra.mxu0 %v2349
        %2720 = vmatpush.msra.mxu0 %v2348
        %2721 = vmatpush.msra.mxu0 %v2347
        %2722 = vmatpush.msra.mxu0 %v2346
        %2723 = vmatpush.msra.mxu0 %v2345
        %2724 = vmatpush.msra.mxu0 %v2344
        %2725 = vmatpush.msra.mxu0 %v2343
        %2726 = vmatpush.msra.mxu0 %v2342
        %2727 = vmatpush.msra.mxu0 %v2341
        %2728 = vmatpush.msra.mxu0 %v2340
        %2729 = vmatmul.f32.gmra.mxu0 %v2137
        %v2730 = vpop.f32.mrf.mxu0
        %v2731 = vadd.f32 %v2666, %v2730
        %2732 = vmatmul.f32.gmra.mxu0 %v2145
        %v2733 = vpop.f32.mrf.mxu0
        %v2734 = vadd.f32 %v2669, %v2733
        %2735 = vmatmul.f32.gmra.mxu0 %v2153
        %v2736 = vpop.f32.mrf.mxu0
        %v2737 = vadd.f32 %v2672, %v2736
        %2738 = vmatmul.f32.gmra.mxu0 %v2161
        %v2739 = vpop.f32.mrf.mxu0
        %v2740 = vadd.f32 %v2675, %v2739
        %2741 = vmatmul.f32.gmra.mxu0 %v2169
        %v2742 = vpop.f32.mrf.mxu0
        %v2743 = vadd.f32 %v2678, %v2742
        %2744 = vmatmul.f32.gmra.mxu0 %v2177
        %v2745 = vpop.f32.mrf.mxu0
        %v2746 = vadd.f32 %v2681, %v2745
        %2747 = vmatmul.f32.gmra.mxu0 %v2185
        %v2748 = vpop.f32.mrf.mxu0
        %v2749 = vadd.f32 %v2684, %v2748
        %2750 = vmatmul.f32.gmra.mxu0 %v2193
        %v2751 = vpop.f32.mrf.mxu0
        %v2752 = vadd.f32 %v2687, %v2751
        %2753 = vmatmul.f32.gmra.mxu0 %v2201
        %v2754 = vpop.f32.mrf.mxu0
        %v2755 = vadd.f32 %v2690, %v2754
        %2756 = vmatmul.f32.gmra.mxu0 %v2209
        %v2757 = vpop.f32.mrf.mxu0
        %v2758 = vadd.f32 %v2693, %v2757
        %2759 = vmatmul.f32.gmra.mxu0 %v2217
        %v2760 = vpop.f32.mrf.mxu0
        %v2761 = vadd.f32 %v2696, %v2760
        %2762 = vmatmul.f32.gmra.mxu0 %v2225
        %v2763 = vpop.f32.mrf.mxu0
        %v2764 = vadd.f32 %v2699, %v2763
        %2765 = vmatmul.f32.gmra.mxu0 %v2233
        %v2766 = vpop.f32.mrf.mxu0
        %v2767 = vadd.f32 %v2702, %v2766
        %2768 = vmatmul.f32.gmra.mxu0 %v2241
        %v2769 = vpop.f32.mrf.mxu0
        %v2770 = vadd.f32 %v2705, %v2769
        %2771 = vmatmul.f32.gmra.mxu0 %v2249
        %v2772 = vpop.f32.mrf.mxu0
        %v2773 = vadd.f32 %v2708, %v2772
        %2774 = vmatmul.f32.gmra.mxu0 %v2257
        %v2775 = vpop.f32.mrf.mxu0
        %v2776 = vadd.f32 %v2711, %v2775
        %2777 = vdwg.mxu0
        %2778 = vmatpush.msra.mxu0 %v2371
        %2779 = vmatpush.msra.mxu0 %v2370
        %2780 = vmatpush.msra.mxu0 %v2369
        %2781 = vmatpush.msra.mxu0 %v2368
        %2782 = vmatpush.msra.mxu0 %v2367
        %2783 = vmatpush.msra.mxu0 %v2366
        %2784 = vmatpush.msra.mxu0 %v2365
        %2785 = vmatpush.msra.mxu0 %v2364
        %2786 = vmatpush.msra.mxu0 %v2363
        %2787 = vmatpush.msra.mxu0 %v2362
        %2788 = vmatpush.msra.mxu0 %v2361
        %2789 = vmatpush.msra.mxu0 %v2360
        %2790 = vmatpush.msra.mxu0 %v2359
        %2791 = vmatpush.msra.mxu0 %v2358
        %2792 = vmatpush.msra.mxu0 %v2357
        %2793 = vmatpush.msra.mxu0 %v2356
        %2794 = vmatmul.f32.gmra.mxu0 %v2138
        %v2795 = vpop.f32.mrf.mxu0
        %v2796 = vadd.f32 %v2731, %v2795
        %2797 = vmatmul.f32.gmra.mxu0 %v2146
        %v2798 = vpop.f32.mrf.mxu0
        %v2799 = vadd.f32 %v2734, %v2798
        %2800 = vmatmul.f32.gmra.mxu0 %v2154
        %v2801 = vpop.f32.mrf.mxu0
        %v2802 = vadd.f32 %v2737, %v2801
        %2803 = vmatmul.f32.gmra.mxu0 %v2162
        %v2804 = vpop.f32.mrf.mxu0
        %v2805 = vadd.f32 %v2740, %v2804
        %2806 = vmatmul.f32.gmra.mxu0 %v2170
        %v2807 = vpop.f32.mrf.mxu0
        %v2808 = vadd.f32 %v2743, %v2807
        %2809 = vmatmul.f32.gmra.mxu0 %v2178
        %v2810 = vpop.f32.mrf.mxu0
        %v2811 = vadd.f32 %v2746, %v2810
        %2812 = vmatmul.f32.gmra.mxu0 %v2186
        %v2813 = vpop.f32.mrf.mxu0
        %v2814 = vadd.f32 %v2749, %v2813
        %2815 = vmatmul.f32.gmra.mxu0 %v2194
        %v2816 = vpop.f32.mrf.mxu0
        %v2817 = vadd.f32 %v2752, %v2816
        %2818 = vmatmul.f32.gmra.mxu0 %v2202
        %v2819 = vpop.f32.mrf.mxu0
        %v2820 = vadd.f32 %v2755, %v2819
        %2821 = vmatmul.f32.gmra.mxu0 %v2210
        %v2822 = vpop.f32.mrf.mxu0
        %v2823 = vadd.f32 %v2758, %v2822
        %2824 = vmatmul.f32.gmra.mxu0 %v2218
        %v2825 = vpop.f32.mrf.mxu0
        %v2826 = vadd.f32 %v2761, %v2825
        %2827 = vmatmul.f32.gmra.mxu0 %v2226
        %v2828 = vpop.f32.mrf.mxu0
        %v2829 = vadd.f32 %v2764, %v2828
        %2830 = vmatmul.f32.gmra.mxu0 %v2234
        %v2831 = vpop.f32.mrf.mxu0
        %v2832 = vadd.f32 %v2767, %v2831
        %2833 = vmatmul.f32.gmra.mxu0 %v2242
        %v2834 = vpop.f32.mrf.mxu0
        %v2835 = vadd.f32 %v2770, %v2834
        %2836 = vmatmul.f32.gmra.mxu0 %v2250
        %v2837 = vpop.f32.mrf.mxu0
        %v2838 = vadd.f32 %v2773, %v2837
        %2839 = vmatmul.f32.gmra.mxu0 %v2258
        %v2840 = vpop.f32.mrf.mxu0
        %v2841 = vadd.f32 %v2776, %v2840
        %2842 = vdwg.mxu0
        %2843 = vmatpush.msra.mxu0 %v2387
        %2844 = vmatpush.msra.mxu0 %v2386
        %2845 = vmatpush.msra.mxu0 %v2385
        %2846 = vmatpush.msra.mxu0 %v2384
        %2847 = vmatpush.msra.mxu0 %v2383
        %2848 = vmatpush.msra.mxu0 %v2382
        %2849 = vmatpush.msra.mxu0 %v2381
        %2850 = vmatpush.msra.mxu0 %v2380
        %2851 = vmatpush.msra.mxu0 %v2379
        %2852 = vmatpush.msra.mxu0 %v2378
        %2853 = vmatpush.msra.mxu0 %v2377
        %2854 = vmatpush.msra.mxu0 %v2376
        %2855 = vmatpush.msra.mxu0 %v2375
        %2856 = vmatpush.msra.mxu0 %v2374
        %2857 = vmatpush.msra.mxu0 %v2373
        %2858 = vmatpush.msra.mxu0 %v2372
        %2859 = vmatmul.f32.gmra.mxu0 %v2139
        %v2860 = vpop.f32.mrf.mxu0
        %v2861 = vadd.f32 %v2796, %v2860
        %2862 = vmatmul.f32.gmra.mxu0 %v2147
        %v2863 = vpop.f32.mrf.mxu0
        %v2864 = vadd.f32 %v2799, %v2863
        %2865 = vmatmul.f32.gmra.mxu0 %v2155
        %v2866 = vpop.f32.mrf.mxu0
        %v2867 = vadd.f32 %v2802, %v2866
        %2868 = vmatmul.f32.gmra.mxu0 %v2163
        %v2869 = vpop.f32.mrf.mxu0
        %v2870 = vadd.f32 %v2805, %v2869
        %2871 = vmatmul.f32.gmra.mxu0 %v2171
        %v2872 = vpop.f32.mrf.mxu0
        %v2873 = vadd.f32 %v2808, %v2872
        %2874 = vmatmul.f32.gmra.mxu0 %v2179
        %v2875 = vpop.f32.mrf.mxu0
        %v2876 = vadd.f32 %v2811, %v2875
        %2877 = vmatmul.f32.gmra.mxu0 %v2187
        %v2878 = vpop.f32.mrf.mxu0
        %v2879 = vadd.f32 %v2814, %v2878
        %2880 = vmatmul.f32.gmra.mxu0 %v2195
        %v2881 = vpop.f32.mrf.mxu0
        %v2882 = vadd.f32 %v2817, %v2881
        %2883 = vmatmul.f32.gmra.mxu0 %v2203
        %v2884 = vpop.f32.mrf.mxu0
        %v2885 = vadd.f32 %v2820, %v2884
        %2886 = vmatmul.f32.gmra.mxu0 %v2211
        %v2887 = vpop.f32.mrf.mxu0
        %v2888 = vadd.f32 %v2823, %v2887
        %2889 = vmatmul.f32.gmra.mxu0 %v2219
        %v2890 = vpop.f32.mrf.mxu0
        %v2891 = vadd.f32 %v2826, %v2890
        %2892 = vmatmul.f32.gmra.mxu0 %v2227
        %v2893 = vpop.f32.mrf.mxu0
        %v2894 = vadd.f32 %v2829, %v2893
        %2895 = vmatmul.f32.gmra.mxu0 %v2235
        %v2896 = vpop.f32.mrf.mxu0
        %v2897 = vadd.f32 %v2832, %v2896
        %2898 = vmatmul.f32.gmra.mxu0 %v2243
        %v2899 = vpop.f32.mrf.mxu0
        %v2900 = vadd.f32 %v2835, %v2899
        %2901 = vmatmul.f32.gmra.mxu0 %v2251
        %v2902 = vpop.f32.mrf.mxu0
        %v2903 = vadd.f32 %v2838, %v2902
        %2904 = vmatmul.f32.gmra.mxu0 %v2259
        %v2905 = vpop.f32.mrf.mxu0
        %v2906 = vadd.f32 %v2841, %v2905
        %2907 = vdwg.mxu0
        %vm2908 = vcmask 523264
        %2909 = vst.msk [vmem:[%s246] sm:$0xff] %vm2908, %v2861
        %2910 = vst.msk [vmem:[%s246 + $0x8] sm:$0xff] %vm2908, %v2864
        %2911 = vst.msk [vmem:[%s246 + $0x10] sm:$0xff] %vm2908, %v2867
        %2912 = vst.msk [vmem:[%s246 + $0x18] sm:$0xff] %vm2908, %v2870
        %2913 = vst.msk [vmem:[%s246 + $0x20] sm:$0xff] %vm2908, %v2873
        %2914 = vst.msk [vmem:[%s246 + $0x28] sm:$0xff] %vm2908, %v2876
        %2915 = vst.msk [vmem:[%s246 + $0x30] sm:$0xff] %vm2908, %v2879
        %2916 = vst.msk [vmem:[%s246 + $0x38] sm:$0xff] %vm2908, %v2882
        %2917 = vst.msk [vmem:[%s246 + $0x40] sm:$0xff] %vm2908, %v2885
        %2918 = vst.msk [vmem:[%s246 + $0x48] sm:$0xff] %vm2908, %v2888
        %2919 = vst.msk [vmem:[%s246 + $0x50] sm:$0xff] %vm2908, %v2891
        %2920 = vst.msk [vmem:[%s246 + $0x58] sm:$0xff] %vm2908, %v2894
        %2921 = vst.msk [vmem:[%s246 + $0x60] sm:$0xff] %vm2908, %v2897
        %2922 = vst.msk [vmem:[%s246 + $0x68] sm:$0xff] %vm2908, %v2900
        %2923 = vst.msk [vmem:[%s246 + $0x70] sm:$0xff] %vm2908, %v2903
        %2924 = vst.msk [vmem:[%s246 + $0x78] sm:$0xff] %vm2908, %v2906
        %s2925 = smul.u32 %s21, 128
        %v2926 = vlaneseq
        %v2927 = vshrl.u32 %v2926, 7
        %v2928 = vadd.s32 %v2927, 8
        %v2929 = vadd.s32 %v2927, 16
        %v2930 = vadd.s32 %v2927, 24
        %v2931 = vadd.s32 %v2927, 32
        %v2932 = vadd.s32 %v2927, 40
        %v2933 = vadd.s32 %v2927, 48
        %v2934 = vadd.s32 %v2927, 56
        %v2935 = vadd.s32 %v2927, 64
        %v2936 = vadd.s32 %v2927, 72
        %v2937 = vadd.s32 %v2927, 80
        %v2938 = vadd.s32 %v2927, 88
        %v2939 = vadd.s32 %v2927, 96
        %v2940 = vadd.s32 %v2927, 104
        %v2941 = vadd.s32 %v2927, 112
        %v2942 = vadd.s32 %v2927, 120
        %v2943 = vstv %s2925
        %v2944 = vadd.s32 %v2943, %v2927
        %v2945 = vadd.s32 %v2943, %v2928
        %v2946 = vadd.s32 %v2943, %v2929
        %v2947 = vadd.s32 %v2943, %v2930
        %v2948 = vadd.s32 %v2943, %v2931
        %v2949 = vadd.s32 %v2943, %v2932
        %v2950 = vadd.s32 %v2943, %v2933
        %v2951 = vadd.s32 %v2943, %v2934
        %v2952 = vadd.s32 %v2943, %v2935
        %v2953 = vadd.s32 %v2943, %v2936
        %v2954 = vadd.s32 %v2943, %v2937
        %v2955 = vadd.s32 %v2943, %v2938
        %v2956 = vadd.s32 %v2943, %v2939
        %v2957 = vadd.s32 %v2943, %v2940
        %v2958 = vadd.s32 %v2943, %v2941
        %v2959 = vadd.s32 %v2943, %v2942
        %vm2960 = vcmp.lt.s32.totalorder %v2944, 512
        %vm2961 = vcmp.lt.s32.totalorder %v2945, 512
        %vm2962 = vcmp.lt.s32.totalorder %v2946, 512
        %vm2963 = vcmp.lt.s32.totalorder %v2947, 512
        %vm2964 = vcmp.lt.s32.totalorder %v2948, 512
        %vm2965 = vcmp.lt.s32.totalorder %v2949, 512
        %vm2966 = vcmp.lt.s32.totalorder %v2950, 512
        %vm2967 = vcmp.lt.s32.totalorder %v2951, 512
        %vm2968 = vcmp.lt.s32.totalorder %v2952, 512
        %vm2969 = vcmp.lt.s32.totalorder %v2953, 512
        %vm2970 = vcmp.lt.s32.totalorder %v2954, 512
        %vm2971 = vcmp.lt.s32.totalorder %v2955, 512
        %vm2972 = vcmp.lt.s32.totalorder %v2956, 512
        %vm2973 = vcmp.lt.s32.totalorder %v2957, 512
        %vm2974 = vcmp.lt.s32.totalorder %v2958, 512
        %vm2975 = vcmp.lt.s32.totalorder %v2959, 512
        %v2976 = vsel %vm2960, 1, 0
        %v2977 = vsel %vm2961, 1, 0
        %v2978 = vsel %vm2962, 1, 0
        %v2979 = vsel %vm2963, 1, 0
        %v2980 = vsel %vm2964, 1, 0
        %v2981 = vsel %vm2965, 1, 0
        %v2982 = vsel %vm2966, 1, 0
        %v2983 = vsel %vm2967, 1, 0
        %v2984 = vsel %vm2968, 1, 0
        %v2985 = vsel %vm2969, 1, 0
        %v2986 = vsel %vm2970, 1, 0
        %v2987 = vsel %vm2971, 1, 0
        %v2988 = vsel %vm2972, 1, 0
        %v2989 = vsel %vm2973, 1, 0
        %v2990 = vsel %vm2974, 1, 0
        %v2991 = vsel %vm2975, 1, 0
        %v2992 = vcvt.s32.f32 %v2976
        %v2993 = vcvt.s32.f32 %v2977
        %v2994 = vcvt.s32.f32 %v2978
        %v2995 = vcvt.s32.f32 %v2979
        %v2996 = vcvt.s32.f32 %v2980
        %v2997 = vcvt.s32.f32 %v2981
        %v2998 = vcvt.s32.f32 %v2982
        %v2999 = vcvt.s32.f32 %v2983
        %v3000 = vcvt.s32.f32 %v2984
        %v3001 = vcvt.s32.f32 %v2985
        %v3002 = vcvt.s32.f32 %v2986
        %v3003 = vcvt.s32.f32 %v2987
        %v3004 = vcvt.s32.f32 %v2988
        %v3005 = vcvt.s32.f32 %v2989
        %v3006 = vcvt.s32.f32 %v2990
        %v3007 = vcvt.s32.f32 %v2991
        %v3008 = vmul.f32 %v2132, %v2992
        %v3009 = vmul.f32 %v2133, %v2992
        %v3010 = vmul.f32 %v2134, %v2992
        %v3011 = vmul.f32 %v2135, %v2992
        %v3012 = vmul.f32 %v2136, %v2992
        %v3013 = vmul.f32 %v2137, %v2992
        %v3014 = vmul.f32 %v2138, %v2992
        %v3015 = vmul.f32 %v2139, %v2992
        %v3016 = vmul.f32 %v2140, %v2993
        %v3017 = vmul.f32 %v2141, %v2993
        %v3018 = vmul.f32 %v2142, %v2993
        %v3019 = vmul.f32 %v2143, %v2993
        %v3020 = vmul.f32 %v2144, %v2993
        %v3021 = vmul.f32 %v2145, %v2993
        %v3022 = vmul.f32 %v2146, %v2993
        %v3023 = vmul.f32 %v2147, %v2993
        %v3024 = vmul.f32 %v2148, %v2994
        %v3025 = vmul.f32 %v2149, %v2994
        %v3026 = vmul.f32 %v2150, %v2994
        %v3027 = vmul.f32 %v2151, %v2994
        %v3028 = vmul.f32 %v2152, %v2994
        %v3029 = vmul.f32 %v2153, %v2994
        %v3030 = vmul.f32 %v2154, %v2994
        %v3031 = vmul.f32 %v2155, %v2994
        %v3032 = vmul.f32 %v2156, %v2995
        %v3033 = vmul.f32 %v2157, %v2995
        %v3034 = vmul.f32 %v2158, %v2995
        %v3035 = vmul.f32 %v2159, %v2995
        %v3036 = vmul.f32 %v2160, %v2995
        %v3037 = vmul.f32 %v2161, %v2995
        %v3038 = vmul.f32 %v2162, %v2995
        %v3039 = vmul.f32 %v2163, %v2995
        %v3040 = vmul.f32 %v2164, %v2996
        %v3041 = vmul.f32 %v2165, %v2996
        %v3042 = vmul.f32 %v2166, %v2996
        %v3043 = vmul.f32 %v2167, %v2996
        %v3044 = vmul.f32 %v2168, %v2996
        %v3045 = vmul.f32 %v2169, %v2996
        %v3046 = vmul.f32 %v2170, %v2996
        %v3047 = vmul.f32 %v2171, %v2996
        %v3048 = vmul.f32 %v2172, %v2997
        %v3049 = vmul.f32 %v2173, %v2997
        %v3050 = vmul.f32 %v2174, %v2997
        %v3051 = vmul.f32 %v2175, %v2997
        %v3052 = vmul.f32 %v2176, %v2997
        %v3053 = vmul.f32 %v2177, %v2997
        %v3054 = vmul.f32 %v2178, %v2997
        %v3055 = vmul.f32 %v2179, %v2997
        %v3056 = vmul.f32 %v2180, %v2998
        %v3057 = vmul.f32 %v2181, %v2998
        %v3058 = vmul.f32 %v2182, %v2998
        %v3059 = vmul.f32 %v2183, %v2998
        %v3060 = vmul.f32 %v2184, %v2998
        %v3061 = vmul.f32 %v2185, %v2998
        %v3062 = vmul.f32 %v2186, %v2998
        %v3063 = vmul.f32 %v2187, %v2998
        %v3064 = vmul.f32 %v2188, %v2999
        %v3065 = vmul.f32 %v2189, %v2999
        %v3066 = vmul.f32 %v2190, %v2999
        %v3067 = vmul.f32 %v2191, %v2999
        %v3068 = vmul.f32 %v2192, %v2999
        %v3069 = vmul.f32 %v2193, %v2999
        %v3070 = vmul.f32 %v2194, %v2999
        %v3071 = vmul.f32 %v2195, %v2999
        %v3072 = vmul.f32 %v2196, %v3000
        %v3073 = vmul.f32 %v2197, %v3000
        %v3074 = vmul.f32 %v2198, %v3000
        %v3075 = vmul.f32 %v2199, %v3000
        %v3076 = vmul.f32 %v2200, %v3000
        %v3077 = vmul.f32 %v2201, %v3000
        %v3078 = vmul.f32 %v2202, %v3000
        %v3079 = vmul.f32 %v2203, %v3000
        %v3080 = vmul.f32 %v2204, %v3001
        %v3081 = vmul.f32 %v2205, %v3001
        %v3082 = vmul.f32 %v2206, %v3001
        %v3083 = vmul.f32 %v2207, %v3001
        %v3084 = vmul.f32 %v2208, %v3001
        %v3085 = vmul.f32 %v2209, %v3001
        %v3086 = vmul.f32 %v2210, %v3001
        %v3087 = vmul.f32 %v2211, %v3001
        %v3088 = vmul.f32 %v2212, %v3002
        %v3089 = vmul.f32 %v2213, %v3002
        %v3090 = vmul.f32 %v2214, %v3002
        %v3091 = vmul.f32 %v2215, %v3002
        %v3092 = vmul.f32 %v2216, %v3002
        %v3093 = vmul.f32 %v2217, %v3002
        %v3094 = vmul.f32 %v2218, %v3002
        %v3095 = vmul.f32 %v2219, %v3002
        %v3096 = vmul.f32 %v2220, %v3003
        %v3097 = vmul.f32 %v2221, %v3003
        %v3098 = vmul.f32 %v2222, %v3003
        %v3099 = vmul.f32 %v2223, %v3003
        %v3100 = vmul.f32 %v2224, %v3003
        %v3101 = vmul.f32 %v2225, %v3003
        %v3102 = vmul.f32 %v2226, %v3003
        %v3103 = vmul.f32 %v2227, %v3003
        %v3104 = vmul.f32 %v2228, %v3004
        %v3105 = vmul.f32 %v2229, %v3004
        %v3106 = vmul.f32 %v2230, %v3004
        %v3107 = vmul.f32 %v2231, %v3004
        %v3108 = vmul.f32 %v2232, %v3004
        %v3109 = vmul.f32 %v2233, %v3004
        %v3110 = vmul.f32 %v2234, %v3004
        %v3111 = vmul.f32 %v2235, %v3004
        %v3112 = vmul.f32 %v2236, %v3005
        %v3113 = vmul.f32 %v2237, %v3005
        %v3114 = vmul.f32 %v2238, %v3005
        %v3115 = vmul.f32 %v2239, %v3005
        %v3116 = vmul.f32 %v2240, %v3005
        %v3117 = vmul.f32 %v2241, %v3005
        %v3118 = vmul.f32 %v2242, %v3005
        %v3119 = vmul.f32 %v2243, %v3005
        %v3120 = vmul.f32 %v2244, %v3006
        %v3121 = vmul.f32 %v2245, %v3006
        %v3122 = vmul.f32 %v2246, %v3006
        %v3123 = vmul.f32 %v2247, %v3006
        %v3124 = vmul.f32 %v2248, %v3006
        %v3125 = vmul.f32 %v2249, %v3006
        %v3126 = vmul.f32 %v2250, %v3006
        %v3127 = vmul.f32 %v2251, %v3006
        %v3128 = vmul.f32 %v2252, %v3007
        %v3129 = vmul.f32 %v2253, %v3007
        %v3130 = vmul.f32 %v2254, %v3007
        %v3131 = vmul.f32 %v2255, %v3007
        %v3132 = vmul.f32 %v2256, %v3007
        %v3133 = vmul.f32 %v2257, %v3007
        %v3134 = vmul.f32 %v2258, %v3007
        %v3135 = vmul.f32 %v2259, %v3007
        %v3136 = vadd.f32 %v3008, %v3016
        %v3137 = vadd.f32 %v3136, %v3024
        %v3138 = vadd.f32 %v3137, %v3032
        %v3139 = vadd.f32 %v3138, %v3040
        %v3140 = vadd.f32 %v3139, %v3048
        %v3141 = vadd.f32 %v3140, %v3056
        %v3142 = vadd.f32 %v3141, %v3064
        %v3143 = vadd.f32 %v3142, %v3072
        %v3144 = vadd.f32 %v3143, %v3080
        %v3145 = vadd.f32 %v3144, %v3088
        %v3146 = vadd.f32 %v3145, %v3096
        %v3147 = vadd.f32 %v3146, %v3104
        %v3148 = vadd.f32 %v3147, %v3112
        %v3149 = vadd.f32 %v3148, %v3120
        %v3150 = vadd.f32 %v3149, %v3128
        %v3151 = vrot.slane %v3150, 4
        %v3152 = vadd.f32 %v3150, %v3151
        %v3153 = vrot.slane %v3152, 2
        %v3154 = vadd.f32 %v3152, %v3153
        %v3155 = vrot.slane %v3154, 1
        %v3156 = vadd.f32 %v3154, %v3155
        %v3157 = vadd.f32 %v3009, %v3017
        %v3158 = vadd.f32 %v3157, %v3025
        %v3159 = vadd.f32 %v3158, %v3033
        %v3160 = vadd.f32 %v3159, %v3041
        %v3161 = vadd.f32 %v3160, %v3049
        %v3162 = vadd.f32 %v3161, %v3057
        %v3163 = vadd.f32 %v3162, %v3065
        %v3164 = vadd.f32 %v3163, %v3073
        %v3165 = vadd.f32 %v3164, %v3081
        %v3166 = vadd.f32 %v3165, %v3089
        %v3167 = vadd.f32 %v3166, %v3097
        %v3168 = vadd.f32 %v3167, %v3105
        %v3169 = vadd.f32 %v3168, %v3113
        %v3170 = vadd.f32 %v3169, %v3121
        %v3171 = vadd.f32 %v3170, %v3129
        %v3172 = vrot.slane %v3171, 4
        %v3173 = vadd.f32 %v3171, %v3172
        %v3174 = vrot.slane %v3173, 2
        %v3175 = vadd.f32 %v3173, %v3174
        %v3176 = vrot.slane %v3175, 1
        %v3177 = vadd.f32 %v3175, %v3176
        %v3178 = vadd.f32 %v3010, %v3018
        %v3179 = vadd.f32 %v3178, %v3026
        %v3180 = vadd.f32 %v3179, %v3034
        %v3181 = vadd.f32 %v3180, %v3042
        %v3182 = vadd.f32 %v3181, %v3050
        %v3183 = vadd.f32 %v3182, %v3058
        %v3184 = vadd.f32 %v3183, %v3066
        %v3185 = vadd.f32 %v3184, %v3074
        %v3186 = vadd.f32 %v3185, %v3082
        %v3187 = vadd.f32 %v3186, %v3090
        %v3188 = vadd.f32 %v3187, %v3098
        %v3189 = vadd.f32 %v3188, %v3106
        %v3190 = vadd.f32 %v3189, %v3114
        %v3191 = vadd.f32 %v3190, %v3122
        %v3192 = vadd.f32 %v3191, %v3130
        %v3193 = vrot.slane %v3192, 4
        %v3194 = vadd.f32 %v3192, %v3193
        %v3195 = vrot.slane %v3194, 2
        %v3196 = vadd.f32 %v3194, %v3195
        %v3197 = vrot.slane %v3196, 1
        %v3198 = vadd.f32 %v3196, %v3197
        %v3199 = vadd.f32 %v3011, %v3019
        %v3200 = vadd.f32 %v3199, %v3027
        %v3201 = vadd.f32 %v3200, %v3035
        %v3202 = vadd.f32 %v3201, %v3043
        %v3203 = vadd.f32 %v3202, %v3051
        %v3204 = vadd.f32 %v3203, %v3059
        %v3205 = vadd.f32 %v3204, %v3067
        %v3206 = vadd.f32 %v3205, %v3075
        %v3207 = vadd.f32 %v3206, %v3083
        %v3208 = vadd.f32 %v3207, %v3091
        %v3209 = vadd.f32 %v3208, %v3099
        %v3210 = vadd.f32 %v3209, %v3107
        %v3211 = vadd.f32 %v3210, %v3115
        %v3212 = vadd.f32 %v3211, %v3123
        %v3213 = vadd.f32 %v3212, %v3131
        %v3214 = vrot.slane %v3213, 4
        %v3215 = vadd.f32 %v3213, %v3214
        %v3216 = vrot.slane %v3215, 2
        %v3217 = vadd.f32 %v3215, %v3216
        %v3218 = vrot.slane %v3217, 1
        %v3219 = vadd.f32 %v3217, %v3218
        %v3220 = vadd.f32 %v3012, %v3020
        %v3221 = vadd.f32 %v3220, %v3028
        %v3222 = vadd.f32 %v3221, %v3036
        %v3223 = vadd.f32 %v3222, %v3044
        %v3224 = vadd.f32 %v3223, %v3052
        %v3225 = vadd.f32 %v3224, %v3060
        %v3226 = vadd.f32 %v3225, %v3068
        %v3227 = vadd.f32 %v3226, %v3076
        %v3228 = vadd.f32 %v3227, %v3084
        %v3229 = vadd.f32 %v3228, %v3092
        %v3230 = vadd.f32 %v3229, %v3100
        %v3231 = vadd.f32 %v3230, %v3108
        %v3232 = vadd.f32 %v3231, %v3116
        %v3233 = vadd.f32 %v3232, %v3124
        %v3234 = vadd.f32 %v3233, %v3132
        %v3235 = vrot.slane %v3234, 4
        %v3236 = vadd.f32 %v3234, %v3235
        %v3237 = vrot.slane %v3236, 2
        %v3238 = vadd.f32 %v3236, %v3237
        %v3239 = vrot.slane %v3238, 1
        %v3240 = vadd.f32 %v3238, %v3239
        %v3241 = vadd.f32 %v3013, %v3021
        %v3242 = vadd.f32 %v3241, %v3029
        %v3243 = vadd.f32 %v3242, %v3037
        %v3244 = vadd.f32 %v3243, %v3045
        %v3245 = vadd.f32 %v3244, %v3053
        %v3246 = vadd.f32 %v3245, %v3061
        %v3247 = vadd.f32 %v3246, %v3069
        %v3248 = vadd.f32 %v3247, %v3077
        %v3249 = vadd.f32 %v3248, %v3085
        %v3250 = vadd.f32 %v3249, %v3093
        %v3251 = vadd.f32 %v3250, %v3101
        %v3252 = vadd.f32 %v3251, %v3109
        %v3253 = vadd.f32 %v3252, %v3117
        %v3254 = vadd.f32 %v3253, %v3125
        %v3255 = vadd.f32 %v3254, %v3133
        %v3256 = vrot.slane %v3255, 4
        %v3257 = vadd.f32 %v3255, %v3256
        %v3258 = vrot.slane %v3257, 2
        %v3259 = vadd.f32 %v3257, %v3258
        %v3260 = vrot.slane %v3259, 1
        %v3261 = vadd.f32 %v3259, %v3260
        %v3262 = vadd.f32 %v3014, %v3022
        %v3263 = vadd.f32 %v3262, %v3030
        %v3264 = vadd.f32 %v3263, %v3038
        %v3265 = vadd.f32 %v3264, %v3046
        %v3266 = vadd.f32 %v3265, %v3054
        %v3267 = vadd.f32 %v3266, %v3062
        %v3268 = vadd.f32 %v3267, %v3070
        %v3269 = vadd.f32 %v3268, %v3078
        %v3270 = vadd.f32 %v3269, %v3086
        %v3271 = vadd.f32 %v3270, %v3094
        %v3272 = vadd.f32 %v3271, %v3102
        %v3273 = vadd.f32 %v3272, %v3110
        %v3274 = vadd.f32 %v3273, %v3118
        %v3275 = vadd.f32 %v3274, %v3126
        %v3276 = vadd.f32 %v3275, %v3134
        %v3277 = vrot.slane %v3276, 4
        %v3278 = vadd.f32 %v3276, %v3277
        %v3279 = vrot.slane %v3278, 2
        %v3280 = vadd.f32 %v3278, %v3279
        %v3281 = vrot.slane %v3280, 1
        %v3282 = vadd.f32 %v3280, %v3281
        %v3283 = vadd.f32 %v3015, %v3023
        %v3284 = vadd.f32 %v3283, %v3031
        %v3285 = vadd.f32 %v3284, %v3039
        %v3286 = vadd.f32 %v3285, %v3047
        %v3287 = vadd.f32 %v3286, %v3055
        %v3288 = vadd.f32 %v3287, %v3063
        %v3289 = vadd.f32 %v3288, %v3071
        %v3290 = vadd.f32 %v3289, %v3079
        %v3291 = vadd.f32 %v3290, %v3087
        %v3292 = vadd.f32 %v3291, %v3095
        %v3293 = vadd.f32 %v3292, %v3103
        %v3294 = vadd.f32 %v3293, %v3111
        %v3295 = vadd.f32 %v3294, %v3119
        %v3296 = vadd.f32 %v3295, %v3127
        %v3297 = vadd.f32 %v3296, %v3135
        %v3298 = vrot.slane %v3297, 4
        %v3299 = vadd.f32 %v3297, %v3298
        %v3300 = vrot.slane %v3299, 2
        %v3301 = vadd.f32 %v3299, %v3300
        %v3302 = vrot.slane %v3301, 1
        %v3303 = vadd.f32 %v3301, %v3302
        %v3312 = vrot.slane %v3177, 7
        %v3313 = vrot.slane %v3198, 6
        %v3314 = vrot.slane %v3219, 5
        %v3315 = vrot.slane %v3240, 4
        %v3316 = vrot.slane %v3261, 3
        %v3317 = vrot.slane %v3282, 2
        %v3318 = vrot.slane %v3303, 1
        %v3319 = vsel %vm583, %v3156, %v3312
        %vm3320 = vcmask 1042434
        %v3321 = vsel %vm3320, %v3313, %v3314
        %vm3322 = vcmask 1041408
        %v3323 = vsel %vm3322, %v3319, %v3321
        %vm3324 = vcmask 1044484
        %v3325 = vsel %vm3324, %v3315, %v3316
        %vm3326 = vcmask 1046534
        %v3327 = vsel %vm3326, %v3317, %v3318
        %vm3328 = vcmask 1045508
        %v3329 = vsel %vm3328, %v3325, %v3327
        %vm3330 = vcmask 1043456
        %v3331 = vsel %vm3330, %v3323, %v3329
        %3333 = vst [vmem:[%s281] sm:$0xff] %v3331
        %v3334 = vmul.f32 %v1010, %v2992
        %v3335 = vmul.f32 %v1019, %v2993
        %v3336 = vmul.f32 %v1028, %v2994
        %v3337 = vmul.f32 %v1037, %v2995
        %v3338 = vmul.f32 %v1046, %v2996
        %v3339 = vmul.f32 %v1055, %v2997
        %v3340 = vmul.f32 %v1064, %v2998
        %v3341 = vmul.f32 %v1073, %v2999
        %v3342 = vmul.f32 %v1082, %v3000
        %v3343 = vmul.f32 %v1091, %v3001
        %v3344 = vmul.f32 %v1100, %v3002
        %v3345 = vmul.f32 %v1109, %v3003
        %v3346 = vmul.f32 %v1118, %v3004
        %v3347 = vmul.f32 %v1127, %v3005
        %v3348 = vmul.f32 %v1136, %v3006
        %v3349 = vmul.f32 %v1145, %v3007
        %v3350 = vsel %vm1859, %v3334, 0.0
        %v3351 = vsel %vm1859, %v3335, 0.0
        %v3352 = vadd.f32 %v3350, %v3351
        %v3353 = vsel %vm1859, %v3336, 0.0
        %v3354 = vadd.f32 %v3352, %v3353
        %v3355 = vsel %vm1859, %v3337, 0.0
        %v3356 = vadd.f32 %v3354, %v3355
        %v3357 = vsel %vm1859, %v3338, 0.0
        %v3358 = vadd.f32 %v3356, %v3357
        %v3359 = vsel %vm1859, %v3339, 0.0
        %v3360 = vadd.f32 %v3358, %v3359
        %v3361 = vsel %vm1859, %v3340, 0.0
        %v3362 = vadd.f32 %v3360, %v3361
        %v3363 = vsel %vm1859, %v3341, 0.0
        %v3364 = vadd.f32 %v3362, %v3363
        %v3365 = vsel %vm1859, %v3342, 0.0
        %v3366 = vadd.f32 %v3364, %v3365
        %v3367 = vsel %vm1859, %v3343, 0.0
        %v3368 = vadd.f32 %v3366, %v3367
        %v3369 = vsel %vm1859, %v3344, 0.0
        %v3370 = vadd.f32 %v3368, %v3369
        %v3371 = vsel %vm1859, %v3345, 0.0
        %v3372 = vadd.f32 %v3370, %v3371
        %v3373 = vsel %vm1859, %v3346, 0.0
        %v3374 = vadd.f32 %v3372, %v3373
        %v3375 = vsel %vm1859, %v3347, 0.0
        %v3376 = vadd.f32 %v3374, %v3375
        %v3377 = vsel %vm1859, %v3348, 0.0
        %v3378 = vadd.f32 %v3376, %v3377
        %v3379 = vsel %vm1859, %v3349, 0.0
        %v3380 = vadd.f32 %v3378, %v3379
        %3381 = vadd.xlane.f32.xlu0 %v3380
        %v3382 = vpop.xlane.xlu0 %3381
        %v3383 = vrot.slane %v3382, 4
        %v3384 = vadd.f32 %v3382, %v3383
        %v3385 = vrot.slane %v3384, 2
        %v3386 = vadd.f32 %v3384, %v3385
        %v3387 = vrot.slane %v3386, 1
        %v3388 = vadd.f32 %v3386, %v3387
        %s3389 = vtos %v3388
        %v3390 = vstv %s3389
        %vm3391 = vcmask 0
        %3392 = vst.msk [vmem:[%s284] sm:$0x1] %vm3391, %v3390
        %s3393 = sand.u32 %s97, 1
        %s3394 = scalar_lea.sflag [#allocation3], %s3393
        %s3395 = sand.u32 %s97, 1
        %s3396 = smul.addr %s3395, 128
        %s3397 = scalar_lea.vmem [#allocation2], %s3396
        %s3398 = smul.u32 16, %s21
        %p3399 = scmp.lt.s32.totalorder %s3398, 63
        %s3400 = scalar_select %p3399, %s3398, 63
        %s3401 = smul.addr %s3400, 8
        %s3402 = scalar_lea.vmem %s4, %s3401
        %p3403 = scmp.lt.s32.totalorder %s21, 3
        %s3404 = scalar_select %p3403, %s21, 3
        %s3405 = smul.addr %s3404, 8
        %s3406 = scalar_lea.vmem %s5, %s3405
        %p3407 = scmp.lt.s32.totalorder %s21, 3
        %s3408 = scalar_select %p3407, %s21, 3
        %s3409 = scalar_lea.vmem %s6, %s3408
        // Predicated region
        $region33: #{vector_quantizer_forward.1} parent=31 // pred_check
          %p3410 = pneg %p107
        $region34: #{vector_quantizer_forward.1} parent=31 // pred_check_branch
          %3412 = sbr.rel (%p3410) target = $region36
        $region35: #{vector_quantizer_forward.1} parent=31 // pred_region
          %s3413 = smul.u32 16, %s21
          %3415 = vsyncadd %s3394, 0
          %s3416 = smul.addr %s3413, 8
          %s3417 = scalar_lea.hbm %s3, %s3416
          %s3418 = sshll.u32 %s3397, 4
          %s3419 = int_to_ptr.vmem [resolvable:$true] %s3418
          %s3420 = sshll.u32 %s3417, 4
          %s3421 = int_to_ptr.hbm [resolvable:$true] %s3420
          %3426 = dma.vmem_to_hbm [thread:$0]  %s3419, 2048, %s3421, %s3394, 128, 128, 8
        $region36: #{vector_quantizer_forward.1} parent=31 // pred_fallthru
          _
        // Predicated region
        $region37: #{vector_quantizer_forward.1} parent=31 // pred_check
          %p3427 = pneg %p133
        $region38: #{vector_quantizer_forward.1} parent=31 // pred_check_branch
          %3429 = sbr.rel (%p3427) target = $region40
        $region39: #{vector_quantizer_forward.1} parent=31 // pred_region
          %s3430 = smul.u32 16, %s21
        $region40: #{vector_quantizer_forward.1} parent=31 // pred_fallthru
          _
        // Predicated region
        $region41: #{vector_quantizer_forward.1} parent=31 // pred_check
          %p3431 = pneg %p159
        $region42: #{vector_quantizer_forward.1} parent=31 // pred_check_branch
          %3433 = sbr.rel (%p3431) target = $region44
        $region43: #{vector_quantizer_forward.1} parent=31 // pred_region
          _
        $region44: #{vector_quantizer_forward.1} parent=31 // pred_fallthru
          _
        // Predicated region
        $region45: #{vector_quantizer_forward.1} parent=31 // pred_check
          %p3434 = pneg %p185
        $region46: #{vector_quantizer_forward.1} parent=31 // pred_check_branch
          %3436 = sbr.rel (%p3434) target = $region48
        $region47: #{vector_quantizer_forward.1} parent=31 // pred_region
          _
        $region48: #{vector_quantizer_forward.1} parent=31 // pred_fallthru
          _
      $region32: #{vector_quantizer_forward.1} parent=5 // pred_fallthru
        _
      %p3437 = scmp.le.s32.totalorder 2, %s16
      // Predicated region
      $region49: #{vector_quantizer_forward.1} parent=5 // pred_check
        %p3438 = pneg %p3437
      $region50: #{vector_quantizer_forward.1} parent=5 // pred_check_branch
        %3440 = sbr.rel (%p3438) target = $region52
      $region51: #{vector_quantizer_forward.1} parent=5 // pred_region
        %s3441 = ssub.s32 %s16, 2
        // Predicated region
        $region53: #{vector_quantizer_forward.1} parent=51 // pred_check
          %p3442 = pneg %p113
        $region54: #{vector_quantizer_forward.1} parent=51 // pred_check_branch
          %3444 = sbr.rel (%p3442) target = $region56
        $region55: #{vector_quantizer_forward.1} parent=51 // pred_region
          %s3445 = sand.u32 %s98, 1
          %s3446 = scalar_lea.sflag [#allocation3], %s3445
          %s3447 = sand.u32 %s98, 1
          %s3448 = smul.addr %s3447, 128
          %s3449 = scalar_lea.vmem [#allocation2], %s3448
          %3451 = dma.done %s3446, 2048
        $region56: #{vector_quantizer_forward.1} parent=51 // pred_fallthru
          _
        // Predicated region
        $region57: #{vector_quantizer_forward.1} parent=51 // pred_check
          %p3452 = pneg %p139
        $region58: #{vector_quantizer_forward.1} parent=51 // pred_check_branch
          %3454 = sbr.rel (%p3452) target = $region60
        $region59: #{vector_quantizer_forward.1} parent=51 // pred_region
          %s3455 = smul.u32 16, %s22
          %p3456 = scmp.lt.s32.totalorder %s3455, 63
          %s3457 = scalar_select %p3456, %s3455, 63
          %s3458 = smul.addr %s3457, 8
          %s3459 = scalar_lea.vmem %s4, %s3458
        $region60: #{vector_quantizer_forward.1} parent=51 // pred_fallthru
          _
        // Predicated region
        $region61: #{vector_quantizer_forward.1} parent=51 // pred_check
          %p3460 = pneg %p165
        $region62: #{vector_quantizer_forward.1} parent=51 // pred_check_branch
          %3462 = sbr.rel (%p3460) target = $region64
        $region63: #{vector_quantizer_forward.1} parent=51 // pred_region
          %p3463 = scmp.lt.s32.totalorder %s22, 3
          %s3464 = scalar_select %p3463, %s22, 3
          %s3465 = smul.addr %s3464, 8
          %s3466 = scalar_lea.vmem %s5, %s3465
        $region64: #{vector_quantizer_forward.1} parent=51 // pred_fallthru
          _
        // Predicated region
        $region65: #{vector_quantizer_forward.1} parent=51 // pred_check
          %p3467 = pneg %p191
        $region66: #{vector_quantizer_forward.1} parent=51 // pred_check_branch
          %3469 = sbr.rel (%p3467) target = $region68
        $region67: #{vector_quantizer_forward.1} parent=51 // pred_region
          %p3470 = scmp.lt.s32.totalorder %s22, 3
          %s3471 = scalar_select %p3470, %s22, 3
          %s3472 = scalar_lea.vmem %s6, %s3471
        $region68: #{vector_quantizer_forward.1} parent=51 // pred_fallthru
          _
      $region52: #{vector_quantizer_forward.1} parent=5 // pred_fallthru
        _
    $region6: #{vector_quantizer_forward.1} parent=1 // loop_footer
      %s20 = sadd.s32 1, %s16
    $region7: #{vector_quantizer_forward.1} parent=1 // loop_footer_branch
      %15 = sbr.rel target = $region3
    $region8: #{vector_quantizer_forward.1} parent=1 // loop_exit
      _
    %3473 = vsyncpa [#allocation3], 1
    %s3474 = scalar_lea.sflag [#allocation3], 1
    %3475 = vsyncpa %s3474, 1

</llo_original>
